<compile_context>
chip_gen: v6e
topology: v6e:2x2x1
jax: 0.10.0
libtpu: 0.0.40
codegen_flags: <defaults>
</compile_context>

<pallas_src>
import numpy as np
import jax
import jax.numpy as jnp
from jax import lax
from jax.experimental import pallas as pl
from jax.experimental.pallas import tpu as pltpu

LEAK = 0.02
BN_EPS = 1e-5

# static geometry implied by the module (28x28 input, View(250))
OH1 = 12            # conv1 output spatial: (28-5)//2 + 1
N1 = OH1 * OH1      # 144 conv1 output positions
K1P = 32            # conv1 im2col K (25) padded to a sublane multiple
OH2 = 5             # conv2 output spatial: (12-3)//2 + 1
N2 = OH2 * OH2      # 25 conv2 output positions
N2P = 32            # conv2 positions padded to a sublane multiple
CI = 16             # channel count (10) padded on contraction dims
CL = 128            # channel count (10) padded to full lane width on outputs
NCH = 10            # real channel count


# ---------------------------------------------------------------------------
# Single fused Pallas kernel (one grid step = one image)
# ---------------------------------------------------------------------------
def _fused_kernel(p1_ref, w1_ref, s_ref, w2_ref, wl_ref, vec_ref, o_ref, a1_s, a2_s):
    f32 = jnp.float32
    b1, g1, be1 = vec_ref[0:1, :], vec_ref[1:2, :], vec_ref[2:3, :]
    b2, g2, be2 = vec_ref[3:4, :], vec_ref[4:5, :], vec_ref[5:6, :]
    bl = vec_ref[6:7, :]

    # ---- stage 1: Conv2d(1,10,5,s=2) (im2col matmul) + bias + LeakyReLU + BN ----
    y = jnp.dot(p1_ref[0], w1_ref[...], preferred_element_type=f32) + b1     # (144,128)
    y = jnp.where(y >= 0.0, y, LEAK * y)
    # BN stats: exact-f32 sublane reductions, E[x^2]-E[x]^2 (independent, low vreg use)
    m1 = jnp.mean(y, axis=0, keepdims=True)                                  # (1,128)
    q1 = jnp.mean(y * y, axis=0, keepdims=True)                              # (1,128)
    v1 = q1 - m1 * m1                                                        # biased var
    a1_s[...] = (y - m1) * (g1 * lax.rsqrt(v1 + BN_EPS)) + be1               # (144,128)

    # ---- stage 2: Conv2d(10,10,3,s=2) via 9 independent (gather, tap) matmul pairs ----
    a1n = a1_s[:, 0:CI]                                     # (144,16) valid channels
    parts = []
    for grp in range(3):                                    # 3 independent accumulators
        acc = None
        for k in range(3 * grp, 3 * grp + 3):               # static unroll over (kh,kw)
            t = jnp.dot(s_ref[k], a1n, preferred_element_type=f32)        # (32,16)
            tap = jnp.dot(t, w2_ref[k], preferred_element_type=f32)       # (32,128)
            acc = tap if acc is None else acc + tap
        parts.append(acc)
    y2 = (parts[0] + parts[1]) + (parts[2] + b2)                             # (32,128)
    y2 = jnp.where(y2 >= 0.0, y2, LEAK * y2)
    # masked BN stats over the 25 valid rows only (rows 25..31 are padding)
    rmask = (lax.broadcasted_iota(jnp.int32, (N2P, 1), 0) < N2).astype(f32)  # (32,1)
    ym = y2 * rmask
    m2 = jnp.sum(ym, axis=0, keepdims=True) * (1.0 / N2)                     # (1,128)
    q2 = jnp.sum(ym * y2, axis=0, keepdims=True) * (1.0 / N2)
    v2 = q2 - m2 * m2
    a2_s[...] = (y2 - m2) * (g2 * lax.rsqrt(v2 + BN_EPS)) + be2              # (32,128)

    # ---- stage 3: View(250) + Linear(250,10) + Sigmoid, MXU-free (VPU/XLU only) ----
    # partial[p,o] = sum_c a2[p,c] * wl[o, c*25+p]; columns of a2 are extracted with a
    # one-hot lane mask + lane reduce, broadcast over lanes and MAC'd with wl_ref[c].
    a2 = a2_s[...]                                                           # (32,128)
    lane = lax.broadcasted_iota(jnp.int32, (1, CL), 1)                       # (1,128)
    acc_a = None
    acc_b = None
    for c in range(NCH):                                    # two independent chains
        onehot = (lane == c).astype(f32)                                     # (1,128)
        col = jnp.sum(a2 * onehot, axis=1, keepdims=True)                    # (32,1)
        term = col * wl_ref[c]                                               # (32,128)
        if c % 2 == 0:
            acc_a = term if acc_a is None else acc_a + term
        else:
            acc_b = term if acc_b is None else acc_b + term
    # rows >= 25 and lanes >= 10 of (acc_a+acc_b) are exactly 0 (wl_ref padding rows are 0)
    logits = jnp.sum(acc_a + acc_b, axis=0, keepdims=True) + bl              # (1,128)
    o_ref[0] = 1.0 / (1.0 + jnp.exp(-logits))               # exact sigmoid (EUP exp)


def _fused_forward_call(p1, w1p, S, w2p, wlcube, vec):
    B = p1.shape[0]
    return pl.pallas_call(
        _fused_kernel,
        out_shape=jax.ShapeDtypeStruct((B, 1, CL), jnp.float32),
        grid=(B,),
        in_specs=[
            pl.BlockSpec((1, N1, K1P), lambda b: (b, 0, 0)),     # per-image im2col block
            pl.BlockSpec((K1P, CL), lambda b: (0, 0)),           # conv1 weights (resident)
            pl.BlockSpec((9, N2P, N1), lambda b: (0, 0, 0)),     # conv2 gather matrices
            pl.BlockSpec((9, CI, CL), lambda b: (0, 0, 0)),      # conv2 tap weights
            pl.BlockSpec((NCH, N2P, CL), lambda b: (0, 0, 0)),   # linear weight slabs
            pl.BlockSpec((8, CL), lambda b: (0, 0)),             # packed per-channel vecs
        ],
        out_specs=pl.BlockSpec((1, 1, CL), lambda b: (b, 0, 0)),
        scratch_shapes=[pltpu.VMEM((N1, CL), jnp.float32),       # a1 (post-BN stage 1)
                        pltpu.VMEM((N2P, CL), jnp.float32)],     # a2 (post-BN stage 2)
        compiler_params=pltpu.CompilerParams(
            dimension_semantics=("parallel",)),                  # v7x: split batch on 2 TCs
    )(p1, w1p, S, w2p, wlcube, vec)


# ---------------------------------------------------------------------------
# One-time parameter preparation (all reshapes/transposes/padding hoisted here)
# ---------------------------------------------------------------------------
def prepare_params(params):
    (w1, b1, g1, be1, w2, b2, g2, be2, wl, bl) = params
    f32 = jnp.float32

    # conv1: OIHW (10,1,5,5) -> (25,10), zero-padded to (32,128)
    w1p = jnp.zeros((K1P, CL), f32).at[:25, :10].set(w1.reshape(10, 25).T.astype(f32))

    # conv2 per-tap weights: (9,16,128) with w2p[k][ci,co] = w2[co,ci,kh,kw], k = kh*3+kw
    w2r = jnp.transpose(w2, (2, 3, 1, 0)).reshape(9, 10, 10).astype(f32)
    w2p = jnp.zeros((9, CI, CL), f32).at[:, :10, :10].set(w2r)

    # linear per-channel weight slabs: (10,32,128) with wlcube[c][p,o] = wl[o, c*25+p]
    wlr = jnp.transpose(wl.reshape(10, 10, N2), (1, 2, 0)).astype(f32)       # (c,p,o)
    wlcube = jnp.zeros((NCH, N2P, CL), f32).at[:, :N2, :10].set(wlr)

    # per-channel vectors packed into one lane-dense (8,128) tile
    vec = jnp.zeros((8, CL), f32)
    for row, v in enumerate((b1, g1, be1, b2, g2, be2, bl)):
        vec = vec.at[row, :v.shape[0]].set(v.astype(f32))

    # conv2 im2col gather matrices: S[k, r2, r1] = 1 where
    #   r2 = oh2*5+ow2 (<25),  r1 = (2*oh2+kh)*12 + (2*ow2+kw),  k = kh*3+kw
    S = np.zeros((9, N2P, N1), np.float32)
    for kh in range(3):
        for kw in range(3):
            for oh in range(OH2):
                for ow in range(OH2):
                    S[kh * 3 + kw, oh * OH2 + ow,
                      (2 * oh + kh) * OH1 + (2 * ow + kw)] = 1.0
    return (w1p, jnp.asarray(S), w2p, wlcube, vec)


# ---------------------------------------------------------------------------
# Forward pass: one vectorized im2col gather for the whole batch, then one
# batched (grid=(B,)) fused Pallas call.
# ---------------------------------------------------------------------------
@jax.jit
def classifier_forward(x, prepped):
    """x: (B, 1, 28, 28) float32 NCHW.  Returns (B, 10) float32 — B independent
    forwards of the torch module (whose View(250) forces batch 1 per sample)."""
    w1p, S, w2p, wlcube, vec = prepped
    B = x.shape[0]
    img = x.reshape(B, 28, 28).astype(jnp.float32)

    # stage-1 im2col: rows ordered (oh, ow), columns ordered (kh, kw); pad K 25 -> 32
    idx = 2 * jnp.arange(OH1)[:, None] + jnp.arange(5)[None, :]              # (12,5)
    patches = img[:, idx[:, None, :, None], idx[None, :, None, :]]           # (B,12,12,5,5)
    p1 = jnp.pad(patches.reshape(B, N1, 25), ((0, 0), (0, 0), (0, K1P - 25)))  # (B,144,32)

    out = _fused_forward_call(p1, w1p, S, w2p, wlcube, vec)                  # (B,1,128)
    return out[:, 0, :10]


# ---------------------------------------------------------------------------
# Deterministic synthetic parameters (shapes follow the torch __init__)
# ---------------------------------------------------------------------------
def init_params(key):
    ks = jax.random.split(key, 6)
    w1 = jax.random.normal(ks[0], (10, 1, 5, 5), jnp.float32) * 0.2
    b1 = jax.random.normal(ks[1], (10,), jnp.float32) * 0.1
    g1 = jnp.ones((10,), jnp.float32)
    be1 = jnp.zeros((10,), jnp.float32)
    w2 = jax.random.normal(ks[2], (10, 10, 3, 3), jnp.float32) * 0.1
    b2 = jax.random.normal(ks[3], (10,), jnp.float32) * 0.1
    g2 = jnp.ones((10,), jnp.float32)
    be2 = jnp.zeros((10,), jnp.float32)
    wl = jax.random.normal(ks[4], (10, 250), jnp.float32) * 0.06
    bl = jax.random.normal(ks[5], (10,), jnp.float32) * 0.1
    return (w1, b1, g1, be1, w2, b2, g2, be2, wl, bl)


# ---------------------------------------------------------------------------
# Pure-JAX reference (independent of the Pallas path) for validation
# ---------------------------------------------------------------------------
def reference_forward(x, params):
    (w1, b1, g1, be1, w2, b2, g2, be2, wl, bl) = params

    def block(y, w, b, g, be, stride):
        y = lax.conv_general_dilated(y, w, (stride, stride), "VALID",
                                     dimension_numbers=("NCHW", "OIHW", "NCHW"))
        y = y + b[None, :, None, None]
        y = jnp.where(y >= 0.0, y, LEAK * y)
        mean = jnp.mean(y, axis=(0, 2, 3), keepdims=True)
        var = jnp.mean((y - mean) ** 2, axis=(0, 2, 3), keepdims=True)
        y = (y - mean) / jnp.sqrt(var + BN_EPS)
        return y * g[None, :, None, None] + be[None, :, None, None]

    y = block(x, w1, b1, g1, be1, 2)
    y = block(y, w2, b2, g2, be2, 2)
    flat = y.reshape(250)
    return jax.nn.sigmoid(flat @ wl.T + bl)


if __name__ == "__main__":
    key = jax.random.PRNGKey(0)
    kx, kp = jax.random.split(key)
    B = 8
    x = jax.random.uniform(kx, (B, 1, 28, 28), jnp.float32)   # B MNIST-shaped images
    params = init_params(kp)
    prepped = prepare_params(params)                          # one-time weight prep

    out = jax.block_until_ready(classifier_forward(x, prepped))
    ref = jnp.stack([reference_forward(x[i:i + 1], params) for i in range(B)])
    ref = jax.block_until_ready(ref)

    assert out.shape == (B, 10), out.shape
    # remaining mismatch vs. the reference comes from default (bf16-pass) MXU precision
    # in the two conv contractions on both paths; stats and the linear head are exact f32
    assert jnp.allclose(out, ref, rtol=2e-4, atol=2e-4), (out, ref)
    print("KERNEL_OK")
</pallas_src>

<mosaic_0001>
module attributes {stable_mosaic.version = 11 : i64} {
  func.func @_fused_kernel(%arg0: i32, %arg1: memref<1x144x32xf32, #tpu.memory_space<vmem>>, %arg2: memref<32x128xf32, #tpu.memory_space<vmem>>, %arg3: memref<9x32x144xf32, #tpu.memory_space<vmem>>, %arg4: memref<9x16x128xf32, #tpu.memory_space<vmem>>, %arg5: memref<10x32x128xf32, #tpu.memory_space<vmem>>, %arg6: memref<8x128xf32, #tpu.memory_space<vmem>>, %arg7: memref<1x1x128xf32, #tpu.memory_space<vmem>>, %arg8: memref<144x128xf32, #tpu.memory_space<vmem>>, %arg9: memref<32x128xf32, #tpu.memory_space<vmem>>) attributes {dimension_semantics = [#tpu.dimension_semantics<parallel>], iteration_bounds = array<i64: 8>, scalar_prefetch = 0 : i64, scratch_operands = 2 : i64, tpu.core_type = #tpu.core_type<tc>, window_params = [{transform_indices = @transform_0, window_bounds = array<i64: 1, 144, 32>}, {pipeline_mode = #tpu.pipeline_mode<synchronous>, transform_indices = @transform_1, window_bounds = array<i64: 32, 128>}, {pipeline_mode = #tpu.pipeline_mode<synchronous>, transform_indices = @transform_2, window_bounds = array<i64: 9, 32, 144>}, {pipeline_mode = #tpu.pipeline_mode<synchronous>, transform_indices = @transform_3, window_bounds = array<i64: 9, 16, 128>}, {pipeline_mode = #tpu.pipeline_mode<synchronous>, transform_indices = @transform_4, window_bounds = array<i64: 10, 32, 128>}, {pipeline_mode = #tpu.pipeline_mode<synchronous>, transform_indices = @transform_5, window_bounds = array<i64: 8, 128>}, {transform_indices = @transform_6, window_bounds = array<i64: 1, 1, 128>}]} {
    %c0 = arith.constant 0 : index
    %c0_0 = arith.constant 0 : index
    %0 = vector.load %arg6[%c0, %c0_0] : memref<8x128xf32, #tpu.memory_space<vmem>>, vector<1x128xf32>
    %c1 = arith.constant 1 : index
    %c0_1 = arith.constant 0 : index
    %1 = vector.load %arg6[%c1, %c0_1] : memref<8x128xf32, #tpu.memory_space<vmem>>, vector<1x128xf32>
    %c2 = arith.constant 2 : index
    %c0_2 = arith.constant 0 : index
    %2 = vector.load %arg6[%c2, %c0_2] : memref<8x128xf32, #tpu.memory_space<vmem>>, vector<1x128xf32>
    %c3 = arith.constant 3 : index
    %c0_3 = arith.constant 0 : index
    %3 = vector.load %arg6[%c3, %c0_3] : memref<8x128xf32, #tpu.memory_space<vmem>>, vector<1x128xf32>
    %c4 = arith.constant 4 : index
    %c0_4 = arith.constant 0 : index
    %4 = vector.load %arg6[%c4, %c0_4] : memref<8x128xf32, #tpu.memory_space<vmem>>, vector<1x128xf32>
    %c5 = arith.constant 5 : index
    %c0_5 = arith.constant 0 : index
    %5 = vector.load %arg6[%c5, %c0_5] : memref<8x128xf32, #tpu.memory_space<vmem>>, vector<1x128xf32>
    %c6 = arith.constant 6 : index
    %c0_6 = arith.constant 0 : index
    %6 = vector.load %arg6[%c6, %c0_6] : memref<8x128xf32, #tpu.memory_space<vmem>>, vector<1x128xf32>
    %c0_7 = arith.constant 0 : index
    %c0_8 = arith.constant 0 : index
    %c0_9 = arith.constant 0 : index
    %7 = vector.load %arg1[%c0_7, %c0_8, %c0_9] : memref<1x144x32xf32, #tpu.memory_space<vmem>>, vector<1x144x32xf32>
    %8 = vector.shape_cast %7 : vector<1x144x32xf32> to vector<144x32xf32>
    %c0_10 = arith.constant 0 : index
    %c0_11 = arith.constant 0 : index
    %9 = vector.load %arg2[%c0_10, %c0_11] : memref<32x128xf32, #tpu.memory_space<vmem>>, vector<32x128xf32>
    %cst = arith.constant dense<0.000000e+00> : vector<144x128xf32>
    %10 = tpu.matmul %8, %9, %cst {dimension_numbers = #tpu.dot_dimension_numbers<[1], [0], [0], [1], [0, 0, 1, 1], [], []>} : vector<144x32xf32>, vector<32x128xf32>, vector<144x128xf32> -> vector<144x128xf32>
    %11 = vector.broadcast %0 : vector<1x128xf32> to vector<144x128xf32>
    %12 = arith.addf %10, %11 : vector<144x128xf32>
    %cst_12 = arith.constant 0.000000e+00 : f32
    %13 = vector.broadcast %cst_12 : f32 to vector<144x128xf32>
    %14 = arith.cmpf oge, %12, %13 : vector<144x128xf32>
    %cst_13 = arith.constant 2.000000e-02 : f32
    %15 = vector.broadcast %cst_13 : f32 to vector<144x128xf32>
    %16 = arith.mulf %15, %12 : vector<144x128xf32>
    %17 = arith.select %14, %12, %16 : vector<144x128xi1>, vector<144x128xf32>
    %cst_14 = arith.constant dense<0.000000e+00> : vector<128xf32>
    %18 = vector.multi_reduction <add>, %17, %cst_14 [0] : vector<144x128xf32> to vector<128xf32>
    %19 = vector.shape_cast %18 : vector<128xf32> to vector<1x128xf32>
    %cst_15 = arith.constant 1.440000e+02 : f32
    %20 = vector.broadcast %cst_15 : f32 to vector<1x128xf32>
    %21 = arith.divf %19, %20 : vector<1x128xf32>
    %22 = arith.mulf %17, %17 : vector<144x128xf32>
    %cst_16 = arith.constant dense<0.000000e+00> : vector<128xf32>
    %23 = vector.multi_reduction <add>, %22, %cst_16 [0] : vector<144x128xf32> to vector<128xf32>
    %24 = vector.shape_cast %23 : vector<128xf32> to vector<1x128xf32>
    %cst_17 = arith.constant 1.440000e+02 : f32
    %25 = vector.broadcast %cst_17 : f32 to vector<1x128xf32>
    %26 = arith.divf %24, %25 : vector<1x128xf32>
    %27 = arith.mulf %21, %21 : vector<1x128xf32>
    %28 = arith.subf %26, %27 : vector<1x128xf32>
    %29 = vector.broadcast %21 : vector<1x128xf32> to vector<144x128xf32>
    %30 = arith.subf %17, %29 : vector<144x128xf32>
    %cst_18 = arith.constant 9.99999974E-6 : f32
    %31 = vector.broadcast %cst_18 : f32 to vector<1x128xf32>
    %32 = arith.addf %28, %31 : vector<1x128xf32>
    %33 = math.rsqrt %32 : vector<1x128xf32>
    %34 = arith.mulf %1, %33 : vector<1x128xf32>
    %35 = vector.broadcast %34 : vector<1x128xf32> to vector<144x128xf32>
    %36 = arith.mulf %30, %35 : vector<144x128xf32>
    %37 = vector.broadcast %2 : vector<1x128xf32> to vector<144x128xf32>
    %38 = arith.addf %36, %37 : vector<144x128xf32>
    %c0_19 = arith.constant 0 : index
    %c0_20 = arith.constant 0 : index
    %39 = vector.load %arg8[%c0_19, %c0_20] : memref<144x128xf32, #tpu.memory_space<vmem>>, vector<144x128xf32>
    tpu.vector_store %arg8[%c0_19, %c0_20], %38 {strides = array<i32>} : memref<144x128xf32, #tpu.memory_space<vmem>>, vector<144x128xf32>,
    %c0_21 = arith.constant 0 : index
    %c0_22 = arith.constant 0 : index
    %40 = vector.load %arg8[%c0_21, %c0_22] : memref<144x128xf32, #tpu.memory_space<vmem>>, vector<144x16xf32>
    %c0_23 = arith.constant 0 : index
    %c0_24 = arith.constant 0 : index
    %c0_25 = arith.constant 0 : index
    %41 = vector.load %arg3[%c0_23, %c0_24, %c0_25] : memref<9x32x144xf32, #tpu.memory_space<vmem>>, vector<1x32x144xf32>
    %42 = vector.shape_cast %41 : vector<1x32x144xf32> to vector<32x144xf32>
    %cst_26 = arith.constant dense<0.000000e+00> : vector<32x16xf32>
    %43 = tpu.matmul %42, %40, %cst_26 {dimension_numbers = #tpu.dot_dimension_numbers<[1], [0], [0], [1], [0, 0, 1, 1], [], []>} : vector<32x144xf32>, vector<144x16xf32>, vector<32x16xf32> -> vector<32x16xf32>
    %c0_27 = arith.constant 0 : index
    %c0_28 = arith.constant 0 : index
    %c0_29 = arith.constant 0 : index
    %44 = vector.load %arg4[%c0_27, %c0_28, %c0_29] : memref<9x16x128xf32, #tpu.memory_space<vmem>>, vector<1x16x128xf32>
    %45 = vector.shape_cast %44 : vector<1x16x128xf32> to vector<16x128xf32>
    %cst_30 = arith.constant dense<0.000000e+00> : vector<32x128xf32>
    %46 = tpu.matmul %43, %45, %cst_30 {dimension_numbers = #tpu.dot_dimension_numbers<[1], [0], [0], [1], [0, 0, 1, 1], [], []>} : vector<32x16xf32>, vector<16x128xf32>, vector<32x128xf32> -> vector<32x128xf32>
    %c1_31 = arith.constant 1 : index
    %c0_32 = arith.constant 0 : index
    %c0_33 = arith.constant 0 : index
    %47 = vector.load %arg3[%c1_31, %c0_32, %c0_33] : memref<9x32x144xf32, #tpu.memory_space<vmem>>, vector<1x32x144xf32>
    %48 = vector.shape_cast %47 : vector<1x32x144xf32> to vector<32x144xf32>
    %cst_34 = arith.constant dense<0.000000e+00> : vector<32x16xf32>
    %49 = tpu.matmul %48, %40, %cst_34 {dimension_numbers = #tpu.dot_dimension_numbers<[1], [0], [0], [1], [0, 0, 1, 1], [], []>} : vector<32x144xf32>, vector<144x16xf32>, vector<32x16xf32> -> vector<32x16xf32>
    %c1_35 = arith.constant 1 : index
    %c0_36 = arith.constant 0 : index
    %c0_37 = arith.constant 0 : index
    %50 = vector.load %arg4[%c1_35, %c0_36, %c0_37] : memref<9x16x128xf32, #tpu.memory_space<vmem>>, vector<1x16x128xf32>
    %51 = vector.shape_cast %50 : vector<1x16x128xf32> to vector<16x128xf32>
    %cst_38 = arith.constant dense<0.000000e+00> : vector<32x128xf32>
    %52 = tpu.matmul %49, %51, %cst_38 {dimension_numbers = #tpu.dot_dimension_numbers<[1], [0], [0], [1], [0, 0, 1, 1], [], []>} : vector<32x16xf32>, vector<16x128xf32>, vector<32x128xf32> -> vector<32x128xf32>
    %53 = arith.addf %46, %52 : vector<32x128xf32>
    %c2_39 = arith.constant 2 : index
    %c0_40 = arith.constant 0 : index
    %c0_41 = arith.constant 0 : index
    %54 = vector.load %arg3[%c2_39, %c0_40, %c0_41] : memref<9x32x144xf32, #tpu.memory_space<vmem>>, vector<1x32x144xf32>
    %55 = vector.shape_cast %54 : vector<1x32x144xf32> to vector<32x144xf32>
    %cst_42 = arith.constant dense<0.000000e+00> : vector<32x16xf32>
    %56 = tpu.matmul %55, %40, %cst_42 {dimension_numbers = #tpu.dot_dimension_numbers<[1], [0], [0], [1], [0, 0, 1, 1], [], []>} : vector<32x144xf32>, vector<144x16xf32>, vector<32x16xf32> -> vector<32x16xf32>
    %c2_43 = arith.constant 2 : index
    %c0_44 = arith.constant 0 : index
    %c0_45 = arith.constant 0 : index
    %57 = vector.load %arg4[%c2_43, %c0_44, %c0_45] : memref<9x16x128xf32, #tpu.memory_space<vmem>>, vector<1x16x128xf32>
    %58 = vector.shape_cast %57 : vector<1x16x128xf32> to vector<16x128xf32>
    %cst_46 = arith.constant dense<0.000000e+00> : vector<32x128xf32>
    %59 = tpu.matmul %56, %58, %cst_46 {dimension_numbers = #tpu.dot_dimension_numbers<[1], [0], [0], [1], [0, 0, 1, 1], [], []>} : vector<32x16xf32>, vector<16x128xf32>, vector<32x128xf32> -> vector<32x128xf32>
    %60 = arith.addf %53, %59 : vector<32x128xf32>
    %c3_47 = arith.constant 3 : index
    %c0_48 = arith.constant 0 : index
    %c0_49 = arith.constant 0 : index
    %61 = vector.load %arg3[%c3_47, %c0_48, %c0_49] : memref<9x32x144xf32, #tpu.memory_space<vmem>>, vector<1x32x144xf32>
    %62 = vector.shape_cast %61 : vector<1x32x144xf32> to vector<32x144xf32>
    %cst_50 = arith.constant dense<0.000000e+00> : vector<32x16xf32>
    %63 = tpu.matmul %62, %40, %cst_50 {dimension_numbers = #tpu.dot_dimension_numbers<[1], [0], [0], [1], [0, 0, 1, 1], [], []>} : vector<32x144xf32>, vector<144x16xf32>, vector<32x16xf32> -> vector<32x16xf32>
    %c3_51 = arith.constant 3 : index
    %c0_52 = arith.constant 0 : index
    %c0_53 = arith.constant 0 : index
    %64 = vector.load %arg4[%c3_51, %c0_52, %c0_53] : memref<9x16x128xf32, #tpu.memory_space<vmem>>, vector<1x16x128xf32>
    %65 = vector.shape_cast %64 : vector<1x16x128xf32> to vector<16x128xf32>
    %cst_54 = arith.constant dense<0.000000e+00> : vector<32x128xf32>
    %66 = tpu.matmul %63, %65, %cst_54 {dimension_numbers = #tpu.dot_dimension_numbers<[1], [0], [0], [1], [0, 0, 1, 1], [], []>} : vector<32x16xf32>, vector<16x128xf32>, vector<32x128xf32> -> vector<32x128xf32>
    %c4_55 = arith.constant 4 : index
    %c0_56 = arith.constant 0 : index
    %c0_57 = arith.constant 0 : index
    %67 = vector.load %arg3[%c4_55, %c0_56, %c0_57] : memref<9x32x144xf32, #tpu.memory_space<vmem>>, vector<1x32x144xf32>
    %68 = vector.shape_cast %67 : vector<1x32x144xf32> to vector<32x144xf32>
    %cst_58 = arith.constant dense<0.000000e+00> : vector<32x16xf32>
    %69 = tpu.matmul %68, %40, %cst_58 {dimension_numbers = #tpu.dot_dimension_numbers<[1], [0], [0], [1], [0, 0, 1, 1], [], []>} : vector<32x144xf32>, vector<144x16xf32>, vector<32x16xf32> -> vector<32x16xf32>
    %c4_59 = arith.constant 4 : index
    %c0_60 = arith.constant 0 : index
    %c0_61 = arith.constant 0 : index
    %70 = vector.load %arg4[%c4_59, %c0_60, %c0_61] : memref<9x16x128xf32, #tpu.memory_space<vmem>>, vector<1x16x128xf32>
    %71 = vector.shape_cast %70 : vector<1x16x128xf32> to vector<16x128xf32>
    %cst_62 = arith.constant dense<0.000000e+00> : vector<32x128xf32>
    %72 = tpu.matmul %69, %71, %cst_62 {dimension_numbers = #tpu.dot_dimension_numbers<[1], [0], [0], [1], [0, 0, 1, 1], [], []>} : vector<32x16xf32>, vector<16x128xf32>, vector<32x128xf32> -> vector<32x128xf32>
    %73 = arith.addf %66, %72 : vector<32x128xf32>
    %c5_63 = arith.constant 5 : index
    %c0_64 = arith.constant 0 : index
    %c0_65 = arith.constant 0 : index
    %74 = vector.load %arg3[%c5_63, %c0_64, %c0_65] : memref<9x32x144xf32, #tpu.memory_space<vmem>>, vector<1x32x144xf32>
    %75 = vector.shape_cast %74 : vector<1x32x144xf32> to vector<32x144xf32>
    %cst_66 = arith.constant dense<0.000000e+00> : vector<32x16xf32>
    %76 = tpu.matmul %75, %40, %cst_66 {dimension_numbers = #tpu.dot_dimension_numbers<[1], [0], [0], [1], [0, 0, 1, 1], [], []>} : vector<32x144xf32>, vector<144x16xf32>, vector<32x16xf32> -> vector<32x16xf32>
    %c5_67 = arith.constant 5 : index
    %c0_68 = arith.constant 0 : index
    %c0_69 = arith.constant 0 : index
    %77 = vector.load %arg4[%c5_67, %c0_68, %c0_69] : memref<9x16x128xf32, #tpu.memory_space<vmem>>, vector<1x16x128xf32>
    %78 = vector.shape_cast %77 : vector<1x16x128xf32> to vector<16x128xf32>
    %cst_70 = arith.constant dense<0.000000e+00> : vector<32x128xf32>
    %79 = tpu.matmul %76, %78, %cst_70 {dimension_numbers = #tpu.dot_dimension_numbers<[1], [0], [0], [1], [0, 0, 1, 1], [], []>} : vector<32x16xf32>, vector<16x128xf32>, vector<32x128xf32> -> vector<32x128xf32>
    %80 = arith.addf %73, %79 : vector<32x128xf32>
    %c6_71 = arith.constant 6 : index
    %c0_72 = arith.constant 0 : index
    %c0_73 = arith.constant 0 : index
    %81 = vector.load %arg3[%c6_71, %c0_72, %c0_73] : memref<9x32x144xf32, #tpu.memory_space<vmem>>, vector<1x32x144xf32>
    %82 = vector.shape_cast %81 : vector<1x32x144xf32> to vector<32x144xf32>
    %cst_74 = arith.constant dense<0.000000e+00> : vector<32x16xf32>
    %83 = tpu.matmul %82, %40, %cst_74 {dimension_numbers = #tpu.dot_dimension_numbers<[1], [0], [0], [1], [0, 0, 1, 1], [], []>} : vector<32x144xf32>, vector<144x16xf32>, vector<32x16xf32> -> vector<32x16xf32>
    %c6_75 = arith.constant 6 : index
    %c0_76 = arith.constant 0 : index
    %c0_77 = arith.constant 0 : index
    %84 = vector.load %arg4[%c6_75, %c0_76, %c0_77] : memref<9x16x128xf32, #tpu.memory_space<vmem>>, vector<1x16x128xf32>
    %85 = vector.shape_cast %84 : vector<1x16x128xf32> to vector<16x128xf32>
    %cst_78 = arith.constant dense<0.000000e+00> : vector<32x128xf32>
    %86 = tpu.matmul %83, %85, %cst_78 {dimension_numbers = #tpu.dot_dimension_numbers<[1], [0], [0], [1], [0, 0, 1, 1], [], []>} : vector<32x16xf32>, vector<16x128xf32>, vector<32x128xf32> -> vector<32x128xf32>
    %c7 = arith.constant 7 : index
    %c0_79 = arith.constant 0 : index
    %c0_80 = arith.constant 0 : index
    %87 = vector.load %arg3[%c7, %c0_79, %c0_80] : memref<9x32x144xf32, #tpu.memory_space<vmem>>, vector<1x32x144xf32>
    %88 = vector.shape_cast %87 : vector<1x32x144xf32> to vector<32x144xf32>
    %cst_81 = arith.constant dense<0.000000e+00> : vector<32x16xf32>
    %89 = tpu.matmul %88, %40, %cst_81 {dimension_numbers = #tpu.dot_dimension_numbers<[1], [0], [0], [1], [0, 0, 1, 1], [], []>} : vector<32x144xf32>, vector<144x16xf32>, vector<32x16xf32> -> vector<32x16xf32>
    %c7_82 = arith.constant 7 : index
    %c0_83 = arith.constant 0 : index
    %c0_84 = arith.constant 0 : index
    %90 = vector.load %arg4[%c7_82, %c0_83, %c0_84] : memref<9x16x128xf32, #tpu.memory_space<vmem>>, vector<1x16x128xf32>
    %91 = vector.shape_cast %90 : vector<1x16x128xf32> to vector<16x128xf32>
    %cst_85 = arith.constant dense<0.000000e+00> : vector<32x128xf32>
    %92 = tpu.matmul %89, %91, %cst_85 {dimension_numbers = #tpu.dot_dimension_numbers<[1], [0], [0], [1], [0, 0, 1, 1], [], []>} : vector<32x16xf32>, vector<16x128xf32>, vector<32x128xf32> -> vector<32x128xf32>
    %93 = arith.addf %86, %92 : vector<32x128xf32>
    %c8 = arith.constant 8 : index
    %c0_86 = arith.constant 0 : index
    %c0_87 = arith.constant 0 : index
    %94 = vector.load %arg3[%c8, %c0_86, %c0_87] : memref<9x32x144xf32, #tpu.memory_space<vmem>>, vector<1x32x144xf32>
    %95 = vector.shape_cast %94 : vector<1x32x144xf32> to vector<32x144xf32>
    %cst_88 = arith.constant dense<0.000000e+00> : vector<32x16xf32>
    %96 = tpu.matmul %95, %40, %cst_88 {dimension_numbers = #tpu.dot_dimension_numbers<[1], [0], [0], [1], [0, 0, 1, 1], [], []>} : vector<32x144xf32>, vector<144x16xf32>, vector<32x16xf32> -> vector<32x16xf32>
    %c8_89 = arith.constant 8 : index
    %c0_90 = arith.constant 0 : index
    %c0_91 = arith.constant 0 : index
    %97 = vector.load %arg4[%c8_89, %c0_90, %c0_91] : memref<9x16x128xf32, #tpu.memory_space<vmem>>, vector<1x16x128xf32>
    %98 = vector.shape_cast %97 : vector<1x16x128xf32> to vector<16x128xf32>
    %cst_92 = arith.constant dense<0.000000e+00> : vector<32x128xf32>
    %99 = tpu.matmul %96, %98, %cst_92 {dimension_numbers = #tpu.dot_dimension_numbers<[1], [0], [0], [1], [0, 0, 1, 1], [], []>} : vector<32x16xf32>, vector<16x128xf32>, vector<32x128xf32> -> vector<32x128xf32>
    %100 = arith.addf %93, %99 : vector<32x128xf32>
    %101 = arith.addf %60, %80 : vector<32x128xf32>
    %102 = vector.broadcast %3 : vector<1x128xf32> to vector<32x128xf32>
    %103 = arith.addf %100, %102 : vector<32x128xf32>
    %104 = arith.addf %101, %103 : vector<32x128xf32>
    %cst_93 = arith.constant 0.000000e+00 : f32
    %105 = vector.broadcast %cst_93 : f32 to vector<32x128xf32>
    %106 = arith.cmpf oge, %104, %105 : vector<32x128xf32>
    %cst_94 = arith.constant 2.000000e-02 : f32
    %107 = vector.broadcast %cst_94 : f32 to vector<32x128xf32>
    %108 = arith.mulf %107, %104 : vector<32x128xf32>
    %109 = arith.select %106, %104, %108 : vector<32x128xi1>, vector<32x128xf32>
    %110 = tpu.iota {dimensions = array<i32: 0>} : vector<32x1xi32>
    %c25_i32 = arith.constant 25 : i32
    %111 = vector.broadcast %c25_i32 : i32 to vector<32x1xi32>
    %112 = arith.cmpi slt, %110, %111 : vector<32x1xi32>
    %113 = arith.extui %112 : vector<32x1xi1> to vector<32x1xi32>
    %114 = arith.sitofp %113 : vector<32x1xi32> to vector<32x1xf32>
    %115 = vector.broadcast %114 : vector<32x1xf32> to vector<32x128xf32>
    %116 = arith.mulf %109, %115 : vector<32x128xf32>
    %cst_95 = arith.constant dense<0.000000e+00> : vector<128xf32>
    %117 = vector.multi_reduction <add>, %116, %cst_95 [0] : vector<32x128xf32> to vector<128xf32>
    %118 = vector.shape_cast %117 : vector<128xf32> to vector<1x128xf32>
    %cst_96 = arith.constant 4.000000e-02 : f32
    %119 = vector.broadcast %cst_96 : f32 to vector<1x128xf32>
    %120 = arith.mulf %118, %119 : vector<1x128xf32>
    %121 = arith.mulf %116, %109 : vector<32x128xf32>
    %cst_97 = arith.constant dense<0.000000e+00> : vector<128xf32>
    %122 = vector.multi_reduction <add>, %121, %cst_97 [0] : vector<32x128xf32> to vector<128xf32>
    %123 = vector.shape_cast %122 : vector<128xf32> to vector<1x128xf32>
    %cst_98 = arith.constant 4.000000e-02 : f32
    %124 = vector.broadcast %cst_98 : f32 to vector<1x128xf32>
    %125 = arith.mulf %123, %124 : vector<1x128xf32>
    %126 = arith.mulf %120, %120 : vector<1x128xf32>
    %127 = arith.subf %125, %126 : vector<1x128xf32>
    %128 = vector.broadcast %120 : vector<1x128xf32> to vector<32x128xf32>
    %129 = arith.subf %109, %128 : vector<32x128xf32>
    %cst_99 = arith.constant 9.99999974E-6 : f32
    %130 = vector.broadcast %cst_99 : f32 to vector<1x128xf32>
    %131 = arith.addf %127, %130 : vector<1x128xf32>
    %132 = math.rsqrt %131 : vector<1x128xf32>
    %133 = arith.mulf %4, %132 : vector<1x128xf32>
    %134 = vector.broadcast %133 : vector<1x128xf32> to vector<32x128xf32>
    %135 = arith.mulf %129, %134 : vector<32x128xf32>
    %136 = vector.broadcast %5 : vector<1x128xf32> to vector<32x128xf32>
    %137 = arith.addf %135, %136 : vector<32x128xf32>
    %c0_100 = arith.constant 0 : index
    %c0_101 = arith.constant 0 : index
    %138 = vector.load %arg9[%c0_100, %c0_101] : memref<32x128xf32, #tpu.memory_space<vmem>>, vector<32x128xf32>
    tpu.vector_store %arg9[%c0_100, %c0_101], %137 {strides = array<i32>} : memref<32x128xf32, #tpu.memory_space<vmem>>, vector<32x128xf32>,
    %c0_102 = arith.constant 0 : index
    %c0_103 = arith.constant 0 : index
    %139 = vector.load %arg9[%c0_102, %c0_103] : memref<32x128xf32, #tpu.memory_space<vmem>>, vector<32x128xf32>
    %140 = tpu.iota {dimensions = array<i32: 1>} : vector<1x128xi32>
    %c0_i32 = arith.constant 0 : i32
    %141 = vector.broadcast %c0_i32 : i32 to vector<1x128xi32>
    %142 = arith.cmpi eq, %140, %141 : vector<1x128xi32>
    %143 = arith.extui %142 : vector<1x128xi1> to vector<1x128xi32>
    %144 = arith.sitofp %143 : vector<1x128xi32> to vector<1x128xf32>
    %145 = vector.broadcast %144 : vector<1x128xf32> to vector<32x128xf32>
    %146 = arith.mulf %139, %145 : vector<32x128xf32>
    %cst_104 = arith.constant dense<0.000000e+00> : vector<32xf32>
    %147 = vector.multi_reduction <add>, %146, %cst_104 [1] : vector<32x128xf32> to vector<32xf32>
    %148 = vector.shape_cast %147 : vector<32xf32> to vector<32x1xf32>
    %c0_105 = arith.constant 0 : index
    %c0_106 = arith.constant 0 : index
    %c0_107 = arith.constant 0 : index
    %149 = vector.load %arg5[%c0_105, %c0_106, %c0_107] : memref<10x32x128xf32, #tpu.memory_space<vmem>>, vector<1x32x128xf32>
    %150 = vector.shape_cast %149 : vector<1x32x128xf32> to vector<32x128xf32>
    %151 = vector.broadcast %148 : vector<32x1xf32> to vector<32x128xf32>
    %152 = arith.mulf %151, %150 : vector<32x128xf32>
    %c1_i32 = arith.constant 1 : i32
    %153 = vector.broadcast %c1_i32 : i32 to vector<1x128xi32>
    %154 = arith.cmpi eq, %140, %153 : vector<1x128xi32>
    %155 = arith.extui %154 : vector<1x128xi1> to vector<1x128xi32>
    %156 = arith.sitofp %155 : vector<1x128xi32> to vector<1x128xf32>
    %157 = vector.broadcast %156 : vector<1x128xf32> to vector<32x128xf32>
    %158 = arith.mulf %139, %157 : vector<32x128xf32>
    %cst_108 = arith.constant dense<0.000000e+00> : vector<32xf32>
    %159 = vector.multi_reduction <add>, %158, %cst_108 [1] : vector<32x128xf32> to vector<32xf32>
    %160 = vector.shape_cast %159 : vector<32xf32> to vector<32x1xf32>
    %c1_109 = arith.constant 1 : index
    %c0_110 = arith.constant 0 : index
    %c0_111 = arith.constant 0 : index
    %161 = vector.load %arg5[%c1_109, %c0_110, %c0_111] : memref<10x32x128xf32, #tpu.memory_space<vmem>>, vector<1x32x128xf32>
    %162 = vector.shape_cast %161 : vector<1x32x128xf32> to vector<32x128xf32>
    %163 = vector.broadcast %160 : vector<32x1xf32> to vector<32x128xf32>
    %164 = arith.mulf %163, %162 : vector<32x128xf32>
    %c2_i32 = arith.constant 2 : i32
    %165 = vector.broadcast %c2_i32 : i32 to vector<1x128xi32>
    %166 = arith.cmpi eq, %140, %165 : vector<1x128xi32>
    %167 = arith.extui %166 : vector<1x128xi1> to vector<1x128xi32>
    %168 = arith.sitofp %167 : vector<1x128xi32> to vector<1x128xf32>
    %169 = vector.broadcast %168 : vector<1x128xf32> to vector<32x128xf32>
    %170 = arith.mulf %139, %169 : vector<32x128xf32>
    %cst_112 = arith.constant dense<0.000000e+00> : vector<32xf32>
    %171 = vector.multi_reduction <add>, %170, %cst_112 [1] : vector<32x128xf32> to vector<32xf32>
    %172 = vector.shape_cast %171 : vector<32xf32> to vector<32x1xf32>
    %c2_113 = arith.constant 2 : index
    %c0_114 = arith.constant 0 : index
    %c0_115 = arith.constant 0 : index
    %173 = vector.load %arg5[%c2_113, %c0_114, %c0_115] : memref<10x32x128xf32, #tpu.memory_space<vmem>>, vector<1x32x128xf32>
    %174 = vector.shape_cast %173 : vector<1x32x128xf32> to vector<32x128xf32>
    %175 = vector.broadcast %172 : vector<32x1xf32> to vector<32x128xf32>
    %176 = arith.mulf %175, %174 : vector<32x128xf32>
    %177 = arith.addf %152, %176 : vector<32x128xf32>
    %c3_i32 = arith.constant 3 : i32
    %178 = vector.broadcast %c3_i32 : i32 to vector<1x128xi32>
    %179 = arith.cmpi eq, %140, %178 : vector<1x128xi32>
    %180 = arith.extui %179 : vector<1x128xi1> to vector<1x128xi32>
    %181 = arith.sitofp %180 : vector<1x128xi32> to vector<1x128xf32>
    %182 = vector.broadcast %181 : vector<1x128xf32> to vector<32x128xf32>
    %183 = arith.mulf %139, %182 : vector<32x128xf32>
    %cst_116 = arith.constant dense<0.000000e+00> : vector<32xf32>
    %184 = vector.multi_reduction <add>, %183, %cst_116 [1] : vector<32x128xf32> to vector<32xf32>
    %185 = vector.shape_cast %184 : vector<32xf32> to vector<32x1xf32>
    %c3_117 = arith.constant 3 : index
    %c0_118 = arith.constant 0 : index
    %c0_119 = arith.constant 0 : index
    %186 = vector.load %arg5[%c3_117, %c0_118, %c0_119] : memref<10x32x128xf32, #tpu.memory_space<vmem>>, vector<1x32x128xf32>
    %187 = vector.shape_cast %186 : vector<1x32x128xf32> to vector<32x128xf32>
    %188 = vector.broadcast %185 : vector<32x1xf32> to vector<32x128xf32>
    %189 = arith.mulf %188, %187 : vector<32x128xf32>
    %190 = arith.addf %164, %189 : vector<32x128xf32>
    %c4_i32 = arith.constant 4 : i32
    %191 = vector.broadcast %c4_i32 : i32 to vector<1x128xi32>
    %192 = arith.cmpi eq, %140, %191 : vector<1x128xi32>
    %193 = arith.extui %192 : vector<1x128xi1> to vector<1x128xi32>
    %194 = arith.sitofp %193 : vector<1x128xi32> to vector<1x128xf32>
    %195 = vector.broadcast %194 : vector<1x128xf32> to vector<32x128xf32>
    %196 = arith.mulf %139, %195 : vector<32x128xf32>
    %cst_120 = arith.constant dense<0.000000e+00> : vector<32xf32>
    %197 = vector.multi_reduction <add>, %196, %cst_120 [1] : vector<32x128xf32> to vector<32xf32>
    %198 = vector.shape_cast %197 : vector<32xf32> to vector<32x1xf32>
    %c4_121 = arith.constant 4 : index
    %c0_122 = arith.constant 0 : index
    %c0_123 = arith.constant 0 : index
    %199 = vector.load %arg5[%c4_121, %c0_122, %c0_123] : memref<10x32x128xf32, #tpu.memory_space<vmem>>, vector<1x32x128xf32>
    %200 = vector.shape_cast %199 : vector<1x32x128xf32> to vector<32x128xf32>
    %201 = vector.broadcast %198 : vector<32x1xf32> to vector<32x128xf32>
    %202 = arith.mulf %201, %200 : vector<32x128xf32>
    %203 = arith.addf %177, %202 : vector<32x128xf32>
    %c5_i32 = arith.constant 5 : i32
    %204 = vector.broadcast %c5_i32 : i32 to vector<1x128xi32>
    %205 = arith.cmpi eq, %140, %204 : vector<1x128xi32>
    %206 = arith.extui %205 : vector<1x128xi1> to vector<1x128xi32>
    %207 = arith.sitofp %206 : vector<1x128xi32> to vector<1x128xf32>
    %208 = vector.broadcast %207 : vector<1x128xf32> to vector<32x128xf32>
    %209 = arith.mulf %139, %208 : vector<32x128xf32>
    %cst_124 = arith.constant dense<0.000000e+00> : vector<32xf32>
    %210 = vector.multi_reduction <add>, %209, %cst_124 [1] : vector<32x128xf32> to vector<32xf32>
    %211 = vector.shape_cast %210 : vector<32xf32> to vector<32x1xf32>
    %c5_125 = arith.constant 5 : index
    %c0_126 = arith.constant 0 : index
    %c0_127 = arith.constant 0 : index
    %212 = vector.load %arg5[%c5_125, %c0_126, %c0_127] : memref<10x32x128xf32, #tpu.memory_space<vmem>>, vector<1x32x128xf32>
    %213 = vector.shape_cast %212 : vector<1x32x128xf32> to vector<32x128xf32>
    %214 = vector.broadcast %211 : vector<32x1xf32> to vector<32x128xf32>
    %215 = arith.mulf %214, %213 : vector<32x128xf32>
    %216 = arith.addf %190, %215 : vector<32x128xf32>
    %c6_i32 = arith.constant 6 : i32
    %217 = vector.broadcast %c6_i32 : i32 to vector<1x128xi32>
    %218 = arith.cmpi eq, %140, %217 : vector<1x128xi32>
    %219 = arith.extui %218 : vector<1x128xi1> to vector<1x128xi32>
    %220 = arith.sitofp %219 : vector<1x128xi32> to vector<1x128xf32>
    %221 = vector.broadcast %220 : vector<1x128xf32> to vector<32x128xf32>
    %222 = arith.mulf %139, %221 : vector<32x128xf32>
    %cst_128 = arith.constant dense<0.000000e+00> : vector<32xf32>
    %223 = vector.multi_reduction <add>, %222, %cst_128 [1] : vector<32x128xf32> to vector<32xf32>
    %224 = vector.shape_cast %223 : vector<32xf32> to vector<32x1xf32>
    %c6_129 = arith.constant 6 : index
    %c0_130 = arith.constant 0 : index
    %c0_131 = arith.constant 0 : index
    %225 = vector.load %arg5[%c6_129, %c0_130, %c0_131] : memref<10x32x128xf32, #tpu.memory_space<vmem>>, vector<1x32x128xf32>
    %226 = vector.shape_cast %225 : vector<1x32x128xf32> to vector<32x128xf32>
    %227 = vector.broadcast %224 : vector<32x1xf32> to vector<32x128xf32>
    %228 = arith.mulf %227, %226 : vector<32x128xf32>
    %229 = arith.addf %203, %228 : vector<32x128xf32>
    %c7_i32 = arith.constant 7 : i32
    %230 = vector.broadcast %c7_i32 : i32 to vector<1x128xi32>
    %231 = arith.cmpi eq, %140, %230 : vector<1x128xi32>
    %232 = arith.extui %231 : vector<1x128xi1> to vector<1x128xi32>
    %233 = arith.sitofp %232 : vector<1x128xi32> to vector<1x128xf32>
    %234 = vector.broadcast %233 : vector<1x128xf32> to vector<32x128xf32>
    %235 = arith.mulf %139, %234 : vector<32x128xf32>
    %cst_132 = arith.constant dense<0.000000e+00> : vector<32xf32>
    %236 = vector.multi_reduction <add>, %235, %cst_132 [1] : vector<32x128xf32> to vector<32xf32>
    %237 = vector.shape_cast %236 : vector<32xf32> to vector<32x1xf32>
    %c7_133 = arith.constant 7 : index
    %c0_134 = arith.constant 0 : index
    %c0_135 = arith.constant 0 : index
    %238 = vector.load %arg5[%c7_133, %c0_134, %c0_135] : memref<10x32x128xf32, #tpu.memory_space<vmem>>, vector<1x32x128xf32>
    %239 = vector.shape_cast %238 : vector<1x32x128xf32> to vector<32x128xf32>
    %240 = vector.broadcast %237 : vector<32x1xf32> to vector<32x128xf32>
    %241 = arith.mulf %240, %239 : vector<32x128xf32>
    %242 = arith.addf %216, %241 : vector<32x128xf32>
    %c8_i32 = arith.constant 8 : i32
    %243 = vector.broadcast %c8_i32 : i32 to vector<1x128xi32>
    %244 = arith.cmpi eq, %140, %243 : vector<1x128xi32>
    %245 = arith.extui %244 : vector<1x128xi1> to vector<1x128xi32>
    %246 = arith.sitofp %245 : vector<1x128xi32> to vector<1x128xf32>
    %247 = vector.broadcast %246 : vector<1x128xf32> to vector<32x128xf32>
    %248 = arith.mulf %139, %247 : vector<32x128xf32>
    %cst_136 = arith.constant dense<0.000000e+00> : vector<32xf32>
    %249 = vector.multi_reduction <add>, %248, %cst_136 [1] : vector<32x128xf32> to vector<32xf32>
    %250 = vector.shape_cast %249 : vector<32xf32> to vector<32x1xf32>
    %c8_137 = arith.constant 8 : index
    %c0_138 = arith.constant 0 : index
    %c0_139 = arith.constant 0 : index
    %251 = vector.load %arg5[%c8_137, %c0_138, %c0_139] : memref<10x32x128xf32, #tpu.memory_space<vmem>>, vector<1x32x128xf32>
    %252 = vector.shape_cast %251 : vector<1x32x128xf32> to vector<32x128xf32>
    %253 = vector.broadcast %250 : vector<32x1xf32> to vector<32x128xf32>
    %254 = arith.mulf %253, %252 : vector<32x128xf32>
    %255 = arith.addf %229, %254 : vector<32x128xf32>
    %c9_i32 = arith.constant 9 : i32
    %256 = vector.broadcast %c9_i32 : i32 to vector<1x128xi32>
    %257 = arith.cmpi eq, %140, %256 : vector<1x128xi32>
    %258 = arith.extui %257 : vector<1x128xi1> to vector<1x128xi32>
    %259 = arith.sitofp %258 : vector<1x128xi32> to vector<1x128xf32>
    %260 = vector.broadcast %259 : vector<1x128xf32> to vector<32x128xf32>
    %261 = arith.mulf %139, %260 : vector<32x128xf32>
    %cst_140 = arith.constant dense<0.000000e+00> : vector<32xf32>
    %262 = vector.multi_reduction <add>, %261, %cst_140 [1] : vector<32x128xf32> to vector<32xf32>
    %263 = vector.shape_cast %262 : vector<32xf32> to vector<32x1xf32>
    %c9 = arith.constant 9 : index
    %c0_141 = arith.constant 0 : index
    %c0_142 = arith.constant 0 : index
    %264 = vector.load %arg5[%c9, %c0_141, %c0_142] : memref<10x32x128xf32, #tpu.memory_space<vmem>>, vector<1x32x128xf32>
    %265 = vector.shape_cast %264 : vector<1x32x128xf32> to vector<32x128xf32>
    %266 = vector.broadcast %263 : vector<32x1xf32> to vector<32x128xf32>
    %267 = arith.mulf %266, %265 : vector<32x128xf32>
    %268 = arith.addf %242, %267 : vector<32x128xf32>
    %269 = arith.addf %255, %268 : vector<32x128xf32>
    %cst_143 = arith.constant dense<0.000000e+00> : vector<128xf32>
    %270 = vector.multi_reduction <add>, %269, %cst_143 [0] : vector<32x128xf32> to vector<128xf32>
    %271 = vector.shape_cast %270 : vector<128xf32> to vector<1x128xf32>
    %272 = arith.addf %271, %6 : vector<1x128xf32>
    %cst_144 = arith.constant 0.000000e+00 : f32
    %273 = vector.broadcast %cst_144 : f32 to vector<1x128xf32>
    %274 = arith.subf %273, %272 : vector<1x128xf32>
    %275 = math.exp %274 : vector<1x128xf32>
    %cst_145 = arith.constant 1.000000e+00 : f32
    %276 = vector.broadcast %cst_145 : f32 to vector<1x128xf32>
    %277 = arith.addf %276, %275 : vector<1x128xf32>
    %cst_146 = arith.constant 1.000000e+00 : f32
    %278 = vector.broadcast %cst_146 : f32 to vector<1x128xf32>
    %279 = arith.divf %278, %277 : vector<1x128xf32>
    %c0_147 = arith.constant 0 : index
    %c0_148 = arith.constant 0 : index
    %c0_149 = arith.constant 0 : index
    %280 = vector.load %arg7[%c0_147, %c0_148, %c0_149] : memref<1x1x128xf32, #tpu.memory_space<vmem>>, vector<1x1x128xf32>
    %281 = vector.shape_cast %280 : vector<1x1x128xf32> to vector<1x128xf32>
    %282 = vector.shape_cast %279 : vector<1x128xf32> to vector<1x1x128xf32>
    tpu.vector_store %arg7[%c0_147, %c0_148, %c0_149], %282 {strides = array<i32>} : memref<1x1x128xf32, #tpu.memory_space<vmem>>, vector<1x1x128xf32>,
    return
  }
  func.func @transform_0(%arg0: i32) -> (i32, i32, i32) {
    %c0_i32 = arith.constant 0 : i32
    %c0_i32_0 = arith.constant 0 : i32
    %c0_i32_1 = arith.constant 0 : i32
    return %arg0, %c0_i32, %c0_i32_0 : i32, i32, i32
  }
  func.func @transform_1(%arg0: i32) -> (i32, i32) {
    %c0_i32 = arith.constant 0 : i32
    %c0_i32_0 = arith.constant 0 : i32
    %c0_i32_1 = arith.constant 0 : i32
    return %c0_i32, %c0_i32_0 : i32, i32
  }
  func.func @transform_2(%arg0: i32) -> (i32, i32, i32) {
    %c0_i32 = arith.constant 0 : i32
    %c0_i32_0 = arith.constant 0 : i32
    %c0_i32_1 = arith.constant 0 : i32
    %c0_i32_2 = arith.constant 0 : i32
    return %c0_i32, %c0_i32_0, %c0_i32_1 : i32, i32, i32
  }
  func.func @transform_3(%arg0: i32) -> (i32, i32, i32) {
    %c0_i32 = arith.constant 0 : i32
    %c0_i32_0 = arith.constant 0 : i32
    %c0_i32_1 = arith.constant 0 : i32
    %c0_i32_2 = arith.constant 0 : i32
    return %c0_i32, %c0_i32_0, %c0_i32_1 : i32, i32, i32
  }
  func.func @transform_4(%arg0: i32) -> (i32, i32, i32) {
    %c0_i32 = arith.constant 0 : i32
    %c0_i32_0 = arith.constant 0 : i32
    %c0_i32_1 = arith.constant 0 : i32
    %c0_i32_2 = arith.constant 0 : i32
    return %c0_i32, %c0_i32_0, %c0_i32_1 : i32, i32, i32
  }
  func.func @transform_5(%arg0: i32) -> (i32, i32) {
    %c0_i32 = arith.constant 0 : i32
    %c0_i32_0 = arith.constant 0 : i32
    %c0_i32_1 = arith.constant 0 : i32
    return %c0_i32, %c0_i32_0 : i32, i32
  }
  func.func @transform_6(%arg0: i32) -> (i32, i32, i32) {
    %c0_i32 = arith.constant 0 : i32
    %c0_i32_0 = arith.constant 0 : i32
    %c0_i32_1 = arith.constant 0 : i32
    return %arg0, %c0_i32, %c0_i32_0 : i32, i32, i32
  }
}

</mosaic_0001>

<llo_original>
// kernel: classifier_forward.1
$region0: #{classifier_forward.1}
  #allocation0 [shape = 'u32[]', space=smem, size = 0x4, offset = 0x4, fixed_abs, tag = 'smem constant byte address 0x4 - core index']
  #allocation1 [shape = 'u32[144,128]{1,0:T(1,128)}', space=vmem, size = 0x12000, scoped, tag = 'internal scratch']
  #allocation2 [shape = 'f32[144,128]{1,0:T(8,128)}', space=vmem, size = 0x12000, scoped, tag = 'scratch operand']
  #allocation3 [shape = 'f32[32,128]{1,0:T(8,128)}', space=vmem, size = 0x4000, scoped, tag = 'scratch operand']
  %s0 = inlined_call_operand.vmem [shape: f32[8,144,32], index: 0, kind: input, shape index: {}]
  %s1 = inlined_call_operand.vmem [shape: f32[32,128], index: 1, kind: input, shape index: {}]
  %s2 = inlined_call_operand.vmem [shape: f32[9,32,144], index: 2, kind: input, shape index: {}]
  %s3 = inlined_call_operand.vmem [shape: f32[9,16,128], index: 3, kind: input, shape index: {}]
  %s4 = inlined_call_operand.vmem [shape: f32[10,32,128], index: 4, kind: input, shape index: {}]
  %s5 = inlined_call_operand.vmem [shape: f32[8,128], index: 5, kind: input, shape index: {}]
  %s6 = inlined_call_operand.hbm [shape: f32[8,1,128], index: 6, kind: output, shape index: {}]
  %s7 = sld [smem:[#allocation0]]
  $region57: #{classifier_forward.1} parent=0
    _
  %s9 = ssub.s32 1, %s7
  %s10 = scalar_select 0, %s9, %s7
  $region1: #{classifier_forward.1} parent=0
    #allocation4 [shape = 'u8[1024]{0}', space=vmem, size = 0x400, scoped, tag = 'output window, operand 0']
    #allocation5 [shape = 's32[2]{0}', space=sflag, size = 0x8, scoped, tag = 'scoped memory for classifier_forward.1']
    %11 = vsyncpa [#allocation5], 0
    %s12 = scalar_lea.sflag [#allocation5], 1
    %13 = vsyncpa %s12, 0
    loop: start=0, step=1, limit=10
    $region2: #{classifier_forward.1} parent=1 // loop_pre_header
      _
    $region3: #{classifier_forward.1} parent=1 // loop_header
      %s15 = sphi 0, %s19
      %p16 = scmp.ge.s32.totalorder %s15, 10
      %s25 = sphi 0, %s27
      %s28 = sphi 0, %s25
      %s29 = sphi 0, %s28
      %s45 = sphi 0, %s29
      %s49 = sphi 0, %s49
      %s51 = sphi 0, %s49
      %s52 = sphi 0, %s51
      %s66 = sphi 0, %s52
      %s70 = sphi 0, %s70
      %s72 = sphi 0, %s70
      %s73 = sphi 0, %s72
      %s87 = sphi 0, %s73
      %s91 = sphi 0, %s91
      %s93 = sphi 0, %s91
      %s94 = sphi 0, %s93
      %s108 = sphi 0, %s94
      %s112 = sphi 0, %s112
      %s114 = sphi 0, %s112
      %s115 = sphi 0, %s114
      %s129 = sphi 0, %s115
      %s133 = sphi 0, %s133
      %s135 = sphi 0, %s133
      %s136 = sphi 0, %s135
      %s150 = sphi 0, %s136
      %s156 = sphi 0, %s158
      %s159 = sphi 0, %s156
      %s160 = sphi 0, %s159
      %s176 = sphi 0, %s160
    $region4: #{classifier_forward.1} parent=1 // loop_header_branch
      %18 = sbr.rel (%p16) target = $region8
    $region5: #{classifier_forward.1} parent=1 // loop_body
      %s20 = ssub.s32 %s15, 1
      %s21 = ssub.s32 %s15, 2
      %s22 = sadd.s32 %s15, 1
      %s23 = ssub.s32 %s15, %s22
      %p24 = scmp.eq.s32.totalorder %s23, 0
      %s26 = sadd.s32 %s25, 1
      %s27 = scalar_select %p24, %s25, %s26
      %p30 = pneg %p24
      %p31 = scmp.eq.s32.totalorder %s15, 7
      %p32 = por %p30, %p31
      %p33 = scmp.ne.s32.totalorder %s25, %s28
      %p34 = scmp.eq.s32.totalorder %s15, 0
      %p35 = por %p33, %p34
      %p36 = scmp.ne.s32.totalorder %s25, %s28
      %p37 = scmp.eq.s32.totalorder %s20, 7
      %p38 = por %p36, %p37
      %p39 = scmp.ne.s32.totalorder %s28, %s29
      %p40 = scmp.eq.s32.totalorder %s20, 0
      %p41 = por %p39, %p40
      %p42 = scmp.ne.s32.totalorder %s28, %s29
      %p43 = scmp.eq.s32.totalorder %s21, 7
      %p44 = por %p42, %p43
      %p46 = scmp.ne.s32.totalorder %s29, %s45
      %p47 = scmp.eq.s32.totalorder %s21, 0
      %p48 = por %p46, %p47
      %s50 = sadd.s32 %s49, 1
      %p53 = scmp.eq.s32.totalorder %s15, 7
      %p54 = scmp.ne.s32.totalorder %s49, %s51
      %p55 = scmp.eq.s32.totalorder %s15, 0
      %p56 = por %p54, %p55
      %p57 = scmp.ne.s32.totalorder %s49, %s51
      %p58 = scmp.eq.s32.totalorder %s20, 7
      %p59 = por %p57, %p58
      %p60 = scmp.ne.s32.totalorder %s51, %s52
      %p61 = scmp.eq.s32.totalorder %s20, 0
      %p62 = por %p60, %p61
      %p63 = scmp.ne.s32.totalorder %s51, %s52
      %p64 = scmp.eq.s32.totalorder %s21, 7
      %p65 = por %p63, %p64
      %p67 = scmp.ne.s32.totalorder %s52, %s66
      %p68 = scmp.eq.s32.totalorder %s21, 0
      %p69 = por %p67, %p68
      %s71 = sadd.s32 %s70, 1
      %p74 = scmp.eq.s32.totalorder %s15, 7
      %p75 = scmp.ne.s32.totalorder %s70, %s72
      %p76 = scmp.eq.s32.totalorder %s15, 0
      %p77 = por %p75, %p76
      %p78 = scmp.ne.s32.totalorder %s70, %s72
      %p79 = scmp.eq.s32.totalorder %s20, 7
      %p80 = por %p78, %p79
      %p81 = scmp.ne.s32.totalorder %s72, %s73
      %p82 = scmp.eq.s32.totalorder %s20, 0
      %p83 = por %p81, %p82
      %p84 = scmp.ne.s32.totalorder %s72, %s73
      %p85 = scmp.eq.s32.totalorder %s21, 7
      %p86 = por %p84, %p85
      %p88 = scmp.ne.s32.totalorder %s73, %s87
      %p89 = scmp.eq.s32.totalorder %s21, 0
      %p90 = por %p88, %p89
      %s92 = sadd.s32 %s91, 1
      %p95 = scmp.eq.s32.totalorder %s15, 7
      %p96 = scmp.ne.s32.totalorder %s91, %s93
      %p97 = scmp.eq.s32.totalorder %s15, 0
      %p98 = por %p96, %p97
      %p99 = scmp.ne.s32.totalorder %s91, %s93
      %p100 = scmp.eq.s32.totalorder %s20, 7
      %p101 = por %p99, %p100
      %p102 = scmp.ne.s32.totalorder %s93, %s94
      %p103 = scmp.eq.s32.totalorder %s20, 0
      %p104 = por %p102, %p103
      %p105 = scmp.ne.s32.totalorder %s93, %s94
      %p106 = scmp.eq.s32.totalorder %s21, 7
      %p107 = por %p105, %p106
      %p109 = scmp.ne.s32.totalorder %s94, %s108
      %p110 = scmp.eq.s32.totalorder %s21, 0
      %p111 = por %p109, %p110
      %s113 = sadd.s32 %s112, 1
      %p116 = scmp.eq.s32.totalorder %s15, 7
      %p117 = scmp.ne.s32.totalorder %s112, %s114
      %p118 = scmp.eq.s32.totalorder %s15, 0
      %p119 = por %p117, %p118
      %p120 = scmp.ne.s32.totalorder %s112, %s114
      %p121 = scmp.eq.s32.totalorder %s20, 7
      %p122 = por %p120, %p121
      %p123 = scmp.ne.s32.totalorder %s114, %s115
      %p124 = scmp.eq.s32.totalorder %s20, 0
      %p125 = por %p123, %p124
      %p126 = scmp.ne.s32.totalorder %s114, %s115
      %p127 = scmp.eq.s32.totalorder %s21, 7
      %p128 = por %p126, %p127
      %p130 = scmp.ne.s32.totalorder %s115, %s129
      %p131 = scmp.eq.s32.totalorder %s21, 0
      %p132 = por %p130, %p131
      %s134 = sadd.s32 %s133, 1
      %p137 = scmp.eq.s32.totalorder %s15, 7
      %p138 = scmp.ne.s32.totalorder %s133, %s135
      %p139 = scmp.eq.s32.totalorder %s15, 0
      %p140 = por %p138, %p139
      %p141 = scmp.ne.s32.totalorder %s133, %s135
      %p142 = scmp.eq.s32.totalorder %s20, 7
      %p143 = por %p141, %p142
      %p144 = scmp.ne.s32.totalorder %s135, %s136
      %p145 = scmp.eq.s32.totalorder %s20, 0
      %p146 = por %p144, %p145
      %p147 = scmp.ne.s32.totalorder %s135, %s136
      %p148 = scmp.eq.s32.totalorder %s21, 7
      %p149 = por %p147, %p148
      %p151 = scmp.ne.s32.totalorder %s136, %s150
      %p152 = scmp.eq.s32.totalorder %s21, 0
      %p153 = por %p151, %p152
      %s154 = ssub.s32 %s15, %s22
      %p155 = scmp.eq.s32.totalorder %s154, 0
      %s157 = sadd.s32 %s156, 1
      %s158 = scalar_select %p155, %s156, %s157
      %p161 = pneg %p155
      %p162 = scmp.eq.s32.totalorder %s15, 7
      %p163 = por %p161, %p162
      %p164 = scmp.ne.s32.totalorder %s156, %s159
      %p165 = scmp.eq.s32.totalorder %s15, 0
      %p166 = por %p164, %p165
      %p167 = scmp.ne.s32.totalorder %s156, %s159
      %p168 = scmp.eq.s32.totalorder %s20, 7
      %p169 = por %p167, %p168
      %p170 = scmp.ne.s32.totalorder %s159, %s160
      %p171 = scmp.eq.s32.totalorder %s20, 0
      %p172 = por %p170, %p171
      %p173 = scmp.ne.s32.totalorder %s159, %s160
      %p174 = scmp.eq.s32.totalorder %s21, 7
      %p175 = por %p173, %p174
      %p177 = scmp.ne.s32.totalorder %s160, %s176
      %p178 = scmp.eq.s32.totalorder %s21, 0
      %p179 = por %p177, %p178
      %p180 = scmp.le.s32.totalorder 1, %s15
      %p181 = scmp.lt.s32.totalorder %s15, 9
      %p182 = pnand %p180, %p181
      %p183 = pneg %p182
      // Predicated region
      $region9: #{classifier_forward.1} parent=5 // pred_check
        _
      $region10: #{classifier_forward.1} parent=5 // pred_check_branch
        %185 = sbr.rel (%p182) target = $region12
      $region11: #{classifier_forward.1} parent=5 // pred_region
        %s186 = ssub.s32 %s15, 1
        // Predicated region
        $region13: #{classifier_forward.1} parent=11 // pred_check
          %p187 = pneg %p62
        $region14: #{classifier_forward.1} parent=11 // pred_check_branch
          %189 = sbr.rel (%p187) target = $region16
        $region15: #{classifier_forward.1} parent=11 // pred_region
          _
        $region16: #{classifier_forward.1} parent=11 // pred_fallthru
          _
        // Predicated region
        $region17: #{classifier_forward.1} parent=11 // pred_check
          %p190 = pneg %p83
        $region18: #{classifier_forward.1} parent=11 // pred_check_branch
          %192 = sbr.rel (%p190) target = $region20
        $region19: #{classifier_forward.1} parent=11 // pred_region
          _
        $region20: #{classifier_forward.1} parent=11 // pred_fallthru
          _
        // Predicated region
        $region21: #{classifier_forward.1} parent=11 // pred_check
          %p193 = pneg %p104
        $region22: #{classifier_forward.1} parent=11 // pred_check_branch
          %195 = sbr.rel (%p193) target = $region24
        $region23: #{classifier_forward.1} parent=11 // pred_region
          _
        $region24: #{classifier_forward.1} parent=11 // pred_fallthru
          _
        // Predicated region
        $region25: #{classifier_forward.1} parent=11 // pred_check
          %p196 = pneg %p125
        $region26: #{classifier_forward.1} parent=11 // pred_check_branch
          %198 = sbr.rel (%p196) target = $region28
        $region27: #{classifier_forward.1} parent=11 // pred_region
          _
        $region28: #{classifier_forward.1} parent=11 // pred_fallthru
          _
        // Predicated region
        $region29: #{classifier_forward.1} parent=11 // pred_check
          %p199 = pneg %p146
        $region30: #{classifier_forward.1} parent=11 // pred_check_branch
          %201 = sbr.rel (%p199) target = $region32
        $region31: #{classifier_forward.1} parent=11 // pred_region
          _
        $region32: #{classifier_forward.1} parent=11 // pred_fallthru
          _
      $region12: #{classifier_forward.1} parent=5 // pred_fallthru
        _
      %p202 = scmp.lt.s32.totalorder %s15, 8
      // Predicated region
      $region33: #{classifier_forward.1} parent=5 // pred_check
        %p203 = pneg %p202
      $region34: #{classifier_forward.1} parent=5 // pred_check_branch
        %205 = sbr.rel (%p203) target = $region36
      $region35: #{classifier_forward.1} parent=5 // pred_region
        // Predicated region
        $region37: #{classifier_forward.1} parent=35 // pred_check
          %p206 = pneg %p35
        $region38: #{classifier_forward.1} parent=35 // pred_check_branch
          %208 = sbr.rel (%p206) target = $region40
        $region39: #{classifier_forward.1} parent=35 // pred_region
          %p209 = scmp.lt.s32.totalorder %s15, 7
          %s210 = scalar_select %p209, %s15, 7
          %s211 = smul.addr %s210, 18
          %s212 = smul.addr %s211, 8
          %s213 = scalar_lea.vmem %s0, %s212
        $region40: #{classifier_forward.1} parent=35 // pred_fallthru
          _
      $region36: #{classifier_forward.1} parent=5 // pred_fallthru
        _
      %p214 = scmp.le.s32.totalorder 1, %s15
      %p215 = scmp.lt.s32.totalorder %s15, 9
      %p216 = pnand %p214, %p215
      %p217 = pneg %p216
      // Predicated region
      $region41: #{classifier_forward.1} parent=5 // pred_check
        _
      $region42: #{classifier_forward.1} parent=5 // pred_check_branch
        %219 = sbr.rel (%p216) target = $region44
      $region43: #{classifier_forward.1} parent=5 // pred_region
        %s220 = ssub.s32 %s15, 1
        %p221 = scmp.lt.s32.totalorder %s20, 7
        %s222 = scalar_select %p221, %s20, 7
        %s223 = smul.addr %s222, 18
        %s224 = smul.addr %s223, 8
        %s225 = scalar_lea.vmem %s0, %s224
        %p226 = pneg %p41
        %p227 = pneg %p38
        %p228 = pneg %p62
        %p229 = pneg %p59
        %p230 = pneg %p83
        %p231 = pneg %p80
        %p232 = pneg %p104
        %p233 = pneg %p101
        %p234 = pneg %p125
        %p235 = pneg %p122
        %p236 = pneg %p146
        %p237 = pneg %p143
        %p238 = pneg %p172
        %p239 = pneg %p169
        %s240 = sand.u32 %s159, 1
        %s241 = scalar_lea.sflag [#allocation5], %s240
        %s242 = sand.u32 %s159, 1
        %s243 = scalar_lea.vmem [#allocation4], %s242
        %p244 = scmp.lt.s32.totalorder %s20, 7
        %s245 = scalar_select %p244, %s20, 7
        %s246 = smul.addr %s245, 18
        %s247 = smul.addr %s246, 8
        %s248 = scalar_lea.vmem %s0, %s247
        %v249 = vld [vmem:[%s5] sm:$0x1]
        %v250 = vld [vmem:[%s5 + $0x1] sm:$0x1]
        %v251 = vld [vmem:[%s5 + $0x2] sm:$0x1]
        %v252 = vld [vmem:[%s5 + $0x3] sm:$0x1]
        %v253 = vld [vmem:[%s5 + $0x4] sm:$0x1]
        %v254 = vld [vmem:[%s5 + $0x5] sm:$0x1]
        %v255 = vld [vmem:[%s5 + $0x6] sm:$0x1]
        %v256 = vld [vmem:[%s248] sm:$0xff]
        %v257 = vld [vmem:[%s248 + $0x8] sm:$0xff]
        %v258 = vld [vmem:[%s248 + $0x10] sm:$0xff]
        %v259 = vld [vmem:[%s248 + $0x18] sm:$0xff]
        %v260 = vld [vmem:[%s248 + $0x20] sm:$0xff]
        %v261 = vld [vmem:[%s248 + $0x28] sm:$0xff]
        %v262 = vld [vmem:[%s248 + $0x30] sm:$0xff]
        %v263 = vld [vmem:[%s248 + $0x38] sm:$0xff]
        %v264 = vld [vmem:[%s248 + $0x40] sm:$0xff]
        %v265 = vld [vmem:[%s248 + $0x48] sm:$0xff]
        %v266 = vld [vmem:[%s248 + $0x50] sm:$0xff]
        %v267 = vld [vmem:[%s248 + $0x58] sm:$0xff]
        %v268 = vld [vmem:[%s248 + $0x60] sm:$0xff]
        %v269 = vld [vmem:[%s248 + $0x68] sm:$0xff]
        %v270 = vld [vmem:[%s248 + $0x70] sm:$0xff]
        %v271 = vld [vmem:[%s248 + $0x78] sm:$0xff]
        %v272 = vld [vmem:[%s248 + $0x80] sm:$0xff]
        %v273 = vld [vmem:[%s248 + $0x88] sm:$0xff]
        %v274 = vld [vmem:[%s1] sm:$0xff]
        %v275 = vld [vmem:[%s1 + $0x8] sm:$0xff]
        %v276 = vld [vmem:[%s1 + $0x10] sm:$0xff]
        %v277 = vld [vmem:[%s1 + $0x18] sm:$0xff]
        %v278 = vlaneseq
        %v279 = vshrl.u32 %v278, 7
        %v280 = vsub.s32 0, %v279
        %v281 = vrot.slane %v249, %v280
        %vm282 = vcmask 261120
        %v284 = vsel %vm282, %v256, 0
        %v287 = vsel %vm282, %v257, 0
        %v290 = vsel %vm282, %v258, 0
        %v293 = vsel %vm282, %v259, 0
        %v296 = vsel %vm282, %v260, 0
        %v299 = vsel %vm282, %v261, 0
        %v302 = vsel %vm282, %v262, 0
        %v305 = vsel %vm282, %v263, 0
        %v308 = vsel %vm282, %v264, 0
        %v311 = vsel %vm282, %v265, 0
        %v314 = vsel %vm282, %v266, 0
        %v317 = vsel %vm282, %v267, 0
        %v320 = vsel %vm282, %v268, 0
        %v323 = vsel %vm282, %v269, 0
        %v326 = vsel %vm282, %v270, 0
        %v329 = vsel %vm282, %v271, 0
        %v332 = vsel %vm282, %v272, 0
        %v335 = vsel %vm282, %v273, 0
        %337 = vmatprep.subr.mxu0 0.0
        %338 = vmatpush1.msra.mxu0 0.0
        %339 = vmatprep.subr.mxu0 0.0
        %340 = vmatpush1.msra.mxu0 0.0
        %341 = vmatprep.subr.mxu0 0.0
        %342 = vmatpush1.msra.mxu0 0.0
        %343 = vmatprep.subr.mxu0 0.0
        %344 = vmatpush1.msra.mxu0 0.0
        %345 = vmatprep.subr.mxu0 0.0
        %346 = vmatpush1.msra.mxu0 0.0
        %347 = vmatprep.subr.mxu0 0.0
        %348 = vmatpush1.msra.mxu0 0.0
        %349 = vmatprep.subr.mxu0 0.0
        %350 = vmatpush1.msra.mxu0 0.0
        %351 = vmatprep.subr.mxu0 0.0
        %352 = vmatpush1.msra.mxu0 0.0
        %353 = vmatprep.subr.mxu0 0.0
        %354 = vmatpush1.msra.mxu0 0.0
        %355 = vmatprep.subr.mxu0 0.0
        %356 = vmatpush1.msra.mxu0 0.0
        %357 = vmatprep.subr.mxu0 0.0
        %358 = vmatpush1.msra.mxu0 0.0
        %359 = vmatprep.subr.mxu0 0.0
        %360 = vmatpush1.msra.mxu0 0.0
        %361 = vmatprep.subr.mxu0 0.0
        %362 = vmatpush1.msra.mxu0 %v277
        %363 = vmatprep.subr.mxu0 0.0
        %364 = vmatpush1.msra.mxu0 %v276
        %365 = vmatprep.subr.mxu0 0.0
        %366 = vmatpush1.msra.mxu0 %v275
        %367 = vmatprep.subr.mxu0 0.0
        %368 = vmatpush1.msra.mxu0 %v274
        %369 = vmatprep.subr.mxu0 0.0
        %370 = vmatpush2.msra.mxu0 0.0
        %371 = vmatprep.subr.mxu0 0.0
        %372 = vmatpush2.msra.mxu0 0.0
        %373 = vmatprep.subr.mxu0 0.0
        %374 = vmatpush2.msra.mxu0 0.0
        %375 = vmatprep.subr.mxu0 0.0
        %376 = vmatpush2.msra.mxu0 0.0
        %377 = vmatprep.subr.mxu0 0.0
        %378 = vmatpush2.msra.mxu0 0.0
        %379 = vmatprep.subr.mxu0 0.0
        %380 = vmatpush2.msra.mxu0 0.0
        %381 = vmatprep.subr.mxu0 0.0
        %382 = vmatpush2.msra.mxu0 0.0
        %383 = vmatprep.subr.mxu0 0.0
        %384 = vmatpush2.msra.mxu0 0.0
        %385 = vmatprep.subr.mxu0 0.0
        %386 = vmatpush2.msra.mxu0 0.0
        %387 = vmatprep.subr.mxu0 0.0
        %388 = vmatpush2.msra.mxu0 0.0
        %389 = vmatprep.subr.mxu0 0.0
        %390 = vmatpush2.msra.mxu0 0.0
        %391 = vmatprep.subr.mxu0 0.0
        %392 = vmatpush2.msra.mxu0 0.0
        %393 = vmatprep.subr.mxu0 0.0
        %394 = vmatpush2.msra.mxu0 0.0
        %395 = vmatprep.subr.mxu0 0.0
        %396 = vmatpush2.msra.mxu0 0.0
        %397 = vmatprep.subr.mxu0 0.0
        %398 = vmatpush2.msra.mxu0 0.0
        %399 = vmatprep.subr.mxu0 0.0
        %400 = vmatpush2.msra.mxu0 0.0
        %401 = vmatprep.mubr.f32.mxu0 0.0
        %402 = vmatmul.mubr.f32.gmra.mxu0 %v284
        %v403 = vpop.f32.mrf.mxu0
        %v404 = vadd.f32 %v281, %v403
        %v405 = vpop.f32.mrf.mxu0
        %406 = vmatprep.mubr.f32.mxu0 0.0
        %407 = vmatmul.mubr.f32.gmra.mxu0 %v287
        %v408 = vpop.f32.mrf.mxu0
        %v409 = vadd.f32 %v281, %v408
        %v410 = vpop.f32.mrf.mxu0
        %411 = vmatprep.mubr.f32.mxu0 0.0
        %412 = vmatmul.mubr.f32.gmra.mxu0 %v290
        %v413 = vpop.f32.mrf.mxu0
        %v414 = vadd.f32 %v281, %v413
        %v415 = vpop.f32.mrf.mxu0
        %416 = vmatprep.mubr.f32.mxu0 0.0
        %417 = vmatmul.mubr.f32.gmra.mxu0 %v293
        %v418 = vpop.f32.mrf.mxu0
        %v419 = vadd.f32 %v281, %v418
        %v420 = vpop.f32.mrf.mxu0
        %421 = vmatprep.mubr.f32.mxu0 0.0
        %422 = vmatmul.mubr.f32.gmra.mxu0 %v296
        %v423 = vpop.f32.mrf.mxu0
        %v424 = vadd.f32 %v281, %v423
        %v425 = vpop.f32.mrf.mxu0
        %426 = vmatprep.mubr.f32.mxu0 0.0
        %427 = vmatmul.mubr.f32.gmra.mxu0 %v299
        %v428 = vpop.f32.mrf.mxu0
        %v429 = vadd.f32 %v281, %v428
        %v430 = vpop.f32.mrf.mxu0
        %431 = vmatprep.mubr.f32.mxu0 0.0
        %432 = vmatmul.mubr.f32.gmra.mxu0 %v302
        %v433 = vpop.f32.mrf.mxu0
        %v434 = vadd.f32 %v281, %v433
        %v435 = vpop.f32.mrf.mxu0
        %436 = vmatprep.mubr.f32.mxu0 0.0
        %437 = vmatmul.mubr.f32.gmra.mxu0 %v305
        %v438 = vpop.f32.mrf.mxu0
        %v439 = vadd.f32 %v281, %v438
        %v440 = vpop.f32.mrf.mxu0
        %441 = vmatprep.mubr.f32.mxu0 0.0
        %442 = vmatmul.mubr.f32.gmra.mxu0 %v308
        %v443 = vpop.f32.mrf.mxu0
        %v444 = vadd.f32 %v281, %v443
        %v445 = vpop.f32.mrf.mxu0
        %446 = vmatprep.mubr.f32.mxu0 0.0
        %447 = vmatmul.mubr.f32.gmra.mxu0 %v311
        %v448 = vpop.f32.mrf.mxu0
        %v449 = vadd.f32 %v281, %v448
        %v450 = vpop.f32.mrf.mxu0
        %451 = vmatprep.mubr.f32.mxu0 0.0
        %452 = vmatmul.mubr.f32.gmra.mxu0 %v314
        %v453 = vpop.f32.mrf.mxu0
        %v454 = vadd.f32 %v281, %v453
        %v455 = vpop.f32.mrf.mxu0
        %456 = vmatprep.mubr.f32.mxu0 0.0
        %457 = vmatmul.mubr.f32.gmra.mxu0 %v317
        %v458 = vpop.f32.mrf.mxu0
        %v459 = vadd.f32 %v281, %v458
        %v460 = vpop.f32.mrf.mxu0
        %461 = vmatprep.mubr.f32.mxu0 0.0
        %462 = vmatmul.mubr.f32.gmra.mxu0 %v320
        %v463 = vpop.f32.mrf.mxu0
        %v464 = vadd.f32 %v281, %v463
        %v465 = vpop.f32.mrf.mxu0
        %466 = vmatprep.mubr.f32.mxu0 0.0
        %467 = vmatmul.mubr.f32.gmra.mxu0 %v323
        %v468 = vpop.f32.mrf.mxu0
        %v469 = vadd.f32 %v281, %v468
        %v470 = vpop.f32.mrf.mxu0
        %471 = vmatprep.mubr.f32.mxu0 0.0
        %472 = vmatmul.mubr.f32.gmra.mxu0 %v326
        %v473 = vpop.f32.mrf.mxu0
        %v474 = vadd.f32 %v281, %v473
        %v475 = vpop.f32.mrf.mxu0
        %476 = vmatprep.mubr.f32.mxu0 0.0
        %477 = vmatmul.mubr.f32.gmra.mxu0 %v329
        %v478 = vpop.f32.mrf.mxu0
        %v479 = vadd.f32 %v281, %v478
        %v480 = vpop.f32.mrf.mxu0
        %481 = vmatprep.mubr.f32.mxu0 0.0
        %482 = vmatmul.mubr.f32.gmra.mxu0 %v332
        %v483 = vpop.f32.mrf.mxu0
        %v484 = vadd.f32 %v281, %v483
        %v485 = vpop.f32.mrf.mxu0
        %486 = vmatprep.mubr.f32.mxu0 0.0
        %487 = vmatmul.mubr.f32.gmra.mxu0 %v335
        %v488 = vpop.f32.mrf.mxu0
        %v489 = vadd.f32 %v281, %v488
        %v490 = vpop.f32.mrf.mxu0
        %491 = vdwg.mxu0
        %vm492 = vcmp.ge.f32.partialorder %v404, 0.0
        %vm493 = vcmp.ge.f32.partialorder %v409, 0.0
        %vm494 = vcmp.ge.f32.partialorder %v414, 0.0
        %vm495 = vcmp.ge.f32.partialorder %v419, 0.0
        %vm496 = vcmp.ge.f32.partialorder %v424, 0.0
        %vm497 = vcmp.ge.f32.partialorder %v429, 0.0
        %vm498 = vcmp.ge.f32.partialorder %v434, 0.0
        %vm499 = vcmp.ge.f32.partialorder %v439, 0.0
        %vm500 = vcmp.ge.f32.partialorder %v444, 0.0
        %vm501 = vcmp.ge.f32.partialorder %v449, 0.0
        %vm502 = vcmp.ge.f32.partialorder %v454, 0.0
        %vm503 = vcmp.ge.f32.partialorder %v459, 0.0
        %vm504 = vcmp.ge.f32.partialorder %v464, 0.0
        %vm505 = vcmp.ge.f32.partialorder %v469, 0.0
        %vm506 = vcmp.ge.f32.partialorder %v474, 0.0
        %vm507 = vcmp.ge.f32.partialorder %v479, 0.0
        %vm508 = vcmp.ge.f32.partialorder %v484, 0.0
        %vm509 = vcmp.ge.f32.partialorder %v489, 0.0
        %v510 = vmul.f32 %v404, 0.02
        %v511 = vmul.f32 %v409, 0.02
        %v512 = vmul.f32 %v414, 0.02
        %v513 = vmul.f32 %v419, 0.02
        %v514 = vmul.f32 %v424, 0.02
        %v515 = vmul.f32 %v429, 0.02
        %v516 = vmul.f32 %v434, 0.02
        %v517 = vmul.f32 %v439, 0.02
        %v518 = vmul.f32 %v444, 0.02
        %v519 = vmul.f32 %v449, 0.02
        %v520 = vmul.f32 %v454, 0.02
        %v521 = vmul.f32 %v459, 0.02
        %v522 = vmul.f32 %v464, 0.02
        %v523 = vmul.f32 %v469, 0.02
        %v524 = vmul.f32 %v474, 0.02
        %v525 = vmul.f32 %v479, 0.02
        %v526 = vmul.f32 %v484, 0.02
        %v527 = vmul.f32 %v489, 0.02
        %v528 = vsel %vm492, %v404, %v510
        %v529 = vsel %vm493, %v409, %v511
        %v530 = vsel %vm494, %v414, %v512
        %v531 = vsel %vm495, %v419, %v513
        %v532 = vsel %vm496, %v424, %v514
        %v533 = vsel %vm497, %v429, %v515
        %v534 = vsel %vm498, %v434, %v516
        %v535 = vsel %vm499, %v439, %v517
        %v536 = vsel %vm500, %v444, %v518
        %v537 = vsel %vm501, %v449, %v519
        %v538 = vsel %vm502, %v454, %v520
        %v539 = vsel %vm503, %v459, %v521
        %v540 = vsel %vm504, %v464, %v522
        %v541 = vsel %vm505, %v469, %v523
        %v542 = vsel %vm506, %v474, %v524
        %v543 = vsel %vm507, %v479, %v525
        %v544 = vsel %vm508, %v484, %v526
        %v545 = vsel %vm509, %v489, %v527
        %v546 = vadd.f32 %v528, %v529
        %v547 = vadd.f32 %v546, %v530
        %v548 = vadd.f32 %v547, %v531
        %v549 = vadd.f32 %v548, %v532
        %v550 = vadd.f32 %v549, %v533
        %v551 = vadd.f32 %v550, %v534
        %v552 = vadd.f32 %v551, %v535
        %v553 = vadd.f32 %v552, %v536
        %v554 = vadd.f32 %v553, %v537
        %v555 = vadd.f32 %v554, %v538
        %v556 = vadd.f32 %v555, %v539
        %v557 = vadd.f32 %v556, %v540
        %v558 = vadd.f32 %v557, %v541
        %v559 = vadd.f32 %v558, %v542
        %v560 = vadd.f32 %v559, %v543
        %v561 = vadd.f32 %v560, %v544
        %v562 = vadd.f32 %v561, %v545
        %v563 = vrot.slane %v562, 4
        %v564 = vadd.f32 %v562, %v563
        %v565 = vrot.slane %v564, 2
        %v566 = vadd.f32 %v564, %v565
        %v567 = vrot.slane %v566, 1
        %v568 = vadd.f32 %v566, %v567
        %v569 = vrcp.pop 144.0
        %v570 = vmul.f32 %v568, %v569
        %v571 = vmul.f32 %v528, %v528
        %v572 = vmul.f32 %v529, %v529
        %v573 = vmul.f32 %v530, %v530
        %v574 = vmul.f32 %v531, %v531
        %v575 = vmul.f32 %v532, %v532
        %v576 = vmul.f32 %v533, %v533
        %v577 = vmul.f32 %v534, %v534
        %v578 = vmul.f32 %v535, %v535
        %v579 = vmul.f32 %v536, %v536
        %v580 = vmul.f32 %v537, %v537
        %v581 = vmul.f32 %v538, %v538
        %v582 = vmul.f32 %v539, %v539
        %v583 = vmul.f32 %v540, %v540
        %v584 = vmul.f32 %v541, %v541
        %v585 = vmul.f32 %v542, %v542
        %v586 = vmul.f32 %v543, %v543
        %v587 = vmul.f32 %v544, %v544
        %v588 = vmul.f32 %v545, %v545
        %v589 = vadd.f32 %v571, %v572
        %v590 = vadd.f32 %v589, %v573
        %v591 = vadd.f32 %v590, %v574
        %v592 = vadd.f32 %v591, %v575
        %v593 = vadd.f32 %v592, %v576
        %v594 = vadd.f32 %v593, %v577
        %v595 = vadd.f32 %v594, %v578
        %v596 = vadd.f32 %v595, %v579
        %v597 = vadd.f32 %v596, %v580
        %v598 = vadd.f32 %v597, %v581
        %v599 = vadd.f32 %v598, %v582
        %v600 = vadd.f32 %v599, %v583
        %v601 = vadd.f32 %v600, %v584
        %v602 = vadd.f32 %v601, %v585
        %v603 = vadd.f32 %v602, %v586
        %v604 = vadd.f32 %v603, %v587
        %v605 = vadd.f32 %v604, %v588
        %v606 = vrot.slane %v605, 4
        %v607 = vadd.f32 %v605, %v606
        %v608 = vrot.slane %v607, 2
        %v609 = vadd.f32 %v607, %v608
        %v610 = vrot.slane %v609, 1
        %v611 = vadd.f32 %v609, %v610
        %v612 = vmul.f32 %v611, %v569
        %v613 = vmul.f32 %v570, %v570
        %v614 = vsub.f32 %v612, %v613
        %v615 = vsub.f32 %v528, %v570
        %v616 = vsub.f32 %v529, %v570
        %v617 = vsub.f32 %v530, %v570
        %v618 = vsub.f32 %v531, %v570
        %v619 = vsub.f32 %v532, %v570
        %v620 = vsub.f32 %v533, %v570
        %v621 = vsub.f32 %v534, %v570
        %v622 = vsub.f32 %v535, %v570
        %v623 = vsub.f32 %v536, %v570
        %v624 = vsub.f32 %v537, %v570
        %v625 = vsub.f32 %v538, %v570
        %v626 = vsub.f32 %v539, %v570
        %v627 = vsub.f32 %v540, %v570
        %v628 = vsub.f32 %v541, %v570
        %v629 = vsub.f32 %v542, %v570
        %v630 = vsub.f32 %v543, %v570
        %v631 = vsub.f32 %v544, %v570
        %v632 = vsub.f32 %v545, %v570
        %v633 = vadd.f32 %v614, 1e-05
        %v634 = vrsqrt.pop %v633
        %v635 = vmul.f32 %v250, %v634
        %v636 = vlaneseq
        %v637 = vshrl.u32 %v636, 7
        %v638 = vsub.s32 0, %v637
        %v639 = vrot.slane %v635, %v638
        %v640 = vmul.f32 %v615, %v639
        %v641 = vmul.f32 %v616, %v639
        %v642 = vmul.f32 %v617, %v639
        %v643 = vmul.f32 %v618, %v639
        %v644 = vmul.f32 %v619, %v639
        %v645 = vmul.f32 %v620, %v639
        %v646 = vmul.f32 %v621, %v639
        %v647 = vmul.f32 %v622, %v639
        %v648 = vmul.f32 %v623, %v639
        %v649 = vmul.f32 %v624, %v639
        %v650 = vmul.f32 %v625, %v639
        %v651 = vmul.f32 %v626, %v639
        %v652 = vmul.f32 %v627, %v639
        %v653 = vmul.f32 %v628, %v639
        %v654 = vmul.f32 %v629, %v639
        %v655 = vmul.f32 %v630, %v639
        %v656 = vmul.f32 %v631, %v639
        %v657 = vmul.f32 %v632, %v639
        %v658 = vlaneseq
        %v659 = vshrl.u32 %v658, 7
        %v660 = vsub.s32 0, %v659
        %v661 = vrot.slane %v251, %v660
        %v662 = vadd.f32 %v640, %v661
        %v663 = vadd.f32 %v641, %v661
        %v664 = vadd.f32 %v642, %v661
        %v665 = vadd.f32 %v643, %v661
        %v666 = vadd.f32 %v644, %v661
        %v667 = vadd.f32 %v645, %v661
        %v668 = vadd.f32 %v646, %v661
        %v669 = vadd.f32 %v647, %v661
        %v670 = vadd.f32 %v648, %v661
        %v671 = vadd.f32 %v649, %v661
        %v672 = vadd.f32 %v650, %v661
        %v673 = vadd.f32 %v651, %v661
        %v674 = vadd.f32 %v652, %v661
        %v675 = vadd.f32 %v653, %v661
        %v676 = vadd.f32 %v654, %v661
        %v677 = vadd.f32 %v655, %v661
        %v678 = vadd.f32 %v656, %v661
        %v679 = vadd.f32 %v657, %v661
        %680 = vst [vmem:[#allocation2] sm:$0xff] %v662
        %681 = vst [vmem:[#allocation2 + $0x8] sm:$0xff] %v663
        %682 = vst [vmem:[#allocation2 + $0x10] sm:$0xff] %v664
        %683 = vst [vmem:[#allocation2 + $0x18] sm:$0xff] %v665
        %684 = vst [vmem:[#allocation2 + $0x20] sm:$0xff] %v666
        %685 = vst [vmem:[#allocation2 + $0x28] sm:$0xff] %v667
        %686 = vst [vmem:[#allocation2 + $0x30] sm:$0xff] %v668
        %687 = vst [vmem:[#allocation2 + $0x38] sm:$0xff] %v669
        %688 = vst [vmem:[#allocation2 + $0x40] sm:$0xff] %v670
        %689 = vst [vmem:[#allocation2 + $0x48] sm:$0xff] %v671
        %690 = vst [vmem:[#allocation2 + $0x50] sm:$0xff] %v672
        %691 = vst [vmem:[#allocation2 + $0x58] sm:$0xff] %v673
        %692 = vst [vmem:[#allocation2 + $0x60] sm:$0xff] %v674
        %693 = vst [vmem:[#allocation2 + $0x68] sm:$0xff] %v675
        %694 = vst [vmem:[#allocation2 + $0x70] sm:$0xff] %v676
        %695 = vst [vmem:[#allocation2 + $0x78] sm:$0xff] %v677
        %696 = vst [vmem:[#allocation2 + $0x80] sm:$0xff] %v678
        %697 = vst [vmem:[#allocation2 + $0x88] sm:$0xff] %v679
        %v698 = vld [vmem:[#allocation2] sm:$0xff]
        %v699 = vld [vmem:[#allocation2 + $0x8] sm:$0xff]
        %v700 = vld [vmem:[#allocation2 + $0x10] sm:$0xff]
        %v701 = vld [vmem:[#allocation2 + $0x18] sm:$0xff]
        %v702 = vld [vmem:[#allocation2 + $0x20] sm:$0xff]
        %v703 = vld [vmem:[#allocation2 + $0x28] sm:$0xff]
        %v704 = vld [vmem:[#allocation2 + $0x30] sm:$0xff]
        %v705 = vld [vmem:[#allocation2 + $0x38] sm:$0xff]
        %v706 = vld [vmem:[#allocation2 + $0x40] sm:$0xff]
        %v707 = vld [vmem:[#allocation2 + $0x48] sm:$0xff]
        %v708 = vld [vmem:[#allocation2 + $0x50] sm:$0xff]
        %v709 = vld [vmem:[#allocation2 + $0x58] sm:$0xff]
        %v710 = vld [vmem:[#allocation2 + $0x60] sm:$0xff]
        %v711 = vld [vmem:[#allocation2 + $0x68] sm:$0xff]
        %v712 = vld [vmem:[#allocation2 + $0x70] sm:$0xff]
        %v713 = vld [vmem:[#allocation2 + $0x78] sm:$0xff]
        %v714 = vld [vmem:[#allocation2 + $0x80] sm:$0xff]
        %v715 = vld [vmem:[#allocation2 + $0x88] sm:$0xff]
        %v716 = vld [vmem:[%s2] sm:$0xff]
        %v717 = vld [vmem:[%s2 + $0x8] sm:$0xff]
        %v718 = vld [vmem:[%s2 + $0x10] sm:$0xff]
        %v719 = vld [vmem:[%s2 + $0x18] sm:$0xff]
        %v720 = vld [vmem:[%s2 + $0x20] sm:$0xff]
        %v721 = vld [vmem:[%s2 + $0x28] sm:$0xff]
        %v722 = vld [vmem:[%s2 + $0x30] sm:$0xff]
        %v723 = vld [vmem:[%s2 + $0x38] sm:$0xff]
        %vm724 = vcmask 130048
        %v726 = vsel %vm724, %v717, 0
        %v729 = vsel %vm724, %v719, 0
        %v732 = vsel %vm724, %v721, 0
        %v735 = vsel %vm724, %v723, 0
        %737 = vmatprep.subr.mxu0 0.0
        %738 = vmatpush1.msra.mxu0 %v713
        %739 = vmatprep.subr.mxu0 0.0
        %740 = vmatpush1.msra.mxu0 %v712
        %741 = vmatprep.subr.mxu0 0.0
        %742 = vmatpush1.msra.mxu0 %v711
        %743 = vmatprep.subr.mxu0 0.0
        %744 = vmatpush1.msra.mxu0 %v710
        %745 = vmatprep.subr.mxu0 0.0
        %746 = vmatpush1.msra.mxu0 %v709
        %747 = vmatprep.subr.mxu0 0.0
        %748 = vmatpush1.msra.mxu0 %v708
        %749 = vmatprep.subr.mxu0 0.0
        %750 = vmatpush1.msra.mxu0 %v707
        %751 = vmatprep.subr.mxu0 0.0
        %752 = vmatpush1.msra.mxu0 %v706
        %753 = vmatprep.subr.mxu0 0.0
        %754 = vmatpush1.msra.mxu0 %v705
        %755 = vmatprep.subr.mxu0 0.0
        %756 = vmatpush1.msra.mxu0 %v704
        %757 = vmatprep.subr.mxu0 0.0
        %758 = vmatpush1.msra.mxu0 %v703
        %759 = vmatprep.subr.mxu0 0.0
        %760 = vmatpush1.msra.mxu0 %v702
        %761 = vmatprep.subr.mxu0 0.0
        %762 = vmatpush1.msra.mxu0 %v701
        %763 = vmatprep.subr.mxu0 0.0
        %764 = vmatpush1.msra.mxu0 %v700
        %765 = vmatprep.subr.mxu0 0.0
        %766 = vmatpush1.msra.mxu0 %v699
        %767 = vmatprep.subr.mxu0 0.0
        %768 = vmatpush1.msra.mxu0 %v698
        %769 = vmatprep.subr.mxu0 0.0
        %770 = vmatpush2.msra.mxu0 0.0
        %771 = vmatprep.subr.mxu0 0.0
        %772 = vmatpush2.msra.mxu0 0.0
        %773 = vmatprep.subr.mxu0 0.0
        %774 = vmatpush2.msra.mxu0 0.0
        %775 = vmatprep.subr.mxu0 0.0
        %776 = vmatpush2.msra.mxu0 0.0
        %777 = vmatprep.subr.mxu0 0.0
        %778 = vmatpush2.msra.mxu0 0.0
        %779 = vmatprep.subr.mxu0 0.0
        %780 = vmatpush2.msra.mxu0 0.0
        %781 = vmatprep.subr.mxu0 0.0
        %782 = vmatpush2.msra.mxu0 0.0
        %783 = vmatprep.subr.mxu0 0.0
        %784 = vmatpush2.msra.mxu0 0.0
        %785 = vmatprep.subr.mxu0 0.0
        %786 = vmatpush2.msra.mxu0 0.0
        %787 = vmatprep.subr.mxu0 0.0
        %788 = vmatpush2.msra.mxu0 0.0
        %789 = vmatprep.subr.mxu0 0.0
        %790 = vmatpush2.msra.mxu0 0.0
        %791 = vmatprep.subr.mxu0 0.0
        %792 = vmatpush2.msra.mxu0 0.0
        %793 = vmatprep.subr.mxu0 0.0
        %794 = vmatpush2.msra.mxu0 0.0
        %795 = vmatprep.subr.mxu0 0.0
        %796 = vmatpush2.msra.mxu0 0.0
        %797 = vmatprep.subr.mxu0 0.0
        %798 = vmatpush2.msra.mxu0 %v715
        %799 = vmatprep.subr.mxu0 0.0
        %800 = vmatpush2.msra.mxu0 %v714
        %801 = vmatprep.mubr.f32.mxu0 %v726
        %802 = vmatmul.mubr.f32.gmra.mxu0 %v716
        %v803 = vpop.f32.mrf.mxu0
        %v804 = vadd.f32 0.0, %v803
        %v805 = vpop.f32.mrf.mxu0
        %806 = vmatprep.mubr.f32.mxu0 %v729
        %807 = vmatmul.mubr.f32.gmra.mxu0 %v718
        %v808 = vpop.f32.mrf.mxu0
        %v809 = vadd.f32 0.0, %v808
        %v810 = vpop.f32.mrf.mxu0
        %811 = vmatprep.mubr.f32.mxu0 %v732
        %812 = vmatmul.mubr.f32.gmra.mxu0 %v720
        %v813 = vpop.f32.mrf.mxu0
        %v814 = vadd.f32 0.0, %v813
        %v815 = vpop.f32.mrf.mxu0
        %816 = vmatprep.mubr.f32.mxu0 %v735
        %817 = vmatmul.mubr.f32.gmra.mxu0 %v722
        %v818 = vpop.f32.mrf.mxu0
        %v819 = vadd.f32 0.0, %v818
        %v820 = vpop.f32.mrf.mxu0
        %821 = vdwg.mxu0
        %v822 = vld [vmem:[%s3] sm:$0xff]
        %v823 = vld [vmem:[%s3 + $0x8] sm:$0xff]
        %s824 = scalar_lea.vmem %s2, 64
        %v825 = vld [vmem:[%s824] sm:$0xff]
        %v826 = vld [vmem:[%s824 + $0x8] sm:$0xff]
        %v827 = vld [vmem:[%s824 + $0x10] sm:$0xff]
        %v828 = vld [vmem:[%s824 + $0x18] sm:$0xff]
        %v829 = vld [vmem:[%s824 + $0x20] sm:$0xff]
        %v830 = vld [vmem:[%s824 + $0x28] sm:$0xff]
        %v831 = vld [vmem:[%s824 + $0x30] sm:$0xff]
        %v832 = vld [vmem:[%s824 + $0x38] sm:$0xff]
        %v834 = vsel %vm724, %v826, 0
        %v837 = vsel %vm724, %v828, 0
        %v840 = vsel %vm724, %v830, 0
        %v843 = vsel %vm724, %v832, 0
        %845 = vmatprep.subr.mxu0 0.0
        %846 = vmatpush1.msra.mxu0 %v713
        %847 = vmatprep.subr.mxu0 0.0
        %848 = vmatpush1.msra.mxu0 %v712
        %849 = vmatprep.subr.mxu0 0.0
        %850 = vmatpush1.msra.mxu0 %v711
        %851 = vmatprep.subr.mxu0 0.0
        %852 = vmatpush1.msra.mxu0 %v710
        %853 = vmatprep.subr.mxu0 0.0
        %854 = vmatpush1.msra.mxu0 %v709
        %855 = vmatprep.subr.mxu0 0.0
        %856 = vmatpush1.msra.mxu0 %v708
        %857 = vmatprep.subr.mxu0 0.0
        %858 = vmatpush1.msra.mxu0 %v707
        %859 = vmatprep.subr.mxu0 0.0
        %860 = vmatpush1.msra.mxu0 %v706
        %861 = vmatprep.subr.mxu0 0.0
        %862 = vmatpush1.msra.mxu0 %v705
        %863 = vmatprep.subr.mxu0 0.0
        %864 = vmatpush1.msra.mxu0 %v704
        %865 = vmatprep.subr.mxu0 0.0
        %866 = vmatpush1.msra.mxu0 %v703
        %867 = vmatprep.subr.mxu0 0.0
        %868 = vmatpush1.msra.mxu0 %v702
        %869 = vmatprep.subr.mxu0 0.0
        %870 = vmatpush1.msra.mxu0 %v701
        %871 = vmatprep.subr.mxu0 0.0
        %872 = vmatpush1.msra.mxu0 %v700
        %873 = vmatprep.subr.mxu0 0.0
        %874 = vmatpush1.msra.mxu0 %v699
        %875 = vmatprep.subr.mxu0 0.0
        %876 = vmatpush1.msra.mxu0 %v698
        %877 = vmatprep.subr.mxu0 0.0
        %878 = vmatpush2.msra.mxu0 0.0
        %879 = vmatprep.subr.mxu0 0.0
        %880 = vmatpush2.msra.mxu0 0.0
        %881 = vmatprep.subr.mxu0 0.0
        %882 = vmatpush2.msra.mxu0 0.0
        %883 = vmatprep.subr.mxu0 0.0
        %884 = vmatpush2.msra.mxu0 0.0
        %885 = vmatprep.subr.mxu0 0.0
        %886 = vmatpush2.msra.mxu0 0.0
        %887 = vmatprep.subr.mxu0 0.0
        %888 = vmatpush2.msra.mxu0 0.0
        %889 = vmatprep.subr.mxu0 0.0
        %890 = vmatpush2.msra.mxu0 0.0
        %891 = vmatprep.subr.mxu0 0.0
        %892 = vmatpush2.msra.mxu0 0.0
        %893 = vmatprep.subr.mxu0 0.0
        %894 = vmatpush2.msra.mxu0 0.0
        %895 = vmatprep.subr.mxu0 0.0
        %896 = vmatpush2.msra.mxu0 0.0
        %897 = vmatprep.subr.mxu0 0.0
        %898 = vmatpush2.msra.mxu0 0.0
        %899 = vmatprep.subr.mxu0 0.0
        %900 = vmatpush2.msra.mxu0 0.0
        %901 = vmatprep.subr.mxu0 0.0
        %902 = vmatpush2.msra.mxu0 0.0
        %903 = vmatprep.subr.mxu0 0.0
        %904 = vmatpush2.msra.mxu0 0.0
        %905 = vmatprep.subr.mxu0 0.0
        %906 = vmatpush2.msra.mxu0 %v715
        %907 = vmatprep.subr.mxu0 0.0
        %908 = vmatpush2.msra.mxu0 %v714
        %909 = vmatprep.mubr.f32.mxu0 %v834
        %910 = vmatmul.mubr.f32.gmra.mxu0 %v825
        %v911 = vpop.f32.mrf.mxu0
        %v912 = vadd.f32 0.0, %v911
        %v913 = vpop.f32.mrf.mxu0
        %914 = vmatprep.mubr.f32.mxu0 %v837
        %915 = vmatmul.mubr.f32.gmra.mxu0 %v827
        %v916 = vpop.f32.mrf.mxu0
        %v917 = vadd.f32 0.0, %v916
        %v918 = vpop.f32.mrf.mxu0
        %919 = vmatprep.mubr.f32.mxu0 %v840
        %920 = vmatmul.mubr.f32.gmra.mxu0 %v829
        %v921 = vpop.f32.mrf.mxu0
        %v922 = vadd.f32 0.0, %v921
        %v923 = vpop.f32.mrf.mxu0
        %924 = vmatprep.mubr.f32.mxu0 %v843
        %925 = vmatmul.mubr.f32.gmra.mxu0 %v831
        %v926 = vpop.f32.mrf.mxu0
        %v927 = vadd.f32 0.0, %v926
        %v928 = vpop.f32.mrf.mxu0
        %929 = vdwg.mxu0
        %s930 = scalar_lea.vmem %s3, 16
        %v931 = vld [vmem:[%s930] sm:$0xff]
        %v932 = vld [vmem:[%s930 + $0x8] sm:$0xff]
        %v934 = vsel %vm724, %v912, 0
        %v937 = vsel %vm724, %v917, 0
        %v940 = vsel %vm724, %v922, 0
        %v943 = vsel %vm724, %v927, 0
        %945 = vmatprep.subr.mxu0 0.0
        %946 = vmatpush1.msra.mxu0 0.0
        %947 = vmatprep.subr.mxu0 0.0
        %948 = vmatpush1.msra.mxu0 0.0
        %949 = vmatprep.subr.mxu0 0.0
        %950 = vmatpush1.msra.mxu0 0.0
        %951 = vmatprep.subr.mxu0 0.0
        %952 = vmatpush1.msra.mxu0 0.0
        %953 = vmatprep.subr.mxu0 0.0
        %954 = vmatpush1.msra.mxu0 0.0
        %955 = vmatprep.subr.mxu0 0.0
        %956 = vmatpush1.msra.mxu0 0.0
        %957 = vmatprep.subr.mxu0 0.0
        %958 = vmatpush1.msra.mxu0 0.0
        %959 = vmatprep.subr.mxu0 0.0
        %960 = vmatpush1.msra.mxu0 0.0
        %961 = vmatprep.subr.mxu0 0.0
        %962 = vmatpush1.msra.mxu0 0.0
        %963 = vmatprep.subr.mxu0 0.0
        %964 = vmatpush1.msra.mxu0 0.0
        %965 = vmatprep.subr.mxu0 0.0
        %966 = vmatpush1.msra.mxu0 0.0
        %967 = vmatprep.subr.mxu0 0.0
        %968 = vmatpush1.msra.mxu0 0.0
        %969 = vmatprep.subr.mxu0 0.0
        %970 = vmatpush1.msra.mxu0 0.0
        %971 = vmatprep.subr.mxu0 0.0
        %972 = vmatpush1.msra.mxu0 0.0
        %973 = vmatprep.subr.mxu0 0.0
        %974 = vmatpush1.msra.mxu0 %v932
        %975 = vmatprep.subr.mxu0 0.0
        %976 = vmatpush1.msra.mxu0 %v931
        %977 = vmatprep.subr.mxu0 0.0
        %978 = vmatpush2.msra.mxu0 0.0
        %979 = vmatprep.subr.mxu0 0.0
        %980 = vmatpush2.msra.mxu0 0.0
        %981 = vmatprep.subr.mxu0 0.0
        %982 = vmatpush2.msra.mxu0 0.0
        %983 = vmatprep.subr.mxu0 0.0
        %984 = vmatpush2.msra.mxu0 0.0
        %985 = vmatprep.subr.mxu0 0.0
        %986 = vmatpush2.msra.mxu0 0.0
        %987 = vmatprep.subr.mxu0 0.0
        %988 = vmatpush2.msra.mxu0 0.0
        %989 = vmatprep.subr.mxu0 0.0
        %990 = vmatpush2.msra.mxu0 0.0
        %991 = vmatprep.subr.mxu0 0.0
        %992 = vmatpush2.msra.mxu0 0.0
        %993 = vmatprep.subr.mxu0 0.0
        %994 = vmatpush2.msra.mxu0 0.0
        %995 = vmatprep.subr.mxu0 0.0
        %996 = vmatpush2.msra.mxu0 0.0
        %997 = vmatprep.subr.mxu0 0.0
        %998 = vmatpush2.msra.mxu0 0.0
        %999 = vmatprep.subr.mxu0 0.0
        %1000 = vmatpush2.msra.mxu0 0.0
        %1001 = vmatprep.subr.mxu0 0.0
        %1002 = vmatpush2.msra.mxu0 0.0
        %1003 = vmatprep.subr.mxu0 0.0
        %1004 = vmatpush2.msra.mxu0 0.0
        %1005 = vmatprep.subr.mxu0 0.0
        %1006 = vmatpush2.msra.mxu0 0.0
        %1007 = vmatprep.subr.mxu0 0.0
        %1008 = vmatpush2.msra.mxu0 0.0
        %1009 = vmatprep.mubr.f32.mxu0 0.0
        %1010 = vmatmul.mubr.f32.gmra.mxu0 %v934
        %v1011 = vpop.f32.mrf.mxu0
        %v1012 = vadd.f32 0.0, %v1011
        %v1013 = vpop.f32.mrf.mxu0
        %1014 = vmatprep.mubr.f32.mxu0 0.0
        %1015 = vmatmul.mubr.f32.gmra.mxu0 %v937
        %v1016 = vpop.f32.mrf.mxu0
        %v1017 = vadd.f32 0.0, %v1016
        %v1018 = vpop.f32.mrf.mxu0
        %1019 = vmatprep.mubr.f32.mxu0 0.0
        %1020 = vmatmul.mubr.f32.gmra.mxu0 %v940
        %v1021 = vpop.f32.mrf.mxu0
        %v1022 = vadd.f32 0.0, %v1021
        %v1023 = vpop.f32.mrf.mxu0
        %1024 = vmatprep.mubr.f32.mxu0 0.0
        %1025 = vmatmul.mubr.f32.gmra.mxu0 %v943
        %v1026 = vpop.f32.mrf.mxu0
        %v1027 = vadd.f32 0.0, %v1026
        %v1028 = vpop.f32.mrf.mxu0
        %1029 = vdwg.mxu0
        %v1031 = vsel %vm724, %v804, 0
        %v1034 = vsel %vm724, %v809, 0
        %v1037 = vsel %vm724, %v814, 0
        %v1040 = vsel %vm724, %v819, 0
        %1042 = vmatprep.subr.mxu0 0.0
        %1043 = vmatpush1.msra.mxu0 0.0
        %1044 = vmatprep.subr.mxu0 0.0
        %1045 = vmatpush1.msra.mxu0 0.0
        %1046 = vmatprep.subr.mxu0 0.0
        %1047 = vmatpush1.msra.mxu0 0.0
        %1048 = vmatprep.subr.mxu0 0.0
        %1049 = vmatpush1.msra.mxu0 0.0
        %1050 = vmatprep.subr.mxu0 0.0
        %1051 = vmatpush1.msra.mxu0 0.0
        %1052 = vmatprep.subr.mxu0 0.0
        %1053 = vmatpush1.msra.mxu0 0.0
        %1054 = vmatprep.subr.mxu0 0.0
        %1055 = vmatpush1.msra.mxu0 0.0
        %1056 = vmatprep.subr.mxu0 0.0
        %1057 = vmatpush1.msra.mxu0 0.0
        %1058 = vmatprep.subr.mxu0 0.0
        %1059 = vmatpush1.msra.mxu0 0.0
        %1060 = vmatprep.subr.mxu0 0.0
        %1061 = vmatpush1.msra.mxu0 0.0
        %1062 = vmatprep.subr.mxu0 0.0
        %1063 = vmatpush1.msra.mxu0 0.0
        %1064 = vmatprep.subr.mxu0 0.0
        %1065 = vmatpush1.msra.mxu0 0.0
        %1066 = vmatprep.subr.mxu0 0.0
        %1067 = vmatpush1.msra.mxu0 0.0
        %1068 = vmatprep.subr.mxu0 0.0
        %1069 = vmatpush1.msra.mxu0 0.0
        %1070 = vmatprep.subr.mxu0 0.0
        %1071 = vmatpush1.msra.mxu0 %v823
        %1072 = vmatprep.subr.mxu0 0.0
        %1073 = vmatpush1.msra.mxu0 %v822
        %1074 = vmatprep.subr.mxu0 0.0
        %1075 = vmatpush2.msra.mxu0 0.0
        %1076 = vmatprep.subr.mxu0 0.0
        %1077 = vmatpush2.msra.mxu0 0.0
        %1078 = vmatprep.subr.mxu0 0.0
        %1079 = vmatpush2.msra.mxu0 0.0
        %1080 = vmatprep.subr.mxu0 0.0
        %1081 = vmatpush2.msra.mxu0 0.0
        %1082 = vmatprep.subr.mxu0 0.0
        %1083 = vmatpush2.msra.mxu0 0.0
        %1084 = vmatprep.subr.mxu0 0.0
        %1085 = vmatpush2.msra.mxu0 0.0
        %1086 = vmatprep.subr.mxu0 0.0
        %1087 = vmatpush2.msra.mxu0 0.0
        %1088 = vmatprep.subr.mxu0 0.0
        %1089 = vmatpush2.msra.mxu0 0.0
        %1090 = vmatprep.subr.mxu0 0.0
        %1091 = vmatpush2.msra.mxu0 0.0
        %1092 = vmatprep.subr.mxu0 0.0
        %1093 = vmatpush2.msra.mxu0 0.0
        %1094 = vmatprep.subr.mxu0 0.0
        %1095 = vmatpush2.msra.mxu0 0.0
        %1096 = vmatprep.subr.mxu0 0.0
        %1097 = vmatpush2.msra.mxu0 0.0
        %1098 = vmatprep.subr.mxu0 0.0
        %1099 = vmatpush2.msra.mxu0 0.0
        %1100 = vmatprep.subr.mxu0 0.0
        %1101 = vmatpush2.msra.mxu0 0.0
        %1102 = vmatprep.subr.mxu0 0.0
        %1103 = vmatpush2.msra.mxu0 0.0
        %1104 = vmatprep.subr.mxu0 0.0
        %1105 = vmatpush2.msra.mxu0 0.0
        %1106 = vmatprep.mubr.f32.mxu0 0.0
        %1107 = vmatmul.mubr.f32.gmra.mxu0 %v1031
        %v1108 = vpop.f32.mrf.mxu0
        %v1109 = vadd.f32 %v1012, %v1108
        %v1110 = vpop.f32.mrf.mxu0
        %1111 = vmatprep.mubr.f32.mxu0 0.0
        %1112 = vmatmul.mubr.f32.gmra.mxu0 %v1034
        %v1113 = vpop.f32.mrf.mxu0
        %v1114 = vadd.f32 %v1017, %v1113
        %v1115 = vpop.f32.mrf.mxu0
        %1116 = vmatprep.mubr.f32.mxu0 0.0
        %1117 = vmatmul.mubr.f32.gmra.mxu0 %v1037
        %v1118 = vpop.f32.mrf.mxu0
        %v1119 = vadd.f32 %v1022, %v1118
        %v1120 = vpop.f32.mrf.mxu0
        %1121 = vmatprep.mubr.f32.mxu0 0.0
        %1122 = vmatmul.mubr.f32.gmra.mxu0 %v1040
        %v1123 = vpop.f32.mrf.mxu0
        %v1124 = vadd.f32 %v1027, %v1123
        %v1125 = vpop.f32.mrf.mxu0
        %1126 = vdwg.mxu0
        %s1127 = scalar_lea.vmem %s2, 128
        %v1128 = vld [vmem:[%s1127] sm:$0xff]
        %v1129 = vld [vmem:[%s1127 + $0x8] sm:$0xff]
        %v1130 = vld [vmem:[%s1127 + $0x10] sm:$0xff]
        %v1131 = vld [vmem:[%s1127 + $0x18] sm:$0xff]
        %v1132 = vld [vmem:[%s1127 + $0x20] sm:$0xff]
        %v1133 = vld [vmem:[%s1127 + $0x28] sm:$0xff]
        %v1134 = vld [vmem:[%s1127 + $0x30] sm:$0xff]
        %v1135 = vld [vmem:[%s1127 + $0x38] sm:$0xff]
        %v1137 = vsel %vm724, %v1129, 0
        %v1140 = vsel %vm724, %v1131, 0
        %v1143 = vsel %vm724, %v1133, 0
        %v1146 = vsel %vm724, %v1135, 0
        %1148 = vmatprep.subr.mxu0 0.0
        %1149 = vmatpush1.msra.mxu0 %v713
        %1150 = vmatprep.subr.mxu0 0.0
        %1151 = vmatpush1.msra.mxu0 %v712
        %1152 = vmatprep.subr.mxu0 0.0
        %1153 = vmatpush1.msra.mxu0 %v711
        %1154 = vmatprep.subr.mxu0 0.0
        %1155 = vmatpush1.msra.mxu0 %v710
        %1156 = vmatprep.subr.mxu0 0.0
        %1157 = vmatpush1.msra.mxu0 %v709
        %1158 = vmatprep.subr.mxu0 0.0
        %1159 = vmatpush1.msra.mxu0 %v708
        %1160 = vmatprep.subr.mxu0 0.0
        %1161 = vmatpush1.msra.mxu0 %v707
        %1162 = vmatprep.subr.mxu0 0.0
        %1163 = vmatpush1.msra.mxu0 %v706
        %1164 = vmatprep.subr.mxu0 0.0
        %1165 = vmatpush1.msra.mxu0 %v705
        %1166 = vmatprep.subr.mxu0 0.0
        %1167 = vmatpush1.msra.mxu0 %v704
        %1168 = vmatprep.subr.mxu0 0.0
        %1169 = vmatpush1.msra.mxu0 %v703
        %1170 = vmatprep.subr.mxu0 0.0
        %1171 = vmatpush1.msra.mxu0 %v702
        %1172 = vmatprep.subr.mxu0 0.0
        %1173 = vmatpush1.msra.mxu0 %v701
        %1174 = vmatprep.subr.mxu0 0.0
        %1175 = vmatpush1.msra.mxu0 %v700
        %1176 = vmatprep.subr.mxu0 0.0
        %1177 = vmatpush1.msra.mxu0 %v699
        %1178 = vmatprep.subr.mxu0 0.0
        %1179 = vmatpush1.msra.mxu0 %v698
        %1180 = vmatprep.subr.mxu0 0.0
        %1181 = vmatpush2.msra.mxu0 0.0
        %1182 = vmatprep.subr.mxu0 0.0
        %1183 = vmatpush2.msra.mxu0 0.0
        %1184 = vmatprep.subr.mxu0 0.0
        %1185 = vmatpush2.msra.mxu0 0.0
        %1186 = vmatprep.subr.mxu0 0.0
        %1187 = vmatpush2.msra.mxu0 0.0
        %1188 = vmatprep.subr.mxu0 0.0
        %1189 = vmatpush2.msra.mxu0 0.0
        %1190 = vmatprep.subr.mxu0 0.0
        %1191 = vmatpush2.msra.mxu0 0.0
        %1192 = vmatprep.subr.mxu0 0.0
        %1193 = vmatpush2.msra.mxu0 0.0
        %1194 = vmatprep.subr.mxu0 0.0
        %1195 = vmatpush2.msra.mxu0 0.0
        %1196 = vmatprep.subr.mxu0 0.0
        %1197 = vmatpush2.msra.mxu0 0.0
        %1198 = vmatprep.subr.mxu0 0.0
        %1199 = vmatpush2.msra.mxu0 0.0
        %1200 = vmatprep.subr.mxu0 0.0
        %1201 = vmatpush2.msra.mxu0 0.0
        %1202 = vmatprep.subr.mxu0 0.0
        %1203 = vmatpush2.msra.mxu0 0.0
        %1204 = vmatprep.subr.mxu0 0.0
        %1205 = vmatpush2.msra.mxu0 0.0
        %1206 = vmatprep.subr.mxu0 0.0
        %1207 = vmatpush2.msra.mxu0 0.0
        %1208 = vmatprep.subr.mxu0 0.0
        %1209 = vmatpush2.msra.mxu0 %v715
        %1210 = vmatprep.subr.mxu0 0.0
        %1211 = vmatpush2.msra.mxu0 %v714
        %1212 = vmatprep.mubr.f32.mxu0 %v1137
        %1213 = vmatmul.mubr.f32.gmra.mxu0 %v1128
        %v1214 = vpop.f32.mrf.mxu0
        %v1215 = vadd.f32 0.0, %v1214
        %v1216 = vpop.f32.mrf.mxu0
        %1217 = vmatprep.mubr.f32.mxu0 %v1140
        %1218 = vmatmul.mubr.f32.gmra.mxu0 %v1130
        %v1219 = vpop.f32.mrf.mxu0
        %v1220 = vadd.f32 0.0, %v1219
        %v1221 = vpop.f32.mrf.mxu0
        %1222 = vmatprep.mubr.f32.mxu0 %v1143
        %1223 = vmatmul.mubr.f32.gmra.mxu0 %v1132
        %v1224 = vpop.f32.mrf.mxu0
        %v1225 = vadd.f32 0.0, %v1224
        %v1226 = vpop.f32.mrf.mxu0
        %1227 = vmatprep.mubr.f32.mxu0 %v1146
        %1228 = vmatmul.mubr.f32.gmra.mxu0 %v1134
        %v1229 = vpop.f32.mrf.mxu0
        %v1230 = vadd.f32 0.0, %v1229
        %v1231 = vpop.f32.mrf.mxu0
        %1232 = vdwg.mxu0
        %s1233 = scalar_lea.vmem %s3, 32
        %v1234 = vld [vmem:[%s1233] sm:$0xff]
        %v1235 = vld [vmem:[%s1233 + $0x8] sm:$0xff]
        %v1237 = vsel %vm724, %v1215, 0
        %v1240 = vsel %vm724, %v1220, 0
        %v1243 = vsel %vm724, %v1225, 0
        %v1246 = vsel %vm724, %v1230, 0
        %1248 = vmatprep.subr.mxu0 0.0
        %1249 = vmatpush1.msra.mxu0 0.0
        %1250 = vmatprep.subr.mxu0 0.0
        %1251 = vmatpush1.msra.mxu0 0.0
        %1252 = vmatprep.subr.mxu0 0.0
        %1253 = vmatpush1.msra.mxu0 0.0
        %1254 = vmatprep.subr.mxu0 0.0
        %1255 = vmatpush1.msra.mxu0 0.0
        %1256 = vmatprep.subr.mxu0 0.0
        %1257 = vmatpush1.msra.mxu0 0.0
        %1258 = vmatprep.subr.mxu0 0.0
        %1259 = vmatpush1.msra.mxu0 0.0
        %1260 = vmatprep.subr.mxu0 0.0
        %1261 = vmatpush1.msra.mxu0 0.0
        %1262 = vmatprep.subr.mxu0 0.0
        %1263 = vmatpush1.msra.mxu0 0.0
        %1264 = vmatprep.subr.mxu0 0.0
        %1265 = vmatpush1.msra.mxu0 0.0
        %1266 = vmatprep.subr.mxu0 0.0
        %1267 = vmatpush1.msra.mxu0 0.0
        %1268 = vmatprep.subr.mxu0 0.0
        %1269 = vmatpush1.msra.mxu0 0.0
        %1270 = vmatprep.subr.mxu0 0.0
        %1271 = vmatpush1.msra.mxu0 0.0
        %1272 = vmatprep.subr.mxu0 0.0
        %1273 = vmatpush1.msra.mxu0 0.0
        %1274 = vmatprep.subr.mxu0 0.0
        %1275 = vmatpush1.msra.mxu0 0.0
        %1276 = vmatprep.subr.mxu0 0.0
        %1277 = vmatpush1.msra.mxu0 %v1235
        %1278 = vmatprep.subr.mxu0 0.0
        %1279 = vmatpush1.msra.mxu0 %v1234
        %1280 = vmatprep.subr.mxu0 0.0
        %1281 = vmatpush2.msra.mxu0 0.0
        %1282 = vmatprep.subr.mxu0 0.0
        %1283 = vmatpush2.msra.mxu0 0.0
        %1284 = vmatprep.subr.mxu0 0.0
        %1285 = vmatpush2.msra.mxu0 0.0
        %1286 = vmatprep.subr.mxu0 0.0
        %1287 = vmatpush2.msra.mxu0 0.0
        %1288 = vmatprep.subr.mxu0 0.0
        %1289 = vmatpush2.msra.mxu0 0.0
        %1290 = vmatprep.subr.mxu0 0.0
        %1291 = vmatpush2.msra.mxu0 0.0
        %1292 = vmatprep.subr.mxu0 0.0
        %1293 = vmatpush2.msra.mxu0 0.0
        %1294 = vmatprep.subr.mxu0 0.0
        %1295 = vmatpush2.msra.mxu0 0.0
        %1296 = vmatprep.subr.mxu0 0.0
        %1297 = vmatpush2.msra.mxu0 0.0
        %1298 = vmatprep.subr.mxu0 0.0
        %1299 = vmatpush2.msra.mxu0 0.0
        %1300 = vmatprep.subr.mxu0 0.0
        %1301 = vmatpush2.msra.mxu0 0.0
        %1302 = vmatprep.subr.mxu0 0.0
        %1303 = vmatpush2.msra.mxu0 0.0
        %1304 = vmatprep.subr.mxu0 0.0
        %1305 = vmatpush2.msra.mxu0 0.0
        %1306 = vmatprep.subr.mxu0 0.0
        %1307 = vmatpush2.msra.mxu0 0.0
        %1308 = vmatprep.subr.mxu0 0.0
        %1309 = vmatpush2.msra.mxu0 0.0
        %1310 = vmatprep.subr.mxu0 0.0
        %1311 = vmatpush2.msra.mxu0 0.0
        %1312 = vmatprep.mubr.f32.mxu0 0.0
        %1313 = vmatmul.mubr.f32.gmra.mxu0 %v1237
        %v1314 = vpop.f32.mrf.mxu0
        %v1315 = vadd.f32 0.0, %v1314
        %v1316 = vpop.f32.mrf.mxu0
        %1317 = vmatprep.mubr.f32.mxu0 0.0
        %1318 = vmatmul.mubr.f32.gmra.mxu0 %v1240
        %v1319 = vpop.f32.mrf.mxu0
        %v1320 = vadd.f32 0.0, %v1319
        %v1321 = vpop.f32.mrf.mxu0
        %1322 = vmatprep.mubr.f32.mxu0 0.0
        %1323 = vmatmul.mubr.f32.gmra.mxu0 %v1243
        %v1324 = vpop.f32.mrf.mxu0
        %v1325 = vadd.f32 0.0, %v1324
        %v1326 = vpop.f32.mrf.mxu0
        %1327 = vmatprep.mubr.f32.mxu0 0.0
        %1328 = vmatmul.mubr.f32.gmra.mxu0 %v1246
        %v1329 = vpop.f32.mrf.mxu0
        %v1330 = vadd.f32 0.0, %v1329
        %v1331 = vpop.f32.mrf.mxu0
        %1332 = vdwg.mxu0
        %v1333 = vadd.f32 %v1109, %v1315
        %v1334 = vadd.f32 %v1114, %v1320
        %v1335 = vadd.f32 %v1119, %v1325
        %v1336 = vadd.f32 %v1124, %v1330
        %s1337 = scalar_lea.vmem %s2, 192
        %v1338 = vld [vmem:[%s1337] sm:$0xff]
        %v1339 = vld [vmem:[%s1337 + $0x8] sm:$0xff]
        %v1340 = vld [vmem:[%s1337 + $0x10] sm:$0xff]
        %v1341 = vld [vmem:[%s1337 + $0x18] sm:$0xff]
        %v1342 = vld [vmem:[%s1337 + $0x20] sm:$0xff]
        %v1343 = vld [vmem:[%s1337 + $0x28] sm:$0xff]
        %v1344 = vld [vmem:[%s1337 + $0x30] sm:$0xff]
        %v1345 = vld [vmem:[%s1337 + $0x38] sm:$0xff]
        %v1347 = vsel %vm724, %v1339, 0
        %v1350 = vsel %vm724, %v1341, 0
        %v1353 = vsel %vm724, %v1343, 0
        %v1356 = vsel %vm724, %v1345, 0
        %1358 = vmatprep.subr.mxu0 0.0
        %1359 = vmatpush1.msra.mxu0 %v713
        %1360 = vmatprep.subr.mxu0 0.0
        %1361 = vmatpush1.msra.mxu0 %v712
        %1362 = vmatprep.subr.mxu0 0.0
        %1363 = vmatpush1.msra.mxu0 %v711
        %1364 = vmatprep.subr.mxu0 0.0
        %1365 = vmatpush1.msra.mxu0 %v710
        %1366 = vmatprep.subr.mxu0 0.0
        %1367 = vmatpush1.msra.mxu0 %v709
        %1368 = vmatprep.subr.mxu0 0.0
        %1369 = vmatpush1.msra.mxu0 %v708
        %1370 = vmatprep.subr.mxu0 0.0
        %1371 = vmatpush1.msra.mxu0 %v707
        %1372 = vmatprep.subr.mxu0 0.0
        %1373 = vmatpush1.msra.mxu0 %v706
        %1374 = vmatprep.subr.mxu0 0.0
        %1375 = vmatpush1.msra.mxu0 %v705
        %1376 = vmatprep.subr.mxu0 0.0
        %1377 = vmatpush1.msra.mxu0 %v704
        %1378 = vmatprep.subr.mxu0 0.0
        %1379 = vmatpush1.msra.mxu0 %v703
        %1380 = vmatprep.subr.mxu0 0.0
        %1381 = vmatpush1.msra.mxu0 %v702
        %1382 = vmatprep.subr.mxu0 0.0
        %1383 = vmatpush1.msra.mxu0 %v701
        %1384 = vmatprep.subr.mxu0 0.0
        %1385 = vmatpush1.msra.mxu0 %v700
        %1386 = vmatprep.subr.mxu0 0.0
        %1387 = vmatpush1.msra.mxu0 %v699
        %1388 = vmatprep.subr.mxu0 0.0
        %1389 = vmatpush1.msra.mxu0 %v698
        %1390 = vmatprep.subr.mxu0 0.0
        %1391 = vmatpush2.msra.mxu0 0.0
        %1392 = vmatprep.subr.mxu0 0.0
        %1393 = vmatpush2.msra.mxu0 0.0
        %1394 = vmatprep.subr.mxu0 0.0
        %1395 = vmatpush2.msra.mxu0 0.0
        %1396 = vmatprep.subr.mxu0 0.0
        %1397 = vmatpush2.msra.mxu0 0.0
        %1398 = vmatprep.subr.mxu0 0.0
        %1399 = vmatpush2.msra.mxu0 0.0
        %1400 = vmatprep.subr.mxu0 0.0
        %1401 = vmatpush2.msra.mxu0 0.0
        %1402 = vmatprep.subr.mxu0 0.0
        %1403 = vmatpush2.msra.mxu0 0.0
        %1404 = vmatprep.subr.mxu0 0.0
        %1405 = vmatpush2.msra.mxu0 0.0
        %1406 = vmatprep.subr.mxu0 0.0
        %1407 = vmatpush2.msra.mxu0 0.0
        %1408 = vmatprep.subr.mxu0 0.0
        %1409 = vmatpush2.msra.mxu0 0.0
        %1410 = vmatprep.subr.mxu0 0.0
        %1411 = vmatpush2.msra.mxu0 0.0
        %1412 = vmatprep.subr.mxu0 0.0
        %1413 = vmatpush2.msra.mxu0 0.0
        %1414 = vmatprep.subr.mxu0 0.0
        %1415 = vmatpush2.msra.mxu0 0.0
        %1416 = vmatprep.subr.mxu0 0.0
        %1417 = vmatpush2.msra.mxu0 0.0
        %1418 = vmatprep.subr.mxu0 0.0
        %1419 = vmatpush2.msra.mxu0 %v715
        %1420 = vmatprep.subr.mxu0 0.0
        %1421 = vmatpush2.msra.mxu0 %v714
        %1422 = vmatprep.mubr.f32.mxu0 %v1347
        %1423 = vmatmul.mubr.f32.gmra.mxu0 %v1338
        %v1424 = vpop.f32.mrf.mxu0
        %v1425 = vadd.f32 0.0, %v1424
        %v1426 = vpop.f32.mrf.mxu0
        %1427 = vmatprep.mubr.f32.mxu0 %v1350
        %1428 = vmatmul.mubr.f32.gmra.mxu0 %v1340
        %v1429 = vpop.f32.mrf.mxu0
        %v1430 = vadd.f32 0.0, %v1429
        %v1431 = vpop.f32.mrf.mxu0
        %1432 = vmatprep.mubr.f32.mxu0 %v1353
        %1433 = vmatmul.mubr.f32.gmra.mxu0 %v1342
        %v1434 = vpop.f32.mrf.mxu0
        %v1435 = vadd.f32 0.0, %v1434
        %v1436 = vpop.f32.mrf.mxu0
        %1437 = vmatprep.mubr.f32.mxu0 %v1356
        %1438 = vmatmul.mubr.f32.gmra.mxu0 %v1344
        %v1439 = vpop.f32.mrf.mxu0
        %v1440 = vadd.f32 0.0, %v1439
        %v1441 = vpop.f32.mrf.mxu0
        %1442 = vdwg.mxu0
        %s1443 = scalar_lea.vmem %s3, 48
        %v1444 = vld [vmem:[%s1443] sm:$0xff]
        %v1445 = vld [vmem:[%s1443 + $0x8] sm:$0xff]
        %s1446 = scalar_lea.vmem %s2, 256
        %v1447 = vld [vmem:[%s1446] sm:$0xff]
        %v1448 = vld [vmem:[%s1446 + $0x8] sm:$0xff]
        %v1449 = vld [vmem:[%s1446 + $0x10] sm:$0xff]
        %v1450 = vld [vmem:[%s1446 + $0x18] sm:$0xff]
        %v1451 = vld [vmem:[%s1446 + $0x20] sm:$0xff]
        %v1452 = vld [vmem:[%s1446 + $0x28] sm:$0xff]
        %v1453 = vld [vmem:[%s1446 + $0x30] sm:$0xff]
        %v1454 = vld [vmem:[%s1446 + $0x38] sm:$0xff]
        %v1456 = vsel %vm724, %v1448, 0
        %v1459 = vsel %vm724, %v1450, 0
        %v1462 = vsel %vm724, %v1452, 0
        %v1465 = vsel %vm724, %v1454, 0
        %1467 = vmatprep.subr.mxu0 0.0
        %1468 = vmatpush1.msra.mxu0 %v713
        %1469 = vmatprep.subr.mxu0 0.0
        %1470 = vmatpush1.msra.mxu0 %v712
        %1471 = vmatprep.subr.mxu0 0.0
        %1472 = vmatpush1.msra.mxu0 %v711
        %1473 = vmatprep.subr.mxu0 0.0
        %1474 = vmatpush1.msra.mxu0 %v710
        %1475 = vmatprep.subr.mxu0 0.0
        %1476 = vmatpush1.msra.mxu0 %v709
        %1477 = vmatprep.subr.mxu0 0.0
        %1478 = vmatpush1.msra.mxu0 %v708
        %1479 = vmatprep.subr.mxu0 0.0
        %1480 = vmatpush1.msra.mxu0 %v707
        %1481 = vmatprep.subr.mxu0 0.0
        %1482 = vmatpush1.msra.mxu0 %v706
        %1483 = vmatprep.subr.mxu0 0.0
        %1484 = vmatpush1.msra.mxu0 %v705
        %1485 = vmatprep.subr.mxu0 0.0
        %1486 = vmatpush1.msra.mxu0 %v704
        %1487 = vmatprep.subr.mxu0 0.0
        %1488 = vmatpush1.msra.mxu0 %v703
        %1489 = vmatprep.subr.mxu0 0.0
        %1490 = vmatpush1.msra.mxu0 %v702
        %1491 = vmatprep.subr.mxu0 0.0
        %1492 = vmatpush1.msra.mxu0 %v701
        %1493 = vmatprep.subr.mxu0 0.0
        %1494 = vmatpush1.msra.mxu0 %v700
        %1495 = vmatprep.subr.mxu0 0.0
        %1496 = vmatpush1.msra.mxu0 %v699
        %1497 = vmatprep.subr.mxu0 0.0
        %1498 = vmatpush1.msra.mxu0 %v698
        %1499 = vmatprep.subr.mxu0 0.0
        %1500 = vmatpush2.msra.mxu0 0.0
        %1501 = vmatprep.subr.mxu0 0.0
        %1502 = vmatpush2.msra.mxu0 0.0
        %1503 = vmatprep.subr.mxu0 0.0
        %1504 = vmatpush2.msra.mxu0 0.0
        %1505 = vmatprep.subr.mxu0 0.0
        %1506 = vmatpush2.msra.mxu0 0.0
        %1507 = vmatprep.subr.mxu0 0.0
        %1508 = vmatpush2.msra.mxu0 0.0
        %1509 = vmatprep.subr.mxu0 0.0
        %1510 = vmatpush2.msra.mxu0 0.0
        %1511 = vmatprep.subr.mxu0 0.0
        %1512 = vmatpush2.msra.mxu0 0.0
        %1513 = vmatprep.subr.mxu0 0.0
        %1514 = vmatpush2.msra.mxu0 0.0
        %1515 = vmatprep.subr.mxu0 0.0
        %1516 = vmatpush2.msra.mxu0 0.0
        %1517 = vmatprep.subr.mxu0 0.0
        %1518 = vmatpush2.msra.mxu0 0.0
        %1519 = vmatprep.subr.mxu0 0.0
        %1520 = vmatpush2.msra.mxu0 0.0
        %1521 = vmatprep.subr.mxu0 0.0
        %1522 = vmatpush2.msra.mxu0 0.0
        %1523 = vmatprep.subr.mxu0 0.0
        %1524 = vmatpush2.msra.mxu0 0.0
        %1525 = vmatprep.subr.mxu0 0.0
        %1526 = vmatpush2.msra.mxu0 0.0
        %1527 = vmatprep.subr.mxu0 0.0
        %1528 = vmatpush2.msra.mxu0 %v715
        %1529 = vmatprep.subr.mxu0 0.0
        %1530 = vmatpush2.msra.mxu0 %v714
        %1531 = vmatprep.mubr.f32.mxu0 %v1456
        %1532 = vmatmul.mubr.f32.gmra.mxu0 %v1447
        %v1533 = vpop.f32.mrf.mxu0
        %v1534 = vadd.f32 0.0, %v1533
        %v1535 = vpop.f32.mrf.mxu0
        %1536 = vmatprep.mubr.f32.mxu0 %v1459
        %1537 = vmatmul.mubr.f32.gmra.mxu0 %v1449
        %v1538 = vpop.f32.mrf.mxu0
        %v1539 = vadd.f32 0.0, %v1538
        %v1540 = vpop.f32.mrf.mxu0
        %1541 = vmatprep.mubr.f32.mxu0 %v1462
        %1542 = vmatmul.mubr.f32.gmra.mxu0 %v1451
        %v1543 = vpop.f32.mrf.mxu0
        %v1544 = vadd.f32 0.0, %v1543
        %v1545 = vpop.f32.mrf.mxu0
        %1546 = vmatprep.mubr.f32.mxu0 %v1465
        %1547 = vmatmul.mubr.f32.gmra.mxu0 %v1453
        %v1548 = vpop.f32.mrf.mxu0
        %v1549 = vadd.f32 0.0, %v1548
        %v1550 = vpop.f32.mrf.mxu0
        %1551 = vdwg.mxu0
        %s1552 = scalar_lea.vmem %s3, 64
        %v1553 = vld [vmem:[%s1552] sm:$0xff]
        %v1554 = vld [vmem:[%s1552 + $0x8] sm:$0xff]
        %v1556 = vsel %vm724, %v1534, 0
        %v1559 = vsel %vm724, %v1539, 0
        %v1562 = vsel %vm724, %v1544, 0
        %v1565 = vsel %vm724, %v1549, 0
        %1567 = vmatprep.subr.mxu0 0.0
        %1568 = vmatpush1.msra.mxu0 0.0
        %1569 = vmatprep.subr.mxu0 0.0
        %1570 = vmatpush1.msra.mxu0 0.0
        %1571 = vmatprep.subr.mxu0 0.0
        %1572 = vmatpush1.msra.mxu0 0.0
        %1573 = vmatprep.subr.mxu0 0.0
        %1574 = vmatpush1.msra.mxu0 0.0
        %1575 = vmatprep.subr.mxu0 0.0
        %1576 = vmatpush1.msra.mxu0 0.0
        %1577 = vmatprep.subr.mxu0 0.0
        %1578 = vmatpush1.msra.mxu0 0.0
        %1579 = vmatprep.subr.mxu0 0.0
        %1580 = vmatpush1.msra.mxu0 0.0
        %1581 = vmatprep.subr.mxu0 0.0
        %1582 = vmatpush1.msra.mxu0 0.0
        %1583 = vmatprep.subr.mxu0 0.0
        %1584 = vmatpush1.msra.mxu0 0.0
        %1585 = vmatprep.subr.mxu0 0.0
        %1586 = vmatpush1.msra.mxu0 0.0
        %1587 = vmatprep.subr.mxu0 0.0
        %1588 = vmatpush1.msra.mxu0 0.0
        %1589 = vmatprep.subr.mxu0 0.0
        %1590 = vmatpush1.msra.mxu0 0.0
        %1591 = vmatprep.subr.mxu0 0.0
        %1592 = vmatpush1.msra.mxu0 0.0
        %1593 = vmatprep.subr.mxu0 0.0
        %1594 = vmatpush1.msra.mxu0 0.0
        %1595 = vmatprep.subr.mxu0 0.0
        %1596 = vmatpush1.msra.mxu0 %v1554
        %1597 = vmatprep.subr.mxu0 0.0
        %1598 = vmatpush1.msra.mxu0 %v1553
        %1599 = vmatprep.subr.mxu0 0.0
        %1600 = vmatpush2.msra.mxu0 0.0
        %1601 = vmatprep.subr.mxu0 0.0
        %1602 = vmatpush2.msra.mxu0 0.0
        %1603 = vmatprep.subr.mxu0 0.0
        %1604 = vmatpush2.msra.mxu0 0.0
        %1605 = vmatprep.subr.mxu0 0.0
        %1606 = vmatpush2.msra.mxu0 0.0
        %1607 = vmatprep.subr.mxu0 0.0
        %1608 = vmatpush2.msra.mxu0 0.0
        %1609 = vmatprep.subr.mxu0 0.0
        %1610 = vmatpush2.msra.mxu0 0.0
        %1611 = vmatprep.subr.mxu0 0.0
        %1612 = vmatpush2.msra.mxu0 0.0
        %1613 = vmatprep.subr.mxu0 0.0
        %1614 = vmatpush2.msra.mxu0 0.0
        %1615 = vmatprep.subr.mxu0 0.0
        %1616 = vmatpush2.msra.mxu0 0.0
        %1617 = vmatprep.subr.mxu0 0.0
        %1618 = vmatpush2.msra.mxu0 0.0
        %1619 = vmatprep.subr.mxu0 0.0
        %1620 = vmatpush2.msra.mxu0 0.0
        %1621 = vmatprep.subr.mxu0 0.0
        %1622 = vmatpush2.msra.mxu0 0.0
        %1623 = vmatprep.subr.mxu0 0.0
        %1624 = vmatpush2.msra.mxu0 0.0
        %1625 = vmatprep.subr.mxu0 0.0
        %1626 = vmatpush2.msra.mxu0 0.0
        %1627 = vmatprep.subr.mxu0 0.0
        %1628 = vmatpush2.msra.mxu0 0.0
        %1629 = vmatprep.subr.mxu0 0.0
        %1630 = vmatpush2.msra.mxu0 0.0
        %1631 = vmatprep.mubr.f32.mxu0 0.0
        %1632 = vmatmul.mubr.f32.gmra.mxu0 %v1556
        %v1633 = vpop.f32.mrf.mxu0
        %v1634 = vadd.f32 0.0, %v1633
        %v1635 = vpop.f32.mrf.mxu0
        %1636 = vmatprep.mubr.f32.mxu0 0.0
        %1637 = vmatmul.mubr.f32.gmra.mxu0 %v1559
        %v1638 = vpop.f32.mrf.mxu0
        %v1639 = vadd.f32 0.0, %v1638
        %v1640 = vpop.f32.mrf.mxu0
        %1641 = vmatprep.mubr.f32.mxu0 0.0
        %1642 = vmatmul.mubr.f32.gmra.mxu0 %v1562
        %v1643 = vpop.f32.mrf.mxu0
        %v1644 = vadd.f32 0.0, %v1643
        %v1645 = vpop.f32.mrf.mxu0
        %1646 = vmatprep.mubr.f32.mxu0 0.0
        %1647 = vmatmul.mubr.f32.gmra.mxu0 %v1565
        %v1648 = vpop.f32.mrf.mxu0
        %v1649 = vadd.f32 0.0, %v1648
        %v1650 = vpop.f32.mrf.mxu0
        %1651 = vdwg.mxu0
        %v1653 = vsel %vm724, %v1425, 0
        %v1656 = vsel %vm724, %v1430, 0
        %v1659 = vsel %vm724, %v1435, 0
        %v1662 = vsel %vm724, %v1440, 0
        %1664 = vmatprep.subr.mxu0 0.0
        %1665 = vmatpush1.msra.mxu0 0.0
        %1666 = vmatprep.subr.mxu0 0.0
        %1667 = vmatpush1.msra.mxu0 0.0
        %1668 = vmatprep.subr.mxu0 0.0
        %1669 = vmatpush1.msra.mxu0 0.0
        %1670 = vmatprep.subr.mxu0 0.0
        %1671 = vmatpush1.msra.mxu0 0.0
        %1672 = vmatprep.subr.mxu0 0.0
        %1673 = vmatpush1.msra.mxu0 0.0
        %1674 = vmatprep.subr.mxu0 0.0
        %1675 = vmatpush1.msra.mxu0 0.0
        %1676 = vmatprep.subr.mxu0 0.0
        %1677 = vmatpush1.msra.mxu0 0.0
        %1678 = vmatprep.subr.mxu0 0.0
        %1679 = vmatpush1.msra.mxu0 0.0
        %1680 = vmatprep.subr.mxu0 0.0
        %1681 = vmatpush1.msra.mxu0 0.0
        %1682 = vmatprep.subr.mxu0 0.0
        %1683 = vmatpush1.msra.mxu0 0.0
        %1684 = vmatprep.subr.mxu0 0.0
        %1685 = vmatpush1.msra.mxu0 0.0
        %1686 = vmatprep.subr.mxu0 0.0
        %1687 = vmatpush1.msra.mxu0 0.0
        %1688 = vmatprep.subr.mxu0 0.0
        %1689 = vmatpush1.msra.mxu0 0.0
        %1690 = vmatprep.subr.mxu0 0.0
        %1691 = vmatpush1.msra.mxu0 0.0
        %1692 = vmatprep.subr.mxu0 0.0
        %1693 = vmatpush1.msra.mxu0 %v1445
        %1694 = vmatprep.subr.mxu0 0.0
        %1695 = vmatpush1.msra.mxu0 %v1444
        %1696 = vmatprep.subr.mxu0 0.0
        %1697 = vmatpush2.msra.mxu0 0.0
        %1698 = vmatprep.subr.mxu0 0.0
        %1699 = vmatpush2.msra.mxu0 0.0
        %1700 = vmatprep.subr.mxu0 0.0
        %1701 = vmatpush2.msra.mxu0 0.0
        %1702 = vmatprep.subr.mxu0 0.0
        %1703 = vmatpush2.msra.mxu0 0.0
        %1704 = vmatprep.subr.mxu0 0.0
        %1705 = vmatpush2.msra.mxu0 0.0
        %1706 = vmatprep.subr.mxu0 0.0
        %1707 = vmatpush2.msra.mxu0 0.0
        %1708 = vmatprep.subr.mxu0 0.0
        %1709 = vmatpush2.msra.mxu0 0.0
        %1710 = vmatprep.subr.mxu0 0.0
        %1711 = vmatpush2.msra.mxu0 0.0
        %1712 = vmatprep.subr.mxu0 0.0
        %1713 = vmatpush2.msra.mxu0 0.0
        %1714 = vmatprep.subr.mxu0 0.0
        %1715 = vmatpush2.msra.mxu0 0.0
        %1716 = vmatprep.subr.mxu0 0.0
        %1717 = vmatpush2.msra.mxu0 0.0
        %1718 = vmatprep.subr.mxu0 0.0
        %1719 = vmatpush2.msra.mxu0 0.0
        %1720 = vmatprep.subr.mxu0 0.0
        %1721 = vmatpush2.msra.mxu0 0.0
        %1722 = vmatprep.subr.mxu0 0.0
        %1723 = vmatpush2.msra.mxu0 0.0
        %1724 = vmatprep.subr.mxu0 0.0
        %1725 = vmatpush2.msra.mxu0 0.0
        %1726 = vmatprep.subr.mxu0 0.0
        %1727 = vmatpush2.msra.mxu0 0.0
        %1728 = vmatprep.mubr.f32.mxu0 0.0
        %1729 = vmatmul.mubr.f32.gmra.mxu0 %v1653
        %v1730 = vpop.f32.mrf.mxu0
        %v1731 = vadd.f32 %v1634, %v1730
        %v1732 = vpop.f32.mrf.mxu0
        %1733 = vmatprep.mubr.f32.mxu0 0.0
        %1734 = vmatmul.mubr.f32.gmra.mxu0 %v1656
        %v1735 = vpop.f32.mrf.mxu0
        %v1736 = vadd.f32 %v1639, %v1735
        %v1737 = vpop.f32.mrf.mxu0
        %1738 = vmatprep.mubr.f32.mxu0 0.0
        %1739 = vmatmul.mubr.f32.gmra.mxu0 %v1659
        %v1740 = vpop.f32.mrf.mxu0
        %v1741 = vadd.f32 %v1644, %v1740
        %v1742 = vpop.f32.mrf.mxu0
        %1743 = vmatprep.mubr.f32.mxu0 0.0
        %1744 = vmatmul.mubr.f32.gmra.mxu0 %v1662
        %v1745 = vpop.f32.mrf.mxu0
        %v1746 = vadd.f32 %v1649, %v1745
        %v1747 = vpop.f32.mrf.mxu0
        %1748 = vdwg.mxu0
        %s1749 = scalar_lea.vmem %s2, 320
        %v1750 = vld [vmem:[%s1749] sm:$0xff]
        %v1751 = vld [vmem:[%s1749 + $0x8] sm:$0xff]
        %v1752 = vld [vmem:[%s1749 + $0x10] sm:$0xff]
        %v1753 = vld [vmem:[%s1749 + $0x18] sm:$0xff]
        %v1754 = vld [vmem:[%s1749 + $0x20] sm:$0xff]
        %v1755 = vld [vmem:[%s1749 + $0x28] sm:$0xff]
        %v1756 = vld [vmem:[%s1749 + $0x30] sm:$0xff]
        %v1757 = vld [vmem:[%s1749 + $0x38] sm:$0xff]
        %v1759 = vsel %vm724, %v1751, 0
        %v1762 = vsel %vm724, %v1753, 0
        %v1765 = vsel %vm724, %v1755, 0
        %v1768 = vsel %vm724, %v1757, 0
        %1770 = vmatprep.subr.mxu0 0.0
        %1771 = vmatpush1.msra.mxu0 %v713
        %1772 = vmatprep.subr.mxu0 0.0
        %1773 = vmatpush1.msra.mxu0 %v712
        %1774 = vmatprep.subr.mxu0 0.0
        %1775 = vmatpush1.msra.mxu0 %v711
        %1776 = vmatprep.subr.mxu0 0.0
        %1777 = vmatpush1.msra.mxu0 %v710
        %1778 = vmatprep.subr.mxu0 0.0
        %1779 = vmatpush1.msra.mxu0 %v709
        %1780 = vmatprep.subr.mxu0 0.0
        %1781 = vmatpush1.msra.mxu0 %v708
        %1782 = vmatprep.subr.mxu0 0.0
        %1783 = vmatpush1.msra.mxu0 %v707
        %1784 = vmatprep.subr.mxu0 0.0
        %1785 = vmatpush1.msra.mxu0 %v706
        %1786 = vmatprep.subr.mxu0 0.0
        %1787 = vmatpush1.msra.mxu0 %v705
        %1788 = vmatprep.subr.mxu0 0.0
        %1789 = vmatpush1.msra.mxu0 %v704
        %1790 = vmatprep.subr.mxu0 0.0
        %1791 = vmatpush1.msra.mxu0 %v703
        %1792 = vmatprep.subr.mxu0 0.0
        %1793 = vmatpush1.msra.mxu0 %v702
        %1794 = vmatprep.subr.mxu0 0.0
        %1795 = vmatpush1.msra.mxu0 %v701
        %1796 = vmatprep.subr.mxu0 0.0
        %1797 = vmatpush1.msra.mxu0 %v700
        %1798 = vmatprep.subr.mxu0 0.0
        %1799 = vmatpush1.msra.mxu0 %v699
        %1800 = vmatprep.subr.mxu0 0.0
        %1801 = vmatpush1.msra.mxu0 %v698
        %1802 = vmatprep.subr.mxu0 0.0
        %1803 = vmatpush2.msra.mxu0 0.0
        %1804 = vmatprep.subr.mxu0 0.0
        %1805 = vmatpush2.msra.mxu0 0.0
        %1806 = vmatprep.subr.mxu0 0.0
        %1807 = vmatpush2.msra.mxu0 0.0
        %1808 = vmatprep.subr.mxu0 0.0
        %1809 = vmatpush2.msra.mxu0 0.0
        %1810 = vmatprep.subr.mxu0 0.0
        %1811 = vmatpush2.msra.mxu0 0.0
        %1812 = vmatprep.subr.mxu0 0.0
        %1813 = vmatpush2.msra.mxu0 0.0
        %1814 = vmatprep.subr.mxu0 0.0
        %1815 = vmatpush2.msra.mxu0 0.0
        %1816 = vmatprep.subr.mxu0 0.0
        %1817 = vmatpush2.msra.mxu0 0.0
        %1818 = vmatprep.subr.mxu0 0.0
        %1819 = vmatpush2.msra.mxu0 0.0
        %1820 = vmatprep.subr.mxu0 0.0
        %1821 = vmatpush2.msra.mxu0 0.0
        %1822 = vmatprep.subr.mxu0 0.0
        %1823 = vmatpush2.msra.mxu0 0.0
        %1824 = vmatprep.subr.mxu0 0.0
        %1825 = vmatpush2.msra.mxu0 0.0
        %1826 = vmatprep.subr.mxu0 0.0
        %1827 = vmatpush2.msra.mxu0 0.0
        %1828 = vmatprep.subr.mxu0 0.0
        %1829 = vmatpush2.msra.mxu0 0.0
        %1830 = vmatprep.subr.mxu0 0.0
        %1831 = vmatpush2.msra.mxu0 %v715
        %1832 = vmatprep.subr.mxu0 0.0
        %1833 = vmatpush2.msra.mxu0 %v714
        %1834 = vmatprep.mubr.f32.mxu0 %v1759
        %1835 = vmatmul.mubr.f32.gmra.mxu0 %v1750
        %v1836 = vpop.f32.mrf.mxu0
        %v1837 = vadd.f32 0.0, %v1836
        %v1838 = vpop.f32.mrf.mxu0
        %1839 = vmatprep.mubr.f32.mxu0 %v1762
        %1840 = vmatmul.mubr.f32.gmra.mxu0 %v1752
        %v1841 = vpop.f32.mrf.mxu0
        %v1842 = vadd.f32 0.0, %v1841
        %v1843 = vpop.f32.mrf.mxu0
        %1844 = vmatprep.mubr.f32.mxu0 %v1765
        %1845 = vmatmul.mubr.f32.gmra.mxu0 %v1754
        %v1846 = vpop.f32.mrf.mxu0
        %v1847 = vadd.f32 0.0, %v1846
        %v1848 = vpop.f32.mrf.mxu0
        %1849 = vmatprep.mubr.f32.mxu0 %v1768
        %1850 = vmatmul.mubr.f32.gmra.mxu0 %v1756
        %v1851 = vpop.f32.mrf.mxu0
        %v1852 = vadd.f32 0.0, %v1851
        %v1853 = vpop.f32.mrf.mxu0
        %1854 = vdwg.mxu0
        %s1855 = scalar_lea.vmem %s3, 80
        %v1856 = vld [vmem:[%s1855] sm:$0xff]
        %v1857 = vld [vmem:[%s1855 + $0x8] sm:$0xff]
        %v1859 = vsel %vm724, %v1837, 0
        %v1862 = vsel %vm724, %v1842, 0
        %v1865 = vsel %vm724, %v1847, 0
        %v1868 = vsel %vm724, %v1852, 0
        %1870 = vmatprep.subr.mxu0 0.0
        %1871 = vmatpush1.msra.mxu0 0.0
        %1872 = vmatprep.subr.mxu0 0.0
        %1873 = vmatpush1.msra.mxu0 0.0
        %1874 = vmatprep.subr.mxu0 0.0
        %1875 = vmatpush1.msra.mxu0 0.0
        %1876 = vmatprep.subr.mxu0 0.0
        %1877 = vmatpush1.msra.mxu0 0.0
        %1878 = vmatprep.subr.mxu0 0.0
        %1879 = vmatpush1.msra.mxu0 0.0
        %1880 = vmatprep.subr.mxu0 0.0
        %1881 = vmatpush1.msra.mxu0 0.0
        %1882 = vmatprep.subr.mxu0 0.0
        %1883 = vmatpush1.msra.mxu0 0.0
        %1884 = vmatprep.subr.mxu0 0.0
        %1885 = vmatpush1.msra.mxu0 0.0
        %1886 = vmatprep.subr.mxu0 0.0
        %1887 = vmatpush1.msra.mxu0 0.0
        %1888 = vmatprep.subr.mxu0 0.0
        %1889 = vmatpush1.msra.mxu0 0.0
        %1890 = vmatprep.subr.mxu0 0.0
        %1891 = vmatpush1.msra.mxu0 0.0
        %1892 = vmatprep.subr.mxu0 0.0
        %1893 = vmatpush1.msra.mxu0 0.0
        %1894 = vmatprep.subr.mxu0 0.0
        %1895 = vmatpush1.msra.mxu0 0.0
        %1896 = vmatprep.subr.mxu0 0.0
        %1897 = vmatpush1.msra.mxu0 0.0
        %1898 = vmatprep.subr.mxu0 0.0
        %1899 = vmatpush1.msra.mxu0 %v1857
        %1900 = vmatprep.subr.mxu0 0.0
        %1901 = vmatpush1.msra.mxu0 %v1856
        %1902 = vmatprep.subr.mxu0 0.0
        %1903 = vmatpush2.msra.mxu0 0.0
        %1904 = vmatprep.subr.mxu0 0.0
        %1905 = vmatpush2.msra.mxu0 0.0
        %1906 = vmatprep.subr.mxu0 0.0
        %1907 = vmatpush2.msra.mxu0 0.0
        %1908 = vmatprep.subr.mxu0 0.0
        %1909 = vmatpush2.msra.mxu0 0.0
        %1910 = vmatprep.subr.mxu0 0.0
        %1911 = vmatpush2.msra.mxu0 0.0
        %1912 = vmatprep.subr.mxu0 0.0
        %1913 = vmatpush2.msra.mxu0 0.0
        %1914 = vmatprep.subr.mxu0 0.0
        %1915 = vmatpush2.msra.mxu0 0.0
        %1916 = vmatprep.subr.mxu0 0.0
        %1917 = vmatpush2.msra.mxu0 0.0
        %1918 = vmatprep.subr.mxu0 0.0
        %1919 = vmatpush2.msra.mxu0 0.0
        %1920 = vmatprep.subr.mxu0 0.0
        %1921 = vmatpush2.msra.mxu0 0.0
        %1922 = vmatprep.subr.mxu0 0.0
        %1923 = vmatpush2.msra.mxu0 0.0
        %1924 = vmatprep.subr.mxu0 0.0
        %1925 = vmatpush2.msra.mxu0 0.0
        %1926 = vmatprep.subr.mxu0 0.0
        %1927 = vmatpush2.msra.mxu0 0.0
        %1928 = vmatprep.subr.mxu0 0.0
        %1929 = vmatpush2.msra.mxu0 0.0
        %1930 = vmatprep.subr.mxu0 0.0
        %1931 = vmatpush2.msra.mxu0 0.0
        %1932 = vmatprep.subr.mxu0 0.0
        %1933 = vmatpush2.msra.mxu0 0.0
        %1934 = vmatprep.mubr.f32.mxu0 0.0
        %1935 = vmatmul.mubr.f32.gmra.mxu0 %v1859
        %v1936 = vpop.f32.mrf.mxu0
        %v1937 = vadd.f32 0.0, %v1936
        %v1938 = vpop.f32.mrf.mxu0
        %1939 = vmatprep.mubr.f32.mxu0 0.0
        %1940 = vmatmul.mubr.f32.gmra.mxu0 %v1862
        %v1941 = vpop.f32.mrf.mxu0
        %v1942 = vadd.f32 0.0, %v1941
        %v1943 = vpop.f32.mrf.mxu0
        %1944 = vmatprep.mubr.f32.mxu0 0.0
        %1945 = vmatmul.mubr.f32.gmra.mxu0 %v1865
        %v1946 = vpop.f32.mrf.mxu0
        %v1947 = vadd.f32 0.0, %v1946
        %v1948 = vpop.f32.mrf.mxu0
        %1949 = vmatprep.mubr.f32.mxu0 0.0
        %1950 = vmatmul.mubr.f32.gmra.mxu0 %v1868
        %v1951 = vpop.f32.mrf.mxu0
        %v1952 = vadd.f32 0.0, %v1951
        %v1953 = vpop.f32.mrf.mxu0
        %1954 = vdwg.mxu0
        %v1955 = vadd.f32 %v1731, %v1937
        %v1956 = vadd.f32 %v1736, %v1942
        %v1957 = vadd.f32 %v1741, %v1947
        %v1958 = vadd.f32 %v1746, %v1952
        %s1959 = scalar_lea.vmem %s2, 384
        %v1960 = vld [vmem:[%s1959] sm:$0xff]
        %v1961 = vld [vmem:[%s1959 + $0x8] sm:$0xff]
        %v1962 = vld [vmem:[%s1959 + $0x10] sm:$0xff]
        %v1963 = vld [vmem:[%s1959 + $0x18] sm:$0xff]
        %v1964 = vld [vmem:[%s1959 + $0x20] sm:$0xff]
        %v1965 = vld [vmem:[%s1959 + $0x28] sm:$0xff]
        %v1966 = vld [vmem:[%s1959 + $0x30] sm:$0xff]
        %v1967 = vld [vmem:[%s1959 + $0x38] sm:$0xff]
        %v1969 = vsel %vm724, %v1961, 0
        %v1972 = vsel %vm724, %v1963, 0
        %v1975 = vsel %vm724, %v1965, 0
        %v1978 = vsel %vm724, %v1967, 0
        %1980 = vmatprep.subr.mxu0 0.0
        %1981 = vmatpush1.msra.mxu0 %v713
        %1982 = vmatprep.subr.mxu0 0.0
        %1983 = vmatpush1.msra.mxu0 %v712
        %1984 = vmatprep.subr.mxu0 0.0
        %1985 = vmatpush1.msra.mxu0 %v711
        %1986 = vmatprep.subr.mxu0 0.0
        %1987 = vmatpush1.msra.mxu0 %v710
        %1988 = vmatprep.subr.mxu0 0.0
        %1989 = vmatpush1.msra.mxu0 %v709
        %1990 = vmatprep.subr.mxu0 0.0
        %1991 = vmatpush1.msra.mxu0 %v708
        %1992 = vmatprep.subr.mxu0 0.0
        %1993 = vmatpush1.msra.mxu0 %v707
        %1994 = vmatprep.subr.mxu0 0.0
        %1995 = vmatpush1.msra.mxu0 %v706
        %1996 = vmatprep.subr.mxu0 0.0
        %1997 = vmatpush1.msra.mxu0 %v705
        %1998 = vmatprep.subr.mxu0 0.0
        %1999 = vmatpush1.msra.mxu0 %v704
        %2000 = vmatprep.subr.mxu0 0.0
        %2001 = vmatpush1.msra.mxu0 %v703
        %2002 = vmatprep.subr.mxu0 0.0
        %2003 = vmatpush1.msra.mxu0 %v702
        %2004 = vmatprep.subr.mxu0 0.0
        %2005 = vmatpush1.msra.mxu0 %v701
        %2006 = vmatprep.subr.mxu0 0.0
        %2007 = vmatpush1.msra.mxu0 %v700
        %2008 = vmatprep.subr.mxu0 0.0
        %2009 = vmatpush1.msra.mxu0 %v699
        %2010 = vmatprep.subr.mxu0 0.0
        %2011 = vmatpush1.msra.mxu0 %v698
        %2012 = vmatprep.subr.mxu0 0.0
        %2013 = vmatpush2.msra.mxu0 0.0
        %2014 = vmatprep.subr.mxu0 0.0
        %2015 = vmatpush2.msra.mxu0 0.0
        %2016 = vmatprep.subr.mxu0 0.0
        %2017 = vmatpush2.msra.mxu0 0.0
        %2018 = vmatprep.subr.mxu0 0.0
        %2019 = vmatpush2.msra.mxu0 0.0
        %2020 = vmatprep.subr.mxu0 0.0
        %2021 = vmatpush2.msra.mxu0 0.0
        %2022 = vmatprep.subr.mxu0 0.0
        %2023 = vmatpush2.msra.mxu0 0.0
        %2024 = vmatprep.subr.mxu0 0.0
        %2025 = vmatpush2.msra.mxu0 0.0
        %2026 = vmatprep.subr.mxu0 0.0
        %2027 = vmatpush2.msra.mxu0 0.0
        %2028 = vmatprep.subr.mxu0 0.0
        %2029 = vmatpush2.msra.mxu0 0.0
        %2030 = vmatprep.subr.mxu0 0.0
        %2031 = vmatpush2.msra.mxu0 0.0
        %2032 = vmatprep.subr.mxu0 0.0
        %2033 = vmatpush2.msra.mxu0 0.0
        %2034 = vmatprep.subr.mxu0 0.0
        %2035 = vmatpush2.msra.mxu0 0.0
        %2036 = vmatprep.subr.mxu0 0.0
        %2037 = vmatpush2.msra.mxu0 0.0
        %2038 = vmatprep.subr.mxu0 0.0
        %2039 = vmatpush2.msra.mxu0 0.0
        %2040 = vmatprep.subr.mxu0 0.0
        %2041 = vmatpush2.msra.mxu0 %v715
        %2042 = vmatprep.subr.mxu0 0.0
        %2043 = vmatpush2.msra.mxu0 %v714
        %2044 = vmatprep.mubr.f32.mxu0 %v1969
        %2045 = vmatmul.mubr.f32.gmra.mxu0 %v1960
        %v2046 = vpop.f32.mrf.mxu0
        %v2047 = vadd.f32 0.0, %v2046
        %v2048 = vpop.f32.mrf.mxu0
        %2049 = vmatprep.mubr.f32.mxu0 %v1972
        %2050 = vmatmul.mubr.f32.gmra.mxu0 %v1962
        %v2051 = vpop.f32.mrf.mxu0
        %v2052 = vadd.f32 0.0, %v2051
        %v2053 = vpop.f32.mrf.mxu0
        %2054 = vmatprep.mubr.f32.mxu0 %v1975
        %2055 = vmatmul.mubr.f32.gmra.mxu0 %v1964
        %v2056 = vpop.f32.mrf.mxu0
        %v2057 = vadd.f32 0.0, %v2056
        %v2058 = vpop.f32.mrf.mxu0
        %2059 = vmatprep.mubr.f32.mxu0 %v1978
        %2060 = vmatmul.mubr.f32.gmra.mxu0 %v1966
        %v2061 = vpop.f32.mrf.mxu0
        %v2062 = vadd.f32 0.0, %v2061
        %v2063 = vpop.f32.mrf.mxu0
        %2064 = vdwg.mxu0
        %s2065 = scalar_lea.vmem %s3, 96
        %v2066 = vld [vmem:[%s2065] sm:$0xff]
        %v2067 = vld [vmem:[%s2065 + $0x8] sm:$0xff]
        %s2068 = scalar_lea.vmem %s2, 448
        %v2069 = vld [vmem:[%s2068] sm:$0xff]
        %v2070 = vld [vmem:[%s2068 + $0x8] sm:$0xff]
        %v2071 = vld [vmem:[%s2068 + $0x10] sm:$0xff]
        %v2072 = vld [vmem:[%s2068 + $0x18] sm:$0xff]
        %v2073 = vld [vmem:[%s2068 + $0x20] sm:$0xff]
        %v2074 = vld [vmem:[%s2068 + $0x28] sm:$0xff]
        %v2075 = vld [vmem:[%s2068 + $0x30] sm:$0xff]
        %v2076 = vld [vmem:[%s2068 + $0x38] sm:$0xff]
        %v2078 = vsel %vm724, %v2070, 0
        %v2081 = vsel %vm724, %v2072, 0
        %v2084 = vsel %vm724, %v2074, 0
        %v2087 = vsel %vm724, %v2076, 0
        %2089 = vmatprep.subr.mxu0 0.0
        %2090 = vmatpush1.msra.mxu0 %v713
        %2091 = vmatprep.subr.mxu0 0.0
        %2092 = vmatpush1.msra.mxu0 %v712
        %2093 = vmatprep.subr.mxu0 0.0
        %2094 = vmatpush1.msra.mxu0 %v711
        %2095 = vmatprep.subr.mxu0 0.0
        %2096 = vmatpush1.msra.mxu0 %v710
        %2097 = vmatprep.subr.mxu0 0.0
        %2098 = vmatpush1.msra.mxu0 %v709
        %2099 = vmatprep.subr.mxu0 0.0
        %2100 = vmatpush1.msra.mxu0 %v708
        %2101 = vmatprep.subr.mxu0 0.0
        %2102 = vmatpush1.msra.mxu0 %v707
        %2103 = vmatprep.subr.mxu0 0.0
        %2104 = vmatpush1.msra.mxu0 %v706
        %2105 = vmatprep.subr.mxu0 0.0
        %2106 = vmatpush1.msra.mxu0 %v705
        %2107 = vmatprep.subr.mxu0 0.0
        %2108 = vmatpush1.msra.mxu0 %v704
        %2109 = vmatprep.subr.mxu0 0.0
        %2110 = vmatpush1.msra.mxu0 %v703
        %2111 = vmatprep.subr.mxu0 0.0
        %2112 = vmatpush1.msra.mxu0 %v702
        %2113 = vmatprep.subr.mxu0 0.0
        %2114 = vmatpush1.msra.mxu0 %v701
        %2115 = vmatprep.subr.mxu0 0.0
        %2116 = vmatpush1.msra.mxu0 %v700
        %2117 = vmatprep.subr.mxu0 0.0
        %2118 = vmatpush1.msra.mxu0 %v699
        %2119 = vmatprep.subr.mxu0 0.0
        %2120 = vmatpush1.msra.mxu0 %v698
        %2121 = vmatprep.subr.mxu0 0.0
        %2122 = vmatpush2.msra.mxu0 0.0
        %2123 = vmatprep.subr.mxu0 0.0
        %2124 = vmatpush2.msra.mxu0 0.0
        %2125 = vmatprep.subr.mxu0 0.0
        %2126 = vmatpush2.msra.mxu0 0.0
        %2127 = vmatprep.subr.mxu0 0.0
        %2128 = vmatpush2.msra.mxu0 0.0
        %2129 = vmatprep.subr.mxu0 0.0
        %2130 = vmatpush2.msra.mxu0 0.0
        %2131 = vmatprep.subr.mxu0 0.0
        %2132 = vmatpush2.msra.mxu0 0.0
        %2133 = vmatprep.subr.mxu0 0.0
        %2134 = vmatpush2.msra.mxu0 0.0
        %2135 = vmatprep.subr.mxu0 0.0
        %2136 = vmatpush2.msra.mxu0 0.0
        %2137 = vmatprep.subr.mxu0 0.0
        %2138 = vmatpush2.msra.mxu0 0.0
        %2139 = vmatprep.subr.mxu0 0.0
        %2140 = vmatpush2.msra.mxu0 0.0
        %2141 = vmatprep.subr.mxu0 0.0
        %2142 = vmatpush2.msra.mxu0 0.0
        %2143 = vmatprep.subr.mxu0 0.0
        %2144 = vmatpush2.msra.mxu0 0.0
        %2145 = vmatprep.subr.mxu0 0.0
        %2146 = vmatpush2.msra.mxu0 0.0
        %2147 = vmatprep.subr.mxu0 0.0
        %2148 = vmatpush2.msra.mxu0 0.0
        %2149 = vmatprep.subr.mxu0 0.0
        %2150 = vmatpush2.msra.mxu0 %v715
        %2151 = vmatprep.subr.mxu0 0.0
        %2152 = vmatpush2.msra.mxu0 %v714
        %2153 = vmatprep.mubr.f32.mxu0 %v2078
        %2154 = vmatmul.mubr.f32.gmra.mxu0 %v2069
        %v2155 = vpop.f32.mrf.mxu0
        %v2156 = vadd.f32 0.0, %v2155
        %v2157 = vpop.f32.mrf.mxu0
        %2158 = vmatprep.mubr.f32.mxu0 %v2081
        %2159 = vmatmul.mubr.f32.gmra.mxu0 %v2071
        %v2160 = vpop.f32.mrf.mxu0
        %v2161 = vadd.f32 0.0, %v2160
        %v2162 = vpop.f32.mrf.mxu0
        %2163 = vmatprep.mubr.f32.mxu0 %v2084
        %2164 = vmatmul.mubr.f32.gmra.mxu0 %v2073
        %v2165 = vpop.f32.mrf.mxu0
        %v2166 = vadd.f32 0.0, %v2165
        %v2167 = vpop.f32.mrf.mxu0
        %2168 = vmatprep.mubr.f32.mxu0 %v2087
        %2169 = vmatmul.mubr.f32.gmra.mxu0 %v2075
        %v2170 = vpop.f32.mrf.mxu0
        %v2171 = vadd.f32 0.0, %v2170
        %v2172 = vpop.f32.mrf.mxu0
        %2173 = vdwg.mxu0
        %s2174 = scalar_lea.vmem %s3, 112
        %v2175 = vld [vmem:[%s2174] sm:$0xff]
        %v2176 = vld [vmem:[%s2174 + $0x8] sm:$0xff]
        %v2178 = vsel %vm724, %v2156, 0
        %v2181 = vsel %vm724, %v2161, 0
        %v2184 = vsel %vm724, %v2166, 0
        %v2187 = vsel %vm724, %v2171, 0
        %2189 = vmatprep.subr.mxu0 0.0
        %2190 = vmatpush1.msra.mxu0 0.0
        %2191 = vmatprep.subr.mxu0 0.0
        %2192 = vmatpush1.msra.mxu0 0.0
        %2193 = vmatprep.subr.mxu0 0.0
        %2194 = vmatpush1.msra.mxu0 0.0
        %2195 = vmatprep.subr.mxu0 0.0
        %2196 = vmatpush1.msra.mxu0 0.0
        %2197 = vmatprep.subr.mxu0 0.0
        %2198 = vmatpush1.msra.mxu0 0.0
        %2199 = vmatprep.subr.mxu0 0.0
        %2200 = vmatpush1.msra.mxu0 0.0
        %2201 = vmatprep.subr.mxu0 0.0
        %2202 = vmatpush1.msra.mxu0 0.0
        %2203 = vmatprep.subr.mxu0 0.0
        %2204 = vmatpush1.msra.mxu0 0.0
        %2205 = vmatprep.subr.mxu0 0.0
        %2206 = vmatpush1.msra.mxu0 0.0
        %2207 = vmatprep.subr.mxu0 0.0
        %2208 = vmatpush1.msra.mxu0 0.0
        %2209 = vmatprep.subr.mxu0 0.0
        %2210 = vmatpush1.msra.mxu0 0.0
        %2211 = vmatprep.subr.mxu0 0.0
        %2212 = vmatpush1.msra.mxu0 0.0
        %2213 = vmatprep.subr.mxu0 0.0
        %2214 = vmatpush1.msra.mxu0 0.0
        %2215 = vmatprep.subr.mxu0 0.0
        %2216 = vmatpush1.msra.mxu0 0.0
        %2217 = vmatprep.subr.mxu0 0.0
        %2218 = vmatpush1.msra.mxu0 %v2176
        %2219 = vmatprep.subr.mxu0 0.0
        %2220 = vmatpush1.msra.mxu0 %v2175
        %2221 = vmatprep.subr.mxu0 0.0
        %2222 = vmatpush2.msra.mxu0 0.0
        %2223 = vmatprep.subr.mxu0 0.0
        %2224 = vmatpush2.msra.mxu0 0.0
        %2225 = vmatprep.subr.mxu0 0.0
        %2226 = vmatpush2.msra.mxu0 0.0
        %2227 = vmatprep.subr.mxu0 0.0
        %2228 = vmatpush2.msra.mxu0 0.0
        %2229 = vmatprep.subr.mxu0 0.0
        %2230 = vmatpush2.msra.mxu0 0.0
        %2231 = vmatprep.subr.mxu0 0.0
        %2232 = vmatpush2.msra.mxu0 0.0
        %2233 = vmatprep.subr.mxu0 0.0
        %2234 = vmatpush2.msra.mxu0 0.0
        %2235 = vmatprep.subr.mxu0 0.0
        %2236 = vmatpush2.msra.mxu0 0.0
        %2237 = vmatprep.subr.mxu0 0.0
        %2238 = vmatpush2.msra.mxu0 0.0
        %2239 = vmatprep.subr.mxu0 0.0
        %2240 = vmatpush2.msra.mxu0 0.0
        %2241 = vmatprep.subr.mxu0 0.0
        %2242 = vmatpush2.msra.mxu0 0.0
        %2243 = vmatprep.subr.mxu0 0.0
        %2244 = vmatpush2.msra.mxu0 0.0
        %2245 = vmatprep.subr.mxu0 0.0
        %2246 = vmatpush2.msra.mxu0 0.0
        %2247 = vmatprep.subr.mxu0 0.0
        %2248 = vmatpush2.msra.mxu0 0.0
        %2249 = vmatprep.subr.mxu0 0.0
        %2250 = vmatpush2.msra.mxu0 0.0
        %2251 = vmatprep.subr.mxu0 0.0
        %2252 = vmatpush2.msra.mxu0 0.0
        %2253 = vmatprep.mubr.f32.mxu0 0.0
        %2254 = vmatmul.mubr.f32.gmra.mxu0 %v2178
        %v2255 = vpop.f32.mrf.mxu0
        %v2256 = vadd.f32 0.0, %v2255
        %v2257 = vpop.f32.mrf.mxu0
        %2258 = vmatprep.mubr.f32.mxu0 0.0
        %2259 = vmatmul.mubr.f32.gmra.mxu0 %v2181
        %v2260 = vpop.f32.mrf.mxu0
        %v2261 = vadd.f32 0.0, %v2260
        %v2262 = vpop.f32.mrf.mxu0
        %2263 = vmatprep.mubr.f32.mxu0 0.0
        %2264 = vmatmul.mubr.f32.gmra.mxu0 %v2184
        %v2265 = vpop.f32.mrf.mxu0
        %v2266 = vadd.f32 0.0, %v2265
        %v2267 = vpop.f32.mrf.mxu0
        %2268 = vmatprep.mubr.f32.mxu0 0.0
        %2269 = vmatmul.mubr.f32.gmra.mxu0 %v2187
        %v2270 = vpop.f32.mrf.mxu0
        %v2271 = vadd.f32 0.0, %v2270
        %v2272 = vpop.f32.mrf.mxu0
        %2273 = vdwg.mxu0
        %v2275 = vsel %vm724, %v2047, 0
        %v2278 = vsel %vm724, %v2052, 0
        %v2281 = vsel %vm724, %v2057, 0
        %v2284 = vsel %vm724, %v2062, 0
        %2286 = vmatprep.subr.mxu0 0.0
        %2287 = vmatpush1.msra.mxu0 0.0
        %2288 = vmatprep.subr.mxu0 0.0
        %2289 = vmatpush1.msra.mxu0 0.0
        %2290 = vmatprep.subr.mxu0 0.0
        %2291 = vmatpush1.msra.mxu0 0.0
        %2292 = vmatprep.subr.mxu0 0.0
        %2293 = vmatpush1.msra.mxu0 0.0
        %2294 = vmatprep.subr.mxu0 0.0
        %2295 = vmatpush1.msra.mxu0 0.0
        %2296 = vmatprep.subr.mxu0 0.0
        %2297 = vmatpush1.msra.mxu0 0.0
        %2298 = vmatprep.subr.mxu0 0.0
        %2299 = vmatpush1.msra.mxu0 0.0
        %2300 = vmatprep.subr.mxu0 0.0
        %2301 = vmatpush1.msra.mxu0 0.0
        %2302 = vmatprep.subr.mxu0 0.0
        %2303 = vmatpush1.msra.mxu0 0.0
        %2304 = vmatprep.subr.mxu0 0.0
        %2305 = vmatpush1.msra.mxu0 0.0
        %2306 = vmatprep.subr.mxu0 0.0
        %2307 = vmatpush1.msra.mxu0 0.0
        %2308 = vmatprep.subr.mxu0 0.0
        %2309 = vmatpush1.msra.mxu0 0.0
        %2310 = vmatprep.subr.mxu0 0.0
        %2311 = vmatpush1.msra.mxu0 0.0
        %2312 = vmatprep.subr.mxu0 0.0
        %2313 = vmatpush1.msra.mxu0 0.0
        %2314 = vmatprep.subr.mxu0 0.0
        %2315 = vmatpush1.msra.mxu0 %v2067
        %2316 = vmatprep.subr.mxu0 0.0
        %2317 = vmatpush1.msra.mxu0 %v2066
        %2318 = vmatprep.subr.mxu0 0.0
        %2319 = vmatpush2.msra.mxu0 0.0
        %2320 = vmatprep.subr.mxu0 0.0
        %2321 = vmatpush2.msra.mxu0 0.0
        %2322 = vmatprep.subr.mxu0 0.0
        %2323 = vmatpush2.msra.mxu0 0.0
        %2324 = vmatprep.subr.mxu0 0.0
        %2325 = vmatpush2.msra.mxu0 0.0
        %2326 = vmatprep.subr.mxu0 0.0
        %2327 = vmatpush2.msra.mxu0 0.0
        %2328 = vmatprep.subr.mxu0 0.0
        %2329 = vmatpush2.msra.mxu0 0.0
        %2330 = vmatprep.subr.mxu0 0.0
        %2331 = vmatpush2.msra.mxu0 0.0
        %2332 = vmatprep.subr.mxu0 0.0
        %2333 = vmatpush2.msra.mxu0 0.0
        %2334 = vmatprep.subr.mxu0 0.0
        %2335 = vmatpush2.msra.mxu0 0.0
        %2336 = vmatprep.subr.mxu0 0.0
        %2337 = vmatpush2.msra.mxu0 0.0
        %2338 = vmatprep.subr.mxu0 0.0
        %2339 = vmatpush2.msra.mxu0 0.0
        %2340 = vmatprep.subr.mxu0 0.0
        %2341 = vmatpush2.msra.mxu0 0.0
        %2342 = vmatprep.subr.mxu0 0.0
        %2343 = vmatpush2.msra.mxu0 0.0
        %2344 = vmatprep.subr.mxu0 0.0
        %2345 = vmatpush2.msra.mxu0 0.0
        %2346 = vmatprep.subr.mxu0 0.0
        %2347 = vmatpush2.msra.mxu0 0.0
        %2348 = vmatprep.subr.mxu0 0.0
        %2349 = vmatpush2.msra.mxu0 0.0
        %2350 = vmatprep.mubr.f32.mxu0 0.0
        %2351 = vmatmul.mubr.f32.gmra.mxu0 %v2275
        %v2352 = vpop.f32.mrf.mxu0
        %v2353 = vadd.f32 %v2256, %v2352
        %v2354 = vpop.f32.mrf.mxu0
        %2355 = vmatprep.mubr.f32.mxu0 0.0
        %2356 = vmatmul.mubr.f32.gmra.mxu0 %v2278
        %v2357 = vpop.f32.mrf.mxu0
        %v2358 = vadd.f32 %v2261, %v2357
        %v2359 = vpop.f32.mrf.mxu0
        %2360 = vmatprep.mubr.f32.mxu0 0.0
        %2361 = vmatmul.mubr.f32.gmra.mxu0 %v2281
        %v2362 = vpop.f32.mrf.mxu0
        %v2363 = vadd.f32 %v2266, %v2362
        %v2364 = vpop.f32.mrf.mxu0
        %2365 = vmatprep.mubr.f32.mxu0 0.0
        %2366 = vmatmul.mubr.f32.gmra.mxu0 %v2284
        %v2367 = vpop.f32.mrf.mxu0
        %v2368 = vadd.f32 %v2271, %v2367
        %v2369 = vpop.f32.mrf.mxu0
        %2370 = vdwg.mxu0
        %s2371 = scalar_lea.vmem %s2, 512
        %v2372 = vld [vmem:[%s2371] sm:$0xff]
        %v2373 = vld [vmem:[%s2371 + $0x8] sm:$0xff]
        %v2374 = vld [vmem:[%s2371 + $0x10] sm:$0xff]
        %v2375 = vld [vmem:[%s2371 + $0x18] sm:$0xff]
        %v2376 = vld [vmem:[%s2371 + $0x20] sm:$0xff]
        %v2377 = vld [vmem:[%s2371 + $0x28] sm:$0xff]
        %v2378 = vld [vmem:[%s2371 + $0x30] sm:$0xff]
        %v2379 = vld [vmem:[%s2371 + $0x38] sm:$0xff]
        %v2381 = vsel %vm724, %v2373, 0
        %v2384 = vsel %vm724, %v2375, 0
        %v2387 = vsel %vm724, %v2377, 0
        %v2390 = vsel %vm724, %v2379, 0
        %2392 = vmatprep.subr.mxu0 0.0
        %2393 = vmatpush1.msra.mxu0 %v713
        %2394 = vmatprep.subr.mxu0 0.0
        %2395 = vmatpush1.msra.mxu0 %v712
        %2396 = vmatprep.subr.mxu0 0.0
        %2397 = vmatpush1.msra.mxu0 %v711
        %2398 = vmatprep.subr.mxu0 0.0
        %2399 = vmatpush1.msra.mxu0 %v710
        %2400 = vmatprep.subr.mxu0 0.0
        %2401 = vmatpush1.msra.mxu0 %v709
        %2402 = vmatprep.subr.mxu0 0.0
        %2403 = vmatpush1.msra.mxu0 %v708
        %2404 = vmatprep.subr.mxu0 0.0
        %2405 = vmatpush1.msra.mxu0 %v707
        %2406 = vmatprep.subr.mxu0 0.0
        %2407 = vmatpush1.msra.mxu0 %v706
        %2408 = vmatprep.subr.mxu0 0.0
        %2409 = vmatpush1.msra.mxu0 %v705
        %2410 = vmatprep.subr.mxu0 0.0
        %2411 = vmatpush1.msra.mxu0 %v704
        %2412 = vmatprep.subr.mxu0 0.0
        %2413 = vmatpush1.msra.mxu0 %v703
        %2414 = vmatprep.subr.mxu0 0.0
        %2415 = vmatpush1.msra.mxu0 %v702
        %2416 = vmatprep.subr.mxu0 0.0
        %2417 = vmatpush1.msra.mxu0 %v701
        %2418 = vmatprep.subr.mxu0 0.0
        %2419 = vmatpush1.msra.mxu0 %v700
        %2420 = vmatprep.subr.mxu0 0.0
        %2421 = vmatpush1.msra.mxu0 %v699
        %2422 = vmatprep.subr.mxu0 0.0
        %2423 = vmatpush1.msra.mxu0 %v698
        %2424 = vmatprep.subr.mxu0 0.0
        %2425 = vmatpush2.msra.mxu0 0.0
        %2426 = vmatprep.subr.mxu0 0.0
        %2427 = vmatpush2.msra.mxu0 0.0
        %2428 = vmatprep.subr.mxu0 0.0
        %2429 = vmatpush2.msra.mxu0 0.0
        %2430 = vmatprep.subr.mxu0 0.0
        %2431 = vmatpush2.msra.mxu0 0.0
        %2432 = vmatprep.subr.mxu0 0.0
        %2433 = vmatpush2.msra.mxu0 0.0
        %2434 = vmatprep.subr.mxu0 0.0
        %2435 = vmatpush2.msra.mxu0 0.0
        %2436 = vmatprep.subr.mxu0 0.0
        %2437 = vmatpush2.msra.mxu0 0.0
        %2438 = vmatprep.subr.mxu0 0.0
        %2439 = vmatpush2.msra.mxu0 0.0
        %2440 = vmatprep.subr.mxu0 0.0
        %2441 = vmatpush2.msra.mxu0 0.0
        %2442 = vmatprep.subr.mxu0 0.0
        %2443 = vmatpush2.msra.mxu0 0.0
        %2444 = vmatprep.subr.mxu0 0.0
        %2445 = vmatpush2.msra.mxu0 0.0
        %2446 = vmatprep.subr.mxu0 0.0
        %2447 = vmatpush2.msra.mxu0 0.0
        %2448 = vmatprep.subr.mxu0 0.0
        %2449 = vmatpush2.msra.mxu0 0.0
        %2450 = vmatprep.subr.mxu0 0.0
        %2451 = vmatpush2.msra.mxu0 0.0
        %2452 = vmatprep.subr.mxu0 0.0
        %2453 = vmatpush2.msra.mxu0 %v715
        %2454 = vmatprep.subr.mxu0 0.0
        %2455 = vmatpush2.msra.mxu0 %v714
        %2456 = vmatprep.mubr.f32.mxu0 %v2381
        %2457 = vmatmul.mubr.f32.gmra.mxu0 %v2372
        %v2458 = vpop.f32.mrf.mxu0
        %v2459 = vadd.f32 0.0, %v2458
        %v2460 = vpop.f32.mrf.mxu0
        %2461 = vmatprep.mubr.f32.mxu0 %v2384
        %2462 = vmatmul.mubr.f32.gmra.mxu0 %v2374
        %v2463 = vpop.f32.mrf.mxu0
        %v2464 = vadd.f32 0.0, %v2463
        %v2465 = vpop.f32.mrf.mxu0
        %2466 = vmatprep.mubr.f32.mxu0 %v2387
        %2467 = vmatmul.mubr.f32.gmra.mxu0 %v2376
        %v2468 = vpop.f32.mrf.mxu0
        %v2469 = vadd.f32 0.0, %v2468
        %v2470 = vpop.f32.mrf.mxu0
        %2471 = vmatprep.mubr.f32.mxu0 %v2390
        %2472 = vmatmul.mubr.f32.gmra.mxu0 %v2378
        %v2473 = vpop.f32.mrf.mxu0
        %v2474 = vadd.f32 0.0, %v2473
        %v2475 = vpop.f32.mrf.mxu0
        %2476 = vdwg.mxu0
        %s2477 = scalar_lea.vmem %s3, 128
        %v2478 = vld [vmem:[%s2477] sm:$0xff]
        %v2479 = vld [vmem:[%s2477 + $0x8] sm:$0xff]
        %v2481 = vsel %vm724, %v2459, 0
        %v2484 = vsel %vm724, %v2464, 0
        %v2487 = vsel %vm724, %v2469, 0
        %v2490 = vsel %vm724, %v2474, 0
        %2492 = vmatprep.subr.mxu0 0.0
        %2493 = vmatpush1.msra.mxu0 0.0
        %2494 = vmatprep.subr.mxu0 0.0
        %2495 = vmatpush1.msra.mxu0 0.0
        %2496 = vmatprep.subr.mxu0 0.0
        %2497 = vmatpush1.msra.mxu0 0.0
        %2498 = vmatprep.subr.mxu0 0.0
        %2499 = vmatpush1.msra.mxu0 0.0
        %2500 = vmatprep.subr.mxu0 0.0
        %2501 = vmatpush1.msra.mxu0 0.0
        %2502 = vmatprep.subr.mxu0 0.0
        %2503 = vmatpush1.msra.mxu0 0.0
        %2504 = vmatprep.subr.mxu0 0.0
        %2505 = vmatpush1.msra.mxu0 0.0
        %2506 = vmatprep.subr.mxu0 0.0
        %2507 = vmatpush1.msra.mxu0 0.0
        %2508 = vmatprep.subr.mxu0 0.0
        %2509 = vmatpush1.msra.mxu0 0.0
        %2510 = vmatprep.subr.mxu0 0.0
        %2511 = vmatpush1.msra.mxu0 0.0
        %2512 = vmatprep.subr.mxu0 0.0
        %2513 = vmatpush1.msra.mxu0 0.0
        %2514 = vmatprep.subr.mxu0 0.0
        %2515 = vmatpush1.msra.mxu0 0.0
        %2516 = vmatprep.subr.mxu0 0.0
        %2517 = vmatpush1.msra.mxu0 0.0
        %2518 = vmatprep.subr.mxu0 0.0
        %2519 = vmatpush1.msra.mxu0 0.0
        %2520 = vmatprep.subr.mxu0 0.0
        %2521 = vmatpush1.msra.mxu0 %v2479
        %2522 = vmatprep.subr.mxu0 0.0
        %2523 = vmatpush1.msra.mxu0 %v2478
        %2524 = vmatprep.subr.mxu0 0.0
        %2525 = vmatpush2.msra.mxu0 0.0
        %2526 = vmatprep.subr.mxu0 0.0
        %2527 = vmatpush2.msra.mxu0 0.0
        %2528 = vmatprep.subr.mxu0 0.0
        %2529 = vmatpush2.msra.mxu0 0.0
        %2530 = vmatprep.subr.mxu0 0.0
        %2531 = vmatpush2.msra.mxu0 0.0
        %2532 = vmatprep.subr.mxu0 0.0
        %2533 = vmatpush2.msra.mxu0 0.0
        %2534 = vmatprep.subr.mxu0 0.0
        %2535 = vmatpush2.msra.mxu0 0.0
        %2536 = vmatprep.subr.mxu0 0.0
        %2537 = vmatpush2.msra.mxu0 0.0
        %2538 = vmatprep.subr.mxu0 0.0
        %2539 = vmatpush2.msra.mxu0 0.0
        %2540 = vmatprep.subr.mxu0 0.0
        %2541 = vmatpush2.msra.mxu0 0.0
        %2542 = vmatprep.subr.mxu0 0.0
        %2543 = vmatpush2.msra.mxu0 0.0
        %2544 = vmatprep.subr.mxu0 0.0
        %2545 = vmatpush2.msra.mxu0 0.0
        %2546 = vmatprep.subr.mxu0 0.0
        %2547 = vmatpush2.msra.mxu0 0.0
        %2548 = vmatprep.subr.mxu0 0.0
        %2549 = vmatpush2.msra.mxu0 0.0
        %2550 = vmatprep.subr.mxu0 0.0
        %2551 = vmatpush2.msra.mxu0 0.0
        %2552 = vmatprep.subr.mxu0 0.0
        %2553 = vmatpush2.msra.mxu0 0.0
        %2554 = vmatprep.subr.mxu0 0.0
        %2555 = vmatpush2.msra.mxu0 0.0
        %2556 = vmatprep.mubr.f32.mxu0 0.0
        %2557 = vmatmul.mubr.f32.gmra.mxu0 %v2481
        %v2558 = vpop.f32.mrf.mxu0
        %v2559 = vadd.f32 0.0, %v2558
        %v2560 = vpop.f32.mrf.mxu0
        %2561 = vmatprep.mubr.f32.mxu0 0.0
        %2562 = vmatmul.mubr.f32.gmra.mxu0 %v2484
        %v2563 = vpop.f32.mrf.mxu0
        %v2564 = vadd.f32 0.0, %v2563
        %v2565 = vpop.f32.mrf.mxu0
        %2566 = vmatprep.mubr.f32.mxu0 0.0
        %2567 = vmatmul.mubr.f32.gmra.mxu0 %v2487
        %v2568 = vpop.f32.mrf.mxu0
        %v2569 = vadd.f32 0.0, %v2568
        %v2570 = vpop.f32.mrf.mxu0
        %2571 = vmatprep.mubr.f32.mxu0 0.0
        %2572 = vmatmul.mubr.f32.gmra.mxu0 %v2490
        %v2573 = vpop.f32.mrf.mxu0
        %v2574 = vadd.f32 0.0, %v2573
        %v2575 = vpop.f32.mrf.mxu0
        %2576 = vdwg.mxu0
        %v2577 = vadd.f32 %v2353, %v2559
        %v2578 = vadd.f32 %v2358, %v2564
        %v2579 = vadd.f32 %v2363, %v2569
        %v2580 = vadd.f32 %v2368, %v2574
        %v2581 = vadd.f32 %v1333, %v1955
        %v2582 = vadd.f32 %v1334, %v1956
        %v2583 = vadd.f32 %v1335, %v1957
        %v2584 = vadd.f32 %v1336, %v1958
        %v2585 = vlaneseq
        %v2586 = vshrl.u32 %v2585, 7
        %v2587 = vsub.s32 0, %v2586
        %v2588 = vrot.slane %v252, %v2587
        %v2589 = vadd.f32 %v2577, %v2588
        %v2590 = vadd.f32 %v2578, %v2588
        %v2591 = vadd.f32 %v2579, %v2588
        %v2592 = vadd.f32 %v2580, %v2588
        %v2593 = vadd.f32 %v2581, %v2589
        %v2594 = vadd.f32 %v2582, %v2590
        %v2595 = vadd.f32 %v2583, %v2591
        %v2596 = vadd.f32 %v2584, %v2592
        %vm2597 = vcmp.ge.f32.partialorder %v2593, 0.0
        %vm2598 = vcmp.ge.f32.partialorder %v2594, 0.0
        %vm2599 = vcmp.ge.f32.partialorder %v2595, 0.0
        %vm2600 = vcmp.ge.f32.partialorder %v2596, 0.0
        %v2601 = vmul.f32 %v2593, 0.02
        %v2602 = vmul.f32 %v2594, 0.02
        %v2603 = vmul.f32 %v2595, 0.02
        %v2604 = vmul.f32 %v2596, 0.02
        %v2605 = vsel %vm2597, %v2593, %v2601
        %v2606 = vsel %vm2598, %v2594, %v2602
        %v2607 = vsel %vm2599, %v2595, %v2603
        %v2608 = vsel %vm2600, %v2596, %v2604
        %v2609 = vlaneseq
        %v2610 = vshrl.u32 %v2609, 7
        %v2611 = vadd.s32 %v2610, 8
        %v2612 = vadd.s32 %v2610, 16
        %v2613 = vadd.s32 %v2610, 24
        %vm2614 = vcmp.lt.s32.totalorder %v2610, 25
        %vm2615 = vcmp.lt.s32.totalorder %v2611, 25
        %vm2616 = vcmp.lt.s32.totalorder %v2612, 25
        %vm2617 = vcmp.lt.s32.totalorder %v2613, 25
        %v2618 = vsel %vm2614, 1, 0
        %v2619 = vsel %vm2615, 1, 0
        %v2620 = vsel %vm2616, 1, 0
        %v2621 = vsel %vm2617, 1, 0
        %v2622 = vcvt.s32.f32 %v2618
        %v2623 = vcvt.s32.f32 %v2619
        %v2624 = vcvt.s32.f32 %v2620
        %v2625 = vcvt.s32.f32 %v2621
        %v2626 = vmul.f32 %v2605, %v2622
        %v2627 = vmul.f32 %v2606, %v2623
        %v2628 = vmul.f32 %v2607, %v2624
        %v2629 = vmul.f32 %v2608, %v2625
        %v2630 = vadd.f32 %v2626, %v2627
        %v2631 = vadd.f32 %v2630, %v2628
        %v2632 = vadd.f32 %v2631, %v2629
        %v2633 = vrot.slane %v2632, 4
        %v2634 = vadd.f32 %v2632, %v2633
        %v2635 = vrot.slane %v2634, 2
        %v2636 = vadd.f32 %v2634, %v2635
        %v2637 = vrot.slane %v2636, 1
        %v2638 = vadd.f32 %v2636, %v2637
        %v2639 = vmul.f32 %v2638, 0.04
        %v2640 = vmul.f32 %v2626, %v2605
        %v2641 = vmul.f32 %v2627, %v2606
        %v2642 = vmul.f32 %v2628, %v2607
        %v2643 = vmul.f32 %v2629, %v2608
        %v2644 = vadd.f32 %v2640, %v2641
        %v2645 = vadd.f32 %v2644, %v2642
        %v2646 = vadd.f32 %v2645, %v2643
        %v2647 = vrot.slane %v2646, 4
        %v2648 = vadd.f32 %v2646, %v2647
        %v2649 = vrot.slane %v2648, 2
        %v2650 = vadd.f32 %v2648, %v2649
        %v2651 = vrot.slane %v2650, 1
        %v2652 = vadd.f32 %v2650, %v2651
        %v2653 = vmul.f32 %v2652, 0.04
        %v2654 = vmul.f32 %v2639, %v2639
        %v2655 = vsub.f32 %v2653, %v2654
        %v2656 = vsub.f32 %v2605, %v2639
        %v2657 = vsub.f32 %v2606, %v2639
        %v2658 = vsub.f32 %v2607, %v2639
        %v2659 = vsub.f32 %v2608, %v2639
        %v2660 = vadd.f32 %v2655, 1e-05
        %v2661 = vrsqrt.pop %v2660
        %v2662 = vmul.f32 %v253, %v2661
        %v2663 = vlaneseq
        %v2664 = vshrl.u32 %v2663, 7
        %v2665 = vsub.s32 0, %v2664
        %v2666 = vrot.slane %v2662, %v2665
        %v2667 = vmul.f32 %v2656, %v2666
        %v2668 = vmul.f32 %v2657, %v2666
        %v2669 = vmul.f32 %v2658, %v2666
        %v2670 = vmul.f32 %v2659, %v2666
        %v2671 = vlaneseq
        %v2672 = vshrl.u32 %v2671, 7
        %v2673 = vsub.s32 0, %v2672
        %v2674 = vrot.slane %v254, %v2673
        %v2675 = vadd.f32 %v2667, %v2674
        %v2676 = vadd.f32 %v2668, %v2674
        %v2677 = vadd.f32 %v2669, %v2674
        %v2678 = vadd.f32 %v2670, %v2674
        %2679 = vst [vmem:[#allocation3] sm:$0xff] %v2675
        %2680 = vst [vmem:[#allocation3 + $0x8] sm:$0xff] %v2676
        %2681 = vst [vmem:[#allocation3 + $0x10] sm:$0xff] %v2677
        %2682 = vst [vmem:[#allocation3 + $0x18] sm:$0xff] %v2678
        %v2683 = vld [vmem:[#allocation3] sm:$0xff]
        %v2684 = vld [vmem:[#allocation3 + $0x8] sm:$0xff]
        %v2685 = vld [vmem:[#allocation3 + $0x10] sm:$0xff]
        %v2686 = vld [vmem:[#allocation3 + $0x18] sm:$0xff]
        %v2687 = vlaneseq
        %v2688 = vand.u32 %v2687, 127
        %vm2689 = vcmp.eq.s32.totalorder %v2688, 0
        %v2690 = vsel %vm2689, 1, 0
        %v2691 = vcvt.s32.f32 %v2690
        %v2692 = vmul.f32 %v2683, %v2691
        %v2693 = vmul.f32 %v2684, %v2691
        %v2694 = vmul.f32 %v2685, %v2691
        %v2695 = vmul.f32 %v2686, %v2691
        %2696 = vadd.xlane.f32.xlu0 %v2692
        %v2697 = vpop.xlane.xlu0 %2696
        %2698 = vadd.xlane.f32.xlu0 %v2693
        %v2699 = vpop.xlane.xlu0 %2698
        %2700 = vadd.xlane.f32.xlu0 %v2694
        %v2701 = vpop.xlane.xlu0 %2700
        %2702 = vadd.xlane.f32.xlu0 %v2695
        %v2703 = vpop.xlane.xlu0 %2702
        %v2704 = vld [vmem:[%s4] sm:$0xff]
        %v2705 = vld [vmem:[%s4 + $0x8] sm:$0xff]
        %v2706 = vld [vmem:[%s4 + $0x10] sm:$0xff]
        %v2707 = vld [vmem:[%s4 + $0x18] sm:$0xff]
        %v2708 = vmul.f32 %v2697, %v2704
        %v2709 = vmul.f32 %v2699, %v2705
        %v2710 = vmul.f32 %v2701, %v2706
        %v2711 = vmul.f32 %v2703, %v2707
        %vm2712 = vcmp.eq.s32.totalorder %v2688, 1
        %v2713 = vsel %vm2712, 1, 0
        %v2714 = vcvt.s32.f32 %v2713
        %v2715 = vmul.f32 %v2683, %v2714
        %v2716 = vmul.f32 %v2684, %v2714
        %v2717 = vmul.f32 %v2685, %v2714
        %v2718 = vmul.f32 %v2686, %v2714
        %2719 = vadd.xlane.f32.xlu0 %v2715
        %v2720 = vpop.xlane.xlu0 %2719
        %2721 = vadd.xlane.f32.xlu0 %v2716
        %v2722 = vpop.xlane.xlu0 %2721
        %2723 = vadd.xlane.f32.xlu0 %v2717
        %v2724 = vpop.xlane.xlu0 %2723
        %2725 = vadd.xlane.f32.xlu0 %v2718
        %v2726 = vpop.xlane.xlu0 %2725
        %s2727 = scalar_lea.vmem %s4, 32
        %v2728 = vld [vmem:[%s2727] sm:$0xff]
        %v2729 = vld [vmem:[%s2727 + $0x8] sm:$0xff]
        %v2730 = vld [vmem:[%s2727 + $0x10] sm:$0xff]
        %v2731 = vld [vmem:[%s2727 + $0x18] sm:$0xff]
        %v2732 = vmul.f32 %v2720, %v2728
        %v2733 = vmul.f32 %v2722, %v2729
        %v2734 = vmul.f32 %v2724, %v2730
        %v2735 = vmul.f32 %v2726, %v2731
        %vm2736 = vcmp.eq.s32.totalorder %v2688, 2
        %v2737 = vsel %vm2736, 1, 0
        %v2738 = vcvt.s32.f32 %v2737
        %v2739 = vmul.f32 %v2683, %v2738
        %v2740 = vmul.f32 %v2684, %v2738
        %v2741 = vmul.f32 %v2685, %v2738
        %v2742 = vmul.f32 %v2686, %v2738
        %2743 = vadd.xlane.f32.xlu0 %v2739
        %v2744 = vpop.xlane.xlu0 %2743
        %2745 = vadd.xlane.f32.xlu0 %v2740
        %v2746 = vpop.xlane.xlu0 %2745
        %2747 = vadd.xlane.f32.xlu0 %v2741
        %v2748 = vpop.xlane.xlu0 %2747
        %2749 = vadd.xlane.f32.xlu0 %v2742
        %v2750 = vpop.xlane.xlu0 %2749
        %s2751 = scalar_lea.vmem %s4, 64
        %v2752 = vld [vmem:[%s2751] sm:$0xff]
        %v2753 = vld [vmem:[%s2751 + $0x8] sm:$0xff]
        %v2754 = vld [vmem:[%s2751 + $0x10] sm:$0xff]
        %v2755 = vld [vmem:[%s2751 + $0x18] sm:$0xff]
        %v2756 = vmul.f32 %v2744, %v2752
        %v2757 = vmul.f32 %v2746, %v2753
        %v2758 = vmul.f32 %v2748, %v2754
        %v2759 = vmul.f32 %v2750, %v2755
        %v2760 = vadd.f32 %v2708, %v2756
        %v2761 = vadd.f32 %v2709, %v2757
        %v2762 = vadd.f32 %v2710, %v2758
        %v2763 = vadd.f32 %v2711, %v2759
        %vm2764 = vcmp.eq.s32.totalorder %v2688, 3
        %v2765 = vsel %vm2764, 1, 0
        %v2766 = vcvt.s32.f32 %v2765
        %v2767 = vmul.f32 %v2683, %v2766
        %v2768 = vmul.f32 %v2684, %v2766
        %v2769 = vmul.f32 %v2685, %v2766
        %v2770 = vmul.f32 %v2686, %v2766
        %2771 = vadd.xlane.f32.xlu0 %v2767
        %v2772 = vpop.xlane.xlu0 %2771
        %2773 = vadd.xlane.f32.xlu0 %v2768
        %v2774 = vpop.xlane.xlu0 %2773
        %2775 = vadd.xlane.f32.xlu0 %v2769
        %v2776 = vpop.xlane.xlu0 %2775
        %2777 = vadd.xlane.f32.xlu0 %v2770
        %v2778 = vpop.xlane.xlu0 %2777
        %s2779 = scalar_lea.vmem %s4, 96
        %v2780 = vld [vmem:[%s2779] sm:$0xff]
        %v2781 = vld [vmem:[%s2779 + $0x8] sm:$0xff]
        %v2782 = vld [vmem:[%s2779 + $0x10] sm:$0xff]
        %v2783 = vld [vmem:[%s2779 + $0x18] sm:$0xff]
        %v2784 = vmul.f32 %v2772, %v2780
        %v2785 = vmul.f32 %v2774, %v2781
        %v2786 = vmul.f32 %v2776, %v2782
        %v2787 = vmul.f32 %v2778, %v2783
        %v2788 = vadd.f32 %v2732, %v2784
        %v2789 = vadd.f32 %v2733, %v2785
        %v2790 = vadd.f32 %v2734, %v2786
        %v2791 = vadd.f32 %v2735, %v2787
        %vm2792 = vcmp.eq.s32.totalorder %v2688, 4
        %v2793 = vsel %vm2792, 1, 0
        %v2794 = vcvt.s32.f32 %v2793
        %v2795 = vmul.f32 %v2683, %v2794
        %v2796 = vmul.f32 %v2684, %v2794
        %v2797 = vmul.f32 %v2685, %v2794
        %v2798 = vmul.f32 %v2686, %v2794
        %2799 = vadd.xlane.f32.xlu0 %v2795
        %v2800 = vpop.xlane.xlu0 %2799
        %2801 = vadd.xlane.f32.xlu0 %v2796
        %v2802 = vpop.xlane.xlu0 %2801
        %2803 = vadd.xlane.f32.xlu0 %v2797
        %v2804 = vpop.xlane.xlu0 %2803
        %2805 = vadd.xlane.f32.xlu0 %v2798
        %v2806 = vpop.xlane.xlu0 %2805
        %s2807 = scalar_lea.vmem %s4, 128
        %v2808 = vld [vmem:[%s2807] sm:$0xff]
        %v2809 = vld [vmem:[%s2807 + $0x8] sm:$0xff]
        %v2810 = vld [vmem:[%s2807 + $0x10] sm:$0xff]
        %v2811 = vld [vmem:[%s2807 + $0x18] sm:$0xff]
        %v2812 = vmul.f32 %v2800, %v2808
        %v2813 = vmul.f32 %v2802, %v2809
        %v2814 = vmul.f32 %v2804, %v2810
        %v2815 = vmul.f32 %v2806, %v2811
        %v2816 = vadd.f32 %v2760, %v2812
        %v2817 = vadd.f32 %v2761, %v2813
        %v2818 = vadd.f32 %v2762, %v2814
        %v2819 = vadd.f32 %v2763, %v2815
        %vm2820 = vcmp.eq.s32.totalorder %v2688, 5
        %v2821 = vsel %vm2820, 1, 0
        %v2822 = vcvt.s32.f32 %v2821
        %v2823 = vmul.f32 %v2683, %v2822
        %v2824 = vmul.f32 %v2684, %v2822
        %v2825 = vmul.f32 %v2685, %v2822
        %v2826 = vmul.f32 %v2686, %v2822
        %2827 = vadd.xlane.f32.xlu0 %v2823
        %v2828 = vpop.xlane.xlu0 %2827
        %2829 = vadd.xlane.f32.xlu0 %v2824
        %v2830 = vpop.xlane.xlu0 %2829
        %2831 = vadd.xlane.f32.xlu0 %v2825
        %v2832 = vpop.xlane.xlu0 %2831
        %2833 = vadd.xlane.f32.xlu0 %v2826
        %v2834 = vpop.xlane.xlu0 %2833
        %s2835 = scalar_lea.vmem %s4, 160
        %v2836 = vld [vmem:[%s2835] sm:$0xff]
        %v2837 = vld [vmem:[%s2835 + $0x8] sm:$0xff]
        %v2838 = vld [vmem:[%s2835 + $0x10] sm:$0xff]
        %v2839 = vld [vmem:[%s2835 + $0x18] sm:$0xff]
        %v2840 = vmul.f32 %v2828, %v2836
        %v2841 = vmul.f32 %v2830, %v2837
        %v2842 = vmul.f32 %v2832, %v2838
        %v2843 = vmul.f32 %v2834, %v2839
        %v2844 = vadd.f32 %v2788, %v2840
        %v2845 = vadd.f32 %v2789, %v2841
        %v2846 = vadd.f32 %v2790, %v2842
        %v2847 = vadd.f32 %v2791, %v2843
        %vm2848 = vcmp.eq.s32.totalorder %v2688, 6
        %v2849 = vsel %vm2848, 1, 0
        %v2850 = vcvt.s32.f32 %v2849
        %v2851 = vmul.f32 %v2683, %v2850
        %v2852 = vmul.f32 %v2684, %v2850
        %v2853 = vmul.f32 %v2685, %v2850
        %v2854 = vmul.f32 %v2686, %v2850
        %2855 = vadd.xlane.f32.xlu0 %v2851
        %v2856 = vpop.xlane.xlu0 %2855
        %2857 = vadd.xlane.f32.xlu0 %v2852
        %v2858 = vpop.xlane.xlu0 %2857
        %2859 = vadd.xlane.f32.xlu0 %v2853
        %v2860 = vpop.xlane.xlu0 %2859
        %2861 = vadd.xlane.f32.xlu0 %v2854
        %v2862 = vpop.xlane.xlu0 %2861
        %s2863 = scalar_lea.vmem %s4, 192
        %v2864 = vld [vmem:[%s2863] sm:$0xff]
        %v2865 = vld [vmem:[%s2863 + $0x8] sm:$0xff]
        %v2866 = vld [vmem:[%s2863 + $0x10] sm:$0xff]
        %v2867 = vld [vmem:[%s2863 + $0x18] sm:$0xff]
        %v2868 = vmul.f32 %v2856, %v2864
        %v2869 = vmul.f32 %v2858, %v2865
        %v2870 = vmul.f32 %v2860, %v2866
        %v2871 = vmul.f32 %v2862, %v2867
        %v2872 = vadd.f32 %v2816, %v2868
        %v2873 = vadd.f32 %v2817, %v2869
        %v2874 = vadd.f32 %v2818, %v2870
        %v2875 = vadd.f32 %v2819, %v2871
        %vm2876 = vcmp.eq.s32.totalorder %v2688, 7
        %v2877 = vsel %vm2876, 1, 0
        %v2878 = vcvt.s32.f32 %v2877
        %v2879 = vmul.f32 %v2683, %v2878
        %v2880 = vmul.f32 %v2684, %v2878
        %v2881 = vmul.f32 %v2685, %v2878
        %v2882 = vmul.f32 %v2686, %v2878
        %2883 = vadd.xlane.f32.xlu0 %v2879
        %v2884 = vpop.xlane.xlu0 %2883
        %2885 = vadd.xlane.f32.xlu0 %v2880
        %v2886 = vpop.xlane.xlu0 %2885
        %2887 = vadd.xlane.f32.xlu0 %v2881
        %v2888 = vpop.xlane.xlu0 %2887
        %2889 = vadd.xlane.f32.xlu0 %v2882
        %v2890 = vpop.xlane.xlu0 %2889
        %s2891 = scalar_lea.vmem %s4, 224
        %v2892 = vld [vmem:[%s2891] sm:$0xff]
        %v2893 = vld [vmem:[%s2891 + $0x8] sm:$0xff]
        %v2894 = vld [vmem:[%s2891 + $0x10] sm:$0xff]
        %v2895 = vld [vmem:[%s2891 + $0x18] sm:$0xff]
        %v2896 = vmul.f32 %v2884, %v2892
        %v2897 = vmul.f32 %v2886, %v2893
        %v2898 = vmul.f32 %v2888, %v2894
        %v2899 = vmul.f32 %v2890, %v2895
        %v2900 = vadd.f32 %v2844, %v2896
        %v2901 = vadd.f32 %v2845, %v2897
        %v2902 = vadd.f32 %v2846, %v2898
        %v2903 = vadd.f32 %v2847, %v2899
        %vm2904 = vcmp.eq.s32.totalorder %v2688, 8
        %v2905 = vsel %vm2904, 1, 0
        %v2906 = vcvt.s32.f32 %v2905
        %v2907 = vmul.f32 %v2683, %v2906
        %v2908 = vmul.f32 %v2684, %v2906
        %v2909 = vmul.f32 %v2685, %v2906
        %v2910 = vmul.f32 %v2686, %v2906
        %2911 = vadd.xlane.f32.xlu0 %v2907
        %v2912 = vpop.xlane.xlu0 %2911
        %2913 = vadd.xlane.f32.xlu0 %v2908
        %v2914 = vpop.xlane.xlu0 %2913
        %2915 = vadd.xlane.f32.xlu0 %v2909
        %v2916 = vpop.xlane.xlu0 %2915
        %2917 = vadd.xlane.f32.xlu0 %v2910
        %v2918 = vpop.xlane.xlu0 %2917
        %s2919 = scalar_lea.vmem %s4, 256
        %v2920 = vld [vmem:[%s2919] sm:$0xff]
        %v2921 = vld [vmem:[%s2919 + $0x8] sm:$0xff]
        %v2922 = vld [vmem:[%s2919 + $0x10] sm:$0xff]
        %v2923 = vld [vmem:[%s2919 + $0x18] sm:$0xff]
        %v2924 = vmul.f32 %v2912, %v2920
        %v2925 = vmul.f32 %v2914, %v2921
        %v2926 = vmul.f32 %v2916, %v2922
        %v2927 = vmul.f32 %v2918, %v2923
        %v2928 = vadd.f32 %v2872, %v2924
        %v2929 = vadd.f32 %v2873, %v2925
        %v2930 = vadd.f32 %v2874, %v2926
        %v2931 = vadd.f32 %v2875, %v2927
        %vm2932 = vcmp.eq.s32.totalorder %v2688, 9
        %v2933 = vsel %vm2932, 1, 0
        %v2934 = vcvt.s32.f32 %v2933
        %v2935 = vmul.f32 %v2683, %v2934
        %v2936 = vmul.f32 %v2684, %v2934
        %v2937 = vmul.f32 %v2685, %v2934
        %v2938 = vmul.f32 %v2686, %v2934
        %2939 = vadd.xlane.f32.xlu0 %v2935
        %v2940 = vpop.xlane.xlu0 %2939
        %2941 = vadd.xlane.f32.xlu0 %v2936
        %v2942 = vpop.xlane.xlu0 %2941
        %2943 = vadd.xlane.f32.xlu0 %v2937
        %v2944 = vpop.xlane.xlu0 %2943
        %2945 = vadd.xlane.f32.xlu0 %v2938
        %v2946 = vpop.xlane.xlu0 %2945
        %s2947 = scalar_lea.vmem %s4, 288
        %v2948 = vld [vmem:[%s2947] sm:$0xff]
        %v2949 = vld [vmem:[%s2947 + $0x8] sm:$0xff]
        %v2950 = vld [vmem:[%s2947 + $0x10] sm:$0xff]
        %v2951 = vld [vmem:[%s2947 + $0x18] sm:$0xff]
        %v2952 = vmul.f32 %v2940, %v2948
        %v2953 = vmul.f32 %v2942, %v2949
        %v2954 = vmul.f32 %v2944, %v2950
        %v2955 = vmul.f32 %v2946, %v2951
        %v2956 = vadd.f32 %v2900, %v2952
        %v2957 = vadd.f32 %v2901, %v2953
        %v2958 = vadd.f32 %v2902, %v2954
        %v2959 = vadd.f32 %v2903, %v2955
        %v2960 = vadd.f32 %v2928, %v2956
        %v2961 = vadd.f32 %v2929, %v2957
        %v2962 = vadd.f32 %v2930, %v2958
        %v2963 = vadd.f32 %v2931, %v2959
        %v2964 = vadd.f32 %v2960, %v2961
        %v2965 = vadd.f32 %v2964, %v2962
        %v2966 = vadd.f32 %v2965, %v2963
        %v2967 = vrot.slane %v2966, 4
        %v2968 = vadd.f32 %v2966, %v2967
        %v2969 = vrot.slane %v2968, 2
        %v2970 = vadd.f32 %v2968, %v2969
        %v2971 = vrot.slane %v2970, 1
        %v2972 = vadd.f32 %v2970, %v2971
        %v2973 = vadd.f32 %v2972, %v255
        %v2974 = vsub.f32 0.0, %v2973
        %v2975 = vmul.f32 %v2974, 1.442695
        %v2976 = vpow.pop %v2975
        %v2977 = vadd.f32 %v2976, 1.0
        %v2978 = vrcp.pop %v2977
        %v2979 = vmul.f32 1.0, %v2978
        %2980 = vst [vmem:[%s243] sm:$0x1] %v2979
        %s2981 = sand.u32 %s159, 1
        %s2982 = scalar_lea.sflag [#allocation5], %s2981
        %s2983 = sand.u32 %s159, 1
        %s2984 = scalar_lea.vmem [#allocation4], %s2983
        // Predicated region
        $region45: #{classifier_forward.1} parent=43 // pred_check
          %p2985 = pneg %p169
        $region46: #{classifier_forward.1} parent=43 // pred_check_branch
          %2987 = sbr.rel (%p2985) target = $region48
        $region47: #{classifier_forward.1} parent=43 // pred_region
          %s2989 = ssub.s32 16, 16
          %2990 = vsyncadd %s2982, %s2989
          %s2991 = smul.addr %s20, 16
          %s2992 = scalar_lea.hbm %s6, %s2991
          %s2994 = sshll.u32 %s2984, 4
          %s2995 = int_to_ptr.vmem [resolvable:$true] %s2994
          %2997 = dma.vmem_to_hbm [thread:$0]  %s2995, 16, %s2992, %s2982
        $region48: #{classifier_forward.1} parent=43 // pred_fallthru
          _
      $region44: #{classifier_forward.1} parent=5 // pred_fallthru
        _
      %p2998 = scmp.le.s32.totalorder 2, %s15
      // Predicated region
      $region49: #{classifier_forward.1} parent=5 // pred_check
        %p2999 = pneg %p2998
      $region50: #{classifier_forward.1} parent=5 // pred_check_branch
        %3001 = sbr.rel (%p2999) target = $region52
      $region51: #{classifier_forward.1} parent=5 // pred_region
        %s3002 = ssub.s32 %s15, 2
        // Predicated region
        $region53: #{classifier_forward.1} parent=51 // pred_check
          %p3003 = pneg %p175
        $region54: #{classifier_forward.1} parent=51 // pred_check_branch
          %3005 = sbr.rel (%p3003) target = $region56
        $region55: #{classifier_forward.1} parent=51 // pred_region
          %s3006 = sand.u32 %s160, 1
          %s3007 = scalar_lea.sflag [#allocation5], %s3006
          %s3008 = sand.u32 %s160, 1
          %s3009 = scalar_lea.vmem [#allocation4], %s3008
          %3010 = dma.done %s3007, 16
        $region56: #{classifier_forward.1} parent=51 // pred_fallthru
          _
      $region52: #{classifier_forward.1} parent=5 // pred_fallthru
        _
    $region6: #{classifier_forward.1} parent=1 // loop_footer
      %s19 = sadd.s32 1, %s15
    $region7: #{classifier_forward.1} parent=1 // loop_footer_branch
      %14 = sbr.rel target = $region3
    $region8: #{classifier_forward.1} parent=1 // loop_exit
      _
    %3011 = vsyncpa [#allocation5], 1
    %s3012 = scalar_lea.sflag [#allocation5], 1
    %3013 = vsyncpa %s3012, 1

</llo_original>
